<compile_context>
chip_gen: v7x
topology: tpu7x:2x2x1
jax: 0.10.0
libtpu: 0.0.40
codegen_flags: <defaults>
</compile_context>

<pallas_src>
import functools

import jax
import jax.numpy as jnp
from jax.experimental import pallas as pl
from jax.experimental.pallas import tpu as pltpu


# ----------------------------------------------------------------------------
# Helpers
# ----------------------------------------------------------------------------
def _round_up(x, m):
    return ((x + m - 1) // m) * m


def _vmem_capacity_bytes():
    try:
        return int(pltpu.get_tpu_info().vmem_capacity_bytes)
    except Exception:
        return 64 * 1024 * 1024  # v7x-safe fallback


def _derive_row_tile(ns_pad, cin_pad, out_dims, M):
    """Largest pooled-row tile that fits comfortably in VMEM on all generations."""
    capacity = _vmem_capacity_bytes()
    budget = capacity // 4                        # headroom: 16 MiB on v7x, 32 MiB on v5e/v6e
    max_out = max(out_dims)
    out_last = out_dims[-1]
    per_row = 2 * ns_pad * cin_pad * 2            # bf16 input block, double-buffered
    per_row += max_out * (4 + 2)                  # widest layer: f32 acc + bf16 copy
    per_row += out_last * 4 * 2                   # raw last-layer + running max (f32)
    per_row += 2 * out_last * 4                   # f32 output block, double-buffered
    in_dims = [cin_pad] + list(out_dims[:-1])
    w_bytes = 2 * sum(i * o * 2 + o * 4 for i, o in zip(in_dims, out_dims))
    tm = (budget - w_bytes) // per_row
    tm = max(8, (tm // 8) * 8)
    tm = min(tm, 1024)                            # HBM roofline saturates ~512-1024 rows
    tm = min(tm, max(8, _round_up((M + 3) // 4, 8)))   # >=4 row blocks: feed both v7x TCs
    return int(tm), capacity


# ----------------------------------------------------------------------------
# Pallas kernel: shared MLP (1x1 conv, BN folded) + ReLU stack + running max-pool
# ----------------------------------------------------------------------------
def _make_mlp_maxpool_kernel(num_layers, ns_pad):
    def kernel(g_ref, *rest):
        # g_ref : (1, ns_pad, tm, cin_pad) bf16 sample-major grouped-feature block
        # rest  : (w0, b0, w1, b1, ..., out_ref)
        out_ref = rest[-1]                 # (1, tm, cout_last) f32 pooled output block
        params = rest[:-1]

        def stack(h):
            # hidden layers: bias + ReLU applied per (row, sample) element
            for l in range(num_layers - 1):
                w = params[2 * l][0]       # (in_l, out_l) bf16, BN scale folded in
                b = params[2 * l + 1][0]   # (1, out_l)   f32
                acc = jnp.dot(h, w, preferred_element_type=jnp.float32)
                h = jnp.maximum(acc + b, 0.0).astype(jnp.bfloat16)
            # last layer: raw matmul only; its bias+ReLU is commuted past the max
            w_last = params[2 * (num_layers - 1)][0]
            return jnp.dot(h, w_last, preferred_element_type=jnp.float32)

        pooled = stack(g_ref[0, 0])                       # (tm, cout_last) f32
        for j in range(1, ns_pad):                        # running max (pure VPU)
            pooled = jnp.maximum(pooled, stack(g_ref[0, j]))
        b_last = params[2 * num_layers - 1][0]            # (1, cout_last) f32
        out_ref[0] = jnp.maximum(pooled + b_last, 0.0)

    return kernel


def fused_mlp_maxpool(grouped_list, weights_list, biases_list):
    """Run the MLP + maxpool of several groupers (same MLP depth) in one pallas_call.

    grouped_list[g]:      (ns_g, M, cin_true) bf16, sample-major
    weights_list[g][l]:   (cin_l, cout_l) f32 (BN scale & radius already folded in)
    biases_list[g][l]:    (1, cout_l) f32
    Returns a list of (M, cout_last_g) f32 pooled features, one per grouper.
    """
    G = len(grouped_list)
    num_layers = len(weights_list[0])
    M = grouped_list[0].shape[1]
    cin_true = grouped_list[0].shape[-1]
    cin_pad = _round_up(cin_true, 8)          # keep the HBM-dominant dim narrow
    ns_pad = _round_up(max(g.shape[0] for g in grouped_list), 8)

    # Per-layer padded channel dims (outputs lane-dense, 128-aligned).
    in_dims, out_dims = [cin_pad], []
    for l in range(num_layers):
        cout_pad = _round_up(max(weights_list[g][l].shape[1] for g in range(G)), 128)
        out_dims.append(cout_pad)
        in_dims.append(cout_pad)

    # Stack + zero-pad parameters across groupers; bf16 weights, f32 biases.
    ws, bs = [], []
    for l in range(num_layers):
        wl, bl = [], []
        for g in range(G):
            w = weights_list[g][l]
            b = biases_list[g][l]
            w = jnp.pad(w, ((0, in_dims[l] - w.shape[0]), (0, out_dims[l] - w.shape[1])))
            b = jnp.pad(b, ((0, 0), (0, out_dims[l] - b.shape[1])))
            wl.append(w)
            bl.append(b)
        ws.append(jnp.stack(wl).astype(jnp.bfloat16))     # (G, in_l, out_l)
        bs.append(jnp.stack(bl).astype(jnp.float32))      # (G, 1, out_l)

    tm, capacity = _derive_row_tile(ns_pad, cin_pad, out_dims, M)
    m_blocks = -(-M // tm)
    m_pad = m_blocks * tm

    # Stack grouped features into (G, ns_pad, m_pad, cin_pad) bf16:
    # ns padded by replicating sample 0 (duplicates never change a max),
    # rows and channels padded with zeros (sliced off / multiplied by zero weights).
    gl = []
    for g in range(G):
        x = grouped_list[g]                                # (ns_g, M, cin_true)
        ns_g = x.shape[0]
        if ns_g < ns_pad:
            x = jnp.concatenate(
                [x, jnp.broadcast_to(x[:1], (ns_pad - ns_g, M, cin_true))], axis=0)
        x = jnp.pad(x, ((0, 0), (0, m_pad - M), (0, cin_pad - cin_true)))
        gl.append(x)
    grouped = jnp.stack(gl)                                # (G, ns_pad, m_pad, cin_pad)

    in_specs = [pl.BlockSpec((1, ns_pad, tm, cin_pad), lambda g, i: (g, 0, i, 0))]
    args = [grouped]
    for l in range(num_layers):
        in_specs.append(pl.BlockSpec((1, in_dims[l], out_dims[l]), lambda g, i: (g, 0, 0)))
        in_specs.append(pl.BlockSpec((1, 1, out_dims[l]), lambda g, i: (g, 0, 0)))
        args += [ws[l], bs[l]]

    kernel = _make_mlp_maxpool_kernel(num_layers, ns_pad)
    pooled = pl.pallas_call(
        kernel,
        out_shape=jax.ShapeDtypeStruct((G, m_pad, out_dims[-1]), jnp.float32),
        grid=(G, m_blocks),
        in_specs=in_specs,
        out_specs=pl.BlockSpec((1, tm, out_dims[-1]), lambda g, i: (g, i, 0)),
        compiler_params=pltpu.CompilerParams(
            dimension_semantics=("parallel", "parallel"),
            vmem_limit_bytes=int(capacity // 2)),
    )(*args)

    return [pooled[g, :M, :weights_list[g][-1].shape[1]] for g in range(G)]


# ----------------------------------------------------------------------------
# Plain-JAX glue: FPS, gather, ball query (data-dependent, not the hot path)
# ----------------------------------------------------------------------------
def farthest_point_sample(xyz, npoint):
    """xyz: (B, N, 3) -> (B, npoint) int32 indices.  Starts at index 0 (CUDA behavior)."""
    B, N, _ = xyz.shape

    def body(i, state):
        idx, dist, farthest = state
        idx = idx.at[:, i].set(farthest)
        centroid = xyz[jnp.arange(B), farthest][:, None, :]          # (B, 1, 3)
        d = jnp.sum((xyz - centroid) ** 2, axis=-1)                  # (B, N)
        dist = jnp.minimum(dist, d)
        farthest = jnp.argmax(dist, axis=-1).astype(jnp.int32)
        return idx, dist, farthest

    idx0 = jnp.zeros((B, npoint), jnp.int32)
    dist0 = jnp.full((B, N), 1e10, jnp.float32)
    far0 = jnp.zeros((B,), jnp.int32)
    idx, _, _ = jax.lax.fori_loop(0, npoint, body, (idx0, dist0, far0))
    return idx


def gather_points(points, idx):
    """points: (B, N, D), idx: (B, ...) -> (B, ..., D)."""
    B = points.shape[0]
    bidx = jnp.arange(B).reshape((B,) + (1,) * (idx.ndim - 1))
    return points[bidx, idx]


def ball_query(radius, nsample, xyz, new_xyz):
    """First `nsample` in-radius point indices per center (first index replicated;
    all zeros when no point is in radius — matches the CUDA zero-init behavior).
    Uses cumsum + scatter instead of an O(N log N) argsort."""
    B, N, _ = xyz.shape
    S = new_xyz.shape[1]
    d2 = jnp.sum((new_xyz[:, :, None, :] - xyz[:, None, :, :]) ** 2, axis=-1)  # (B, S, N)
    mask = d2 < radius * radius
    rank = jnp.cumsum(mask.astype(jnp.int32), axis=-1) - 1          # slot among valid pts
    slot = jnp.where(mask & (rank < nsample), rank, nsample)         # overflow -> dump slot
    point_ids = jnp.broadcast_to(jnp.arange(N, dtype=jnp.int32), (B, S, N))
    b_idx = jnp.arange(B)[:, None, None]
    s_idx = jnp.arange(S)[None, :, None]
    buf = jnp.zeros((B, S, nsample + 1), jnp.int32)
    buf = buf.at[b_idx, s_idx, slot].set(point_ids)
    idx = buf[..., :nsample]
    cnt = jnp.sum(mask, axis=-1, keepdims=True)
    idx = jnp.where(jnp.arange(nsample)[None, None, :] < cnt, idx, idx[..., :1])
    return idx.astype(jnp.int32)


# ----------------------------------------------------------------------------
# Module: MSG instantiation of _PointnetSAModuleBase (pool_method='max_pool')
# ----------------------------------------------------------------------------
class PointnetSAModuleMSGPallas:
    def __init__(self, npoint, radii, nsamples, mlps, in_channels, key):
        assert len(radii) == len(nsamples) == len(mlps)
        self.npoint = npoint
        self.radii = radii
        self.nsamples = nsamples
        self.weights, self.biases = [], []       # eval-mode BN scale folded into weights
        eps = 1e-5
        for mlp in mlps:
            spec = [in_channels + 3] + mlp        # use_xyz=True -> +3 channels
            ws, bs = [], []
            for cin, cout in zip(spec[:-1], spec[1:]):
                key, k1, k2, k3, k4, k5 = jax.random.split(key, 6)
                w = jax.random.normal(k1, (cin, cout), jnp.float32) * jnp.sqrt(2.0 / cin)
                gamma = 1.0 + 0.1 * jax.random.normal(k2, (cout,), jnp.float32)
                beta = 0.1 * jax.random.normal(k3, (cout,), jnp.float32)
                r_mean = 0.1 * jax.random.normal(k4, (cout,), jnp.float32)
                r_var = 1.0 + 0.1 * jax.random.uniform(k5, (cout,), jnp.float32)
                scale = gamma / jnp.sqrt(r_var + eps)     # folded eval-mode BN
                bias = beta - r_mean * scale
                ws.append(w * scale[None, :])             # fold scale into conv weight
                bs.append(bias.reshape(1, cout))
            self.weights.append(ws)
            self.biases.append(bs)

    # ---- grouping ----------------------------------------------------------
    def _group_reference(self, i, xyz, new_xyz, features):
        idx = ball_query(self.radii[i], self.nsamples[i], xyz, new_xyz)   # (B, S, ns)
        gxyz = gather_points(xyz, idx) - new_xyz[:, :, None, :]           # (B, S, ns, 3)
        gfeat = gather_points(features, idx)                              # (B, S, ns, C)
        return jnp.concatenate([gxyz, gfeat], axis=-1)                    # f32

    def _group_for_kernel(self, i, xyz, new_xyz, features):
        # bf16 cast + 1/radius scaling immediately after the gather (the radius is
        # folded back into the xyz rows of the layer-0 weight) -> halves glue HBM
        # traffic; layout is sample-major (ns, M, 3+C) for the incremental-max kernel.
        B, S = new_xyz.shape[0], new_xyz.shape[1]
        idx = ball_query(self.radii[i], self.nsamples[i], xyz, new_xyz)
        gxyz = (gather_points(xyz, idx) - new_xyz[:, :, None, :]) * (1.0 / self.radii[i])
        gfeat = gather_points(features, idx)
        g = jnp.concatenate([gxyz, gfeat], axis=-1).astype(jnp.bfloat16)
        ns = idx.shape[-1]
        return jnp.transpose(g.reshape(B * S, ns, g.shape[-1]), (1, 0, 2))

    # ---- forward -----------------------------------------------------------
    def __call__(self, xyz, features, use_pallas=True):
        """xyz: (B, N, 3); features: (B, N, C) -> (new_xyz (B,S,3), feats (B, sum Cout, S))."""
        fps_idx = farthest_point_sample(xyz, self.npoint)
        new_xyz = gather_points(xyz, fps_idx)                             # (B, S, 3)
        B, S = new_xyz.shape[0], new_xyz.shape[1]
        n_group = len(self.radii)

        outs = [None] * n_group
        if use_pallas:
            # Fuse groupers per (mlp depth, padded nsample) class so small-nsample
            # groupers don't pay replicate-padding HBM/compute up to the largest one.
            classes = {}
            for i in range(n_group):
                key = (len(self.weights[i]), _round_up(self.nsamples[i], 8))
                classes.setdefault(key, []).append(i)
            for idxs in classes.values():
                gl, wl, bl = [], [], []
                for i in idxs:
                    gl.append(self._group_for_kernel(i, xyz, new_xyz, features))
                    w0 = self.weights[i][0]
                    w0 = jnp.concatenate([w0[:3] * self.radii[i], w0[3:]], axis=0)
                    wl.append([w0] + list(self.weights[i][1:]))
                    bl.append(self.biases[i])
                pooled = fused_mlp_maxpool(gl, wl, bl)
                for i, p in zip(idxs, pooled):
                    outs[i] = jnp.transpose(p.reshape(B, S, -1), (0, 2, 1))  # (B, Cout, S)
        else:  # pure-JAX f32 reference of the same forward
            for i in range(n_group):
                h = self._group_reference(i, xyz, new_xyz, features)
                for w, b in zip(self.weights[i], self.biases[i]):
                    h = jnp.maximum(jnp.einsum("bsnc,co->bsno", h, w) + b, 0.0)
                outs[i] = jnp.transpose(jnp.max(h, axis=2), (0, 2, 1))
        return new_xyz, jnp.concatenate(outs, axis=1)


# ----------------------------------------------------------------------------
if __name__ == "__main__":
    B, N, C = 2, 64, 4
    npoint = 16
    radii = [0.3, 0.6]
    nsamples = [8, 16]
    mlps = [[16, 32], [16, 32]]

    key = jax.random.PRNGKey(0)
    k_xyz, k_feat, k_params = jax.random.split(key, 3)
    xyz = jax.random.uniform(k_xyz, (B, N, 3), jnp.float32)
    features = jax.random.normal(k_feat, (B, N, C), jnp.float32)

    module = PointnetSAModuleMSGPallas(npoint, radii, nsamples, mlps, C, k_params)

    new_xyz, new_feats = jax.jit(functools.partial(module.__call__, use_pallas=True))(
        xyz, features
    )
    jax.block_until_ready((new_xyz, new_feats))

    assert new_xyz.shape == (B, npoint, 3)
    assert new_feats.shape == (B, sum(m[-1] for m in mlps), npoint)

    # sanity check against a pure-JAX f32 reference of the same forward
    _, ref_feats = module(xyz, features, use_pallas=False)
    assert jnp.allclose(new_feats, ref_feats, rtol=5e-2, atol=5e-2), "mismatch vs reference"

    print("KERNEL_OK")
</pallas_src>

<mosaic_0001>
module attributes {stable_mosaic.version = 11 : i64} {
  func.func @kernel(%arg0: i32, %arg1: i32, %arg2: memref<1x8x8x8xbf16, #tpu.memory_space<vmem>>, %arg3: memref<1x8x128xbf16, #tpu.memory_space<vmem>>, %arg4: memref<1x1x128xf32, #tpu.memory_space<vmem>>, %arg5: memref<1x128x128xbf16, #tpu.memory_space<vmem>>, %arg6: memref<1x1x128xf32, #tpu.memory_space<vmem>>, %arg7: memref<1x8x128xf32, #tpu.memory_space<vmem>>) attributes {dimension_semantics = [#tpu.dimension_semantics<parallel>, #tpu.dimension_semantics<parallel>], iteration_bounds = array<i64: 1, 4>, scalar_prefetch = 0 : i64, scratch_operands = 0 : i64, tpu.core_type = #tpu.core_type<tc>, window_params = [{transform_indices = @transform_0, window_bounds = array<i64: 1, 8, 8, 8>}, {transform_indices = @transform_1, window_bounds = array<i64: 1, 8, 128>}, {transform_indices = @transform_2, window_bounds = array<i64: 1, 1, 128>}, {transform_indices = @transform_3, window_bounds = array<i64: 1, 128, 128>}, {transform_indices = @transform_4, window_bounds = array<i64: 1, 1, 128>}, {transform_indices = @transform_5, window_bounds = array<i64: 1, 8, 128>}]} {
    %c0 = arith.constant 0 : index
    %c0_0 = arith.constant 0 : index
    %c0_1 = arith.constant 0 : index
    %c0_2 = arith.constant 0 : index
    %0 = vector.load %arg2[%c0, %c0_0, %c0_1, %c0_2] : memref<1x8x8x8xbf16, #tpu.memory_space<vmem>>, vector<1x1x8x8xbf16>
    %1 = vector.shape_cast %0 : vector<1x1x8x8xbf16> to vector<8x8xbf16>
    %c0_3 = arith.constant 0 : index
    %c0_4 = arith.constant 0 : index
    %c0_5 = arith.constant 0 : index
    %2 = vector.load %arg3[%c0_3, %c0_4, %c0_5] : memref<1x8x128xbf16, #tpu.memory_space<vmem>>, vector<1x8x128xbf16>
    %3 = vector.shape_cast %2 : vector<1x8x128xbf16> to vector<8x128xbf16>
    %c0_6 = arith.constant 0 : index
    %c0_7 = arith.constant 0 : index
    %c0_8 = arith.constant 0 : index
    %4 = vector.load %arg4[%c0_6, %c0_7, %c0_8] : memref<1x1x128xf32, #tpu.memory_space<vmem>>, vector<1x1x128xf32>
    %5 = vector.shape_cast %4 : vector<1x1x128xf32> to vector<1x128xf32>
    %cst = arith.constant dense<0.000000e+00> : vector<8x128xf32>
    %6 = tpu.matmul %1, %3, %cst {dimension_numbers = #tpu.dot_dimension_numbers<[1], [0], [0], [1], [0, 0, 1, 1], [], []>} : vector<8x8xbf16>, vector<8x128xbf16>, vector<8x128xf32> -> vector<8x128xf32>
    %7 = vector.broadcast %5 : vector<1x128xf32> to vector<8x128xf32>
    %8 = arith.addf %6, %7 : vector<8x128xf32>
    %cst_9 = arith.constant 0.000000e+00 : f32
    %9 = vector.broadcast %cst_9 : f32 to vector<8x128xf32>
    %10 = arith.maximumf %8, %9 : vector<8x128xf32>
    %11 = arith.truncf %10 : vector<8x128xf32> to vector<8x128xbf16>
    %c0_10 = arith.constant 0 : index
    %c0_11 = arith.constant 0 : index
    %c0_12 = arith.constant 0 : index
    %12 = vector.load %arg5[%c0_10, %c0_11, %c0_12] : memref<1x128x128xbf16, #tpu.memory_space<vmem>>, vector<1x128x128xbf16>
    %13 = vector.shape_cast %12 : vector<1x128x128xbf16> to vector<128x128xbf16>
    %cst_13 = arith.constant dense<0.000000e+00> : vector<8x128xf32>
    %14 = tpu.matmul %11, %13, %cst_13 {dimension_numbers = #tpu.dot_dimension_numbers<[1], [0], [0], [1], [0, 0, 1, 1], [], []>} : vector<8x128xbf16>, vector<128x128xbf16>, vector<8x128xf32> -> vector<8x128xf32>
    %c0_14 = arith.constant 0 : index
    %c1 = arith.constant 1 : index
    %c0_15 = arith.constant 0 : index
    %c0_16 = arith.constant 0 : index
    %15 = vector.load %arg2[%c0_14, %c1, %c0_15, %c0_16] : memref<1x8x8x8xbf16, #tpu.memory_space<vmem>>, vector<1x1x8x8xbf16>
    %16 = vector.shape_cast %15 : vector<1x1x8x8xbf16> to vector<8x8xbf16>
    %c0_17 = arith.constant 0 : index
    %c0_18 = arith.constant 0 : index
    %c0_19 = arith.constant 0 : index
    %17 = vector.load %arg3[%c0_17, %c0_18, %c0_19] : memref<1x8x128xbf16, #tpu.memory_space<vmem>>, vector<1x8x128xbf16>
    %18 = vector.shape_cast %17 : vector<1x8x128xbf16> to vector<8x128xbf16>
    %c0_20 = arith.constant 0 : index
    %c0_21 = arith.constant 0 : index
    %c0_22 = arith.constant 0 : index
    %19 = vector.load %arg4[%c0_20, %c0_21, %c0_22] : memref<1x1x128xf32, #tpu.memory_space<vmem>>, vector<1x1x128xf32>
    %20 = vector.shape_cast %19 : vector<1x1x128xf32> to vector<1x128xf32>
    %cst_23 = arith.constant dense<0.000000e+00> : vector<8x128xf32>
    %21 = tpu.matmul %16, %18, %cst_23 {dimension_numbers = #tpu.dot_dimension_numbers<[1], [0], [0], [1], [0, 0, 1, 1], [], []>} : vector<8x8xbf16>, vector<8x128xbf16>, vector<8x128xf32> -> vector<8x128xf32>
    %22 = vector.broadcast %20 : vector<1x128xf32> to vector<8x128xf32>
    %23 = arith.addf %21, %22 : vector<8x128xf32>
    %cst_24 = arith.constant 0.000000e+00 : f32
    %24 = vector.broadcast %cst_24 : f32 to vector<8x128xf32>
    %25 = arith.maximumf %23, %24 : vector<8x128xf32>
    %26 = arith.truncf %25 : vector<8x128xf32> to vector<8x128xbf16>
    %c0_25 = arith.constant 0 : index
    %c0_26 = arith.constant 0 : index
    %c0_27 = arith.constant 0 : index
    %27 = vector.load %arg5[%c0_25, %c0_26, %c0_27] : memref<1x128x128xbf16, #tpu.memory_space<vmem>>, vector<1x128x128xbf16>
    %28 = vector.shape_cast %27 : vector<1x128x128xbf16> to vector<128x128xbf16>
    %cst_28 = arith.constant dense<0.000000e+00> : vector<8x128xf32>
    %29 = tpu.matmul %26, %28, %cst_28 {dimension_numbers = #tpu.dot_dimension_numbers<[1], [0], [0], [1], [0, 0, 1, 1], [], []>} : vector<8x128xbf16>, vector<128x128xbf16>, vector<8x128xf32> -> vector<8x128xf32>
    %30 = arith.maximumf %14, %29 : vector<8x128xf32>
    %c0_29 = arith.constant 0 : index
    %c2 = arith.constant 2 : index
    %c0_30 = arith.constant 0 : index
    %c0_31 = arith.constant 0 : index
    %31 = vector.load %arg2[%c0_29, %c2, %c0_30, %c0_31] : memref<1x8x8x8xbf16, #tpu.memory_space<vmem>>, vector<1x1x8x8xbf16>
    %32 = vector.shape_cast %31 : vector<1x1x8x8xbf16> to vector<8x8xbf16>
    %c0_32 = arith.constant 0 : index
    %c0_33 = arith.constant 0 : index
    %c0_34 = arith.constant 0 : index
    %33 = vector.load %arg3[%c0_32, %c0_33, %c0_34] : memref<1x8x128xbf16, #tpu.memory_space<vmem>>, vector<1x8x128xbf16>
    %34 = vector.shape_cast %33 : vector<1x8x128xbf16> to vector<8x128xbf16>
    %c0_35 = arith.constant 0 : index
    %c0_36 = arith.constant 0 : index
    %c0_37 = arith.constant 0 : index
    %35 = vector.load %arg4[%c0_35, %c0_36, %c0_37] : memref<1x1x128xf32, #tpu.memory_space<vmem>>, vector<1x1x128xf32>
    %36 = vector.shape_cast %35 : vector<1x1x128xf32> to vector<1x128xf32>
    %cst_38 = arith.constant dense<0.000000e+00> : vector<8x128xf32>
    %37 = tpu.matmul %32, %34, %cst_38 {dimension_numbers = #tpu.dot_dimension_numbers<[1], [0], [0], [1], [0, 0, 1, 1], [], []>} : vector<8x8xbf16>, vector<8x128xbf16>, vector<8x128xf32> -> vector<8x128xf32>
    %38 = vector.broadcast %36 : vector<1x128xf32> to vector<8x128xf32>
    %39 = arith.addf %37, %38 : vector<8x128xf32>
    %cst_39 = arith.constant 0.000000e+00 : f32
    %40 = vector.broadcast %cst_39 : f32 to vector<8x128xf32>
    %41 = arith.maximumf %39, %40 : vector<8x128xf32>
    %42 = arith.truncf %41 : vector<8x128xf32> to vector<8x128xbf16>
    %c0_40 = arith.constant 0 : index
    %c0_41 = arith.constant 0 : index
    %c0_42 = arith.constant 0 : index
    %43 = vector.load %arg5[%c0_40, %c0_41, %c0_42] : memref<1x128x128xbf16, #tpu.memory_space<vmem>>, vector<1x128x128xbf16>
    %44 = vector.shape_cast %43 : vector<1x128x128xbf16> to vector<128x128xbf16>
    %cst_43 = arith.constant dense<0.000000e+00> : vector<8x128xf32>
    %45 = tpu.matmul %42, %44, %cst_43 {dimension_numbers = #tpu.dot_dimension_numbers<[1], [0], [0], [1], [0, 0, 1, 1], [], []>} : vector<8x128xbf16>, vector<128x128xbf16>, vector<8x128xf32> -> vector<8x128xf32>
    %46 = arith.maximumf %30, %45 : vector<8x128xf32>
    %c0_44 = arith.constant 0 : index
    %c3 = arith.constant 3 : index
    %c0_45 = arith.constant 0 : index
    %c0_46 = arith.constant 0 : index
    %47 = vector.load %arg2[%c0_44, %c3, %c0_45, %c0_46] : memref<1x8x8x8xbf16, #tpu.memory_space<vmem>>, vector<1x1x8x8xbf16>
    %48 = vector.shape_cast %47 : vector<1x1x8x8xbf16> to vector<8x8xbf16>
    %c0_47 = arith.constant 0 : index
    %c0_48 = arith.constant 0 : index
    %c0_49 = arith.constant 0 : index
    %49 = vector.load %arg3[%c0_47, %c0_48, %c0_49] : memref<1x8x128xbf16, #tpu.memory_space<vmem>>, vector<1x8x128xbf16>
    %50 = vector.shape_cast %49 : vector<1x8x128xbf16> to vector<8x128xbf16>
    %c0_50 = arith.constant 0 : index
    %c0_51 = arith.constant 0 : index
    %c0_52 = arith.constant 0 : index
    %51 = vector.load %arg4[%c0_50, %c0_51, %c0_52] : memref<1x1x128xf32, #tpu.memory_space<vmem>>, vector<1x1x128xf32>
    %52 = vector.shape_cast %51 : vector<1x1x128xf32> to vector<1x128xf32>
    %cst_53 = arith.constant dense<0.000000e+00> : vector<8x128xf32>
    %53 = tpu.matmul %48, %50, %cst_53 {dimension_numbers = #tpu.dot_dimension_numbers<[1], [0], [0], [1], [0, 0, 1, 1], [], []>} : vector<8x8xbf16>, vector<8x128xbf16>, vector<8x128xf32> -> vector<8x128xf32>
    %54 = vector.broadcast %52 : vector<1x128xf32> to vector<8x128xf32>
    %55 = arith.addf %53, %54 : vector<8x128xf32>
    %cst_54 = arith.constant 0.000000e+00 : f32
    %56 = vector.broadcast %cst_54 : f32 to vector<8x128xf32>
    %57 = arith.maximumf %55, %56 : vector<8x128xf32>
    %58 = arith.truncf %57 : vector<8x128xf32> to vector<8x128xbf16>
    %c0_55 = arith.constant 0 : index
    %c0_56 = arith.constant 0 : index
    %c0_57 = arith.constant 0 : index
    %59 = vector.load %arg5[%c0_55, %c0_56, %c0_57] : memref<1x128x128xbf16, #tpu.memory_space<vmem>>, vector<1x128x128xbf16>
    %60 = vector.shape_cast %59 : vector<1x128x128xbf16> to vector<128x128xbf16>
    %cst_58 = arith.constant dense<0.000000e+00> : vector<8x128xf32>
    %61 = tpu.matmul %58, %60, %cst_58 {dimension_numbers = #tpu.dot_dimension_numbers<[1], [0], [0], [1], [0, 0, 1, 1], [], []>} : vector<8x128xbf16>, vector<128x128xbf16>, vector<8x128xf32> -> vector<8x128xf32>
    %62 = arith.maximumf %46, %61 : vector<8x128xf32>
    %c0_59 = arith.constant 0 : index
    %c4 = arith.constant 4 : index
    %c0_60 = arith.constant 0 : index
    %c0_61 = arith.constant 0 : index
    %63 = vector.load %arg2[%c0_59, %c4, %c0_60, %c0_61] : memref<1x8x8x8xbf16, #tpu.memory_space<vmem>>, vector<1x1x8x8xbf16>
    %64 = vector.shape_cast %63 : vector<1x1x8x8xbf16> to vector<8x8xbf16>
    %c0_62 = arith.constant 0 : index
    %c0_63 = arith.constant 0 : index
    %c0_64 = arith.constant 0 : index
    %65 = vector.load %arg3[%c0_62, %c0_63, %c0_64] : memref<1x8x128xbf16, #tpu.memory_space<vmem>>, vector<1x8x128xbf16>
    %66 = vector.shape_cast %65 : vector<1x8x128xbf16> to vector<8x128xbf16>
    %c0_65 = arith.constant 0 : index
    %c0_66 = arith.constant 0 : index
    %c0_67 = arith.constant 0 : index
    %67 = vector.load %arg4[%c0_65, %c0_66, %c0_67] : memref<1x1x128xf32, #tpu.memory_space<vmem>>, vector<1x1x128xf32>
    %68 = vector.shape_cast %67 : vector<1x1x128xf32> to vector<1x128xf32>
    %cst_68 = arith.constant dense<0.000000e+00> : vector<8x128xf32>
    %69 = tpu.matmul %64, %66, %cst_68 {dimension_numbers = #tpu.dot_dimension_numbers<[1], [0], [0], [1], [0, 0, 1, 1], [], []>} : vector<8x8xbf16>, vector<8x128xbf16>, vector<8x128xf32> -> vector<8x128xf32>
    %70 = vector.broadcast %68 : vector<1x128xf32> to vector<8x128xf32>
    %71 = arith.addf %69, %70 : vector<8x128xf32>
    %cst_69 = arith.constant 0.000000e+00 : f32
    %72 = vector.broadcast %cst_69 : f32 to vector<8x128xf32>
    %73 = arith.maximumf %71, %72 : vector<8x128xf32>
    %74 = arith.truncf %73 : vector<8x128xf32> to vector<8x128xbf16>
    %c0_70 = arith.constant 0 : index
    %c0_71 = arith.constant 0 : index
    %c0_72 = arith.constant 0 : index
    %75 = vector.load %arg5[%c0_70, %c0_71, %c0_72] : memref<1x128x128xbf16, #tpu.memory_space<vmem>>, vector<1x128x128xbf16>
    %76 = vector.shape_cast %75 : vector<1x128x128xbf16> to vector<128x128xbf16>
    %cst_73 = arith.constant dense<0.000000e+00> : vector<8x128xf32>
    %77 = tpu.matmul %74, %76, %cst_73 {dimension_numbers = #tpu.dot_dimension_numbers<[1], [0], [0], [1], [0, 0, 1, 1], [], []>} : vector<8x128xbf16>, vector<128x128xbf16>, vector<8x128xf32> -> vector<8x128xf32>
    %78 = arith.maximumf %62, %77 : vector<8x128xf32>
    %c0_74 = arith.constant 0 : index
    %c5 = arith.constant 5 : index
    %c0_75 = arith.constant 0 : index
    %c0_76 = arith.constant 0 : index
    %79 = vector.load %arg2[%c0_74, %c5, %c0_75, %c0_76] : memref<1x8x8x8xbf16, #tpu.memory_space<vmem>>, vector<1x1x8x8xbf16>
    %80 = vector.shape_cast %79 : vector<1x1x8x8xbf16> to vector<8x8xbf16>
    %c0_77 = arith.constant 0 : index
    %c0_78 = arith.constant 0 : index
    %c0_79 = arith.constant 0 : index
    %81 = vector.load %arg3[%c0_77, %c0_78, %c0_79] : memref<1x8x128xbf16, #tpu.memory_space<vmem>>, vector<1x8x128xbf16>
    %82 = vector.shape_cast %81 : vector<1x8x128xbf16> to vector<8x128xbf16>
    %c0_80 = arith.constant 0 : index
    %c0_81 = arith.constant 0 : index
    %c0_82 = arith.constant 0 : index
    %83 = vector.load %arg4[%c0_80, %c0_81, %c0_82] : memref<1x1x128xf32, #tpu.memory_space<vmem>>, vector<1x1x128xf32>
    %84 = vector.shape_cast %83 : vector<1x1x128xf32> to vector<1x128xf32>
    %cst_83 = arith.constant dense<0.000000e+00> : vector<8x128xf32>
    %85 = tpu.matmul %80, %82, %cst_83 {dimension_numbers = #tpu.dot_dimension_numbers<[1], [0], [0], [1], [0, 0, 1, 1], [], []>} : vector<8x8xbf16>, vector<8x128xbf16>, vector<8x128xf32> -> vector<8x128xf32>
    %86 = vector.broadcast %84 : vector<1x128xf32> to vector<8x128xf32>
    %87 = arith.addf %85, %86 : vector<8x128xf32>
    %cst_84 = arith.constant 0.000000e+00 : f32
    %88 = vector.broadcast %cst_84 : f32 to vector<8x128xf32>
    %89 = arith.maximumf %87, %88 : vector<8x128xf32>
    %90 = arith.truncf %89 : vector<8x128xf32> to vector<8x128xbf16>
    %c0_85 = arith.constant 0 : index
    %c0_86 = arith.constant 0 : index
    %c0_87 = arith.constant 0 : index
    %91 = vector.load %arg5[%c0_85, %c0_86, %c0_87] : memref<1x128x128xbf16, #tpu.memory_space<vmem>>, vector<1x128x128xbf16>
    %92 = vector.shape_cast %91 : vector<1x128x128xbf16> to vector<128x128xbf16>
    %cst_88 = arith.constant dense<0.000000e+00> : vector<8x128xf32>
    %93 = tpu.matmul %90, %92, %cst_88 {dimension_numbers = #tpu.dot_dimension_numbers<[1], [0], [0], [1], [0, 0, 1, 1], [], []>} : vector<8x128xbf16>, vector<128x128xbf16>, vector<8x128xf32> -> vector<8x128xf32>
    %94 = arith.maximumf %78, %93 : vector<8x128xf32>
    %c0_89 = arith.constant 0 : index
    %c6 = arith.constant 6 : index
    %c0_90 = arith.constant 0 : index
    %c0_91 = arith.constant 0 : index
    %95 = vector.load %arg2[%c0_89, %c6, %c0_90, %c0_91] : memref<1x8x8x8xbf16, #tpu.memory_space<vmem>>, vector<1x1x8x8xbf16>
    %96 = vector.shape_cast %95 : vector<1x1x8x8xbf16> to vector<8x8xbf16>
    %c0_92 = arith.constant 0 : index
    %c0_93 = arith.constant 0 : index
    %c0_94 = arith.constant 0 : index
    %97 = vector.load %arg3[%c0_92, %c0_93, %c0_94] : memref<1x8x128xbf16, #tpu.memory_space<vmem>>, vector<1x8x128xbf16>
    %98 = vector.shape_cast %97 : vector<1x8x128xbf16> to vector<8x128xbf16>
    %c0_95 = arith.constant 0 : index
    %c0_96 = arith.constant 0 : index
    %c0_97 = arith.constant 0 : index
    %99 = vector.load %arg4[%c0_95, %c0_96, %c0_97] : memref<1x1x128xf32, #tpu.memory_space<vmem>>, vector<1x1x128xf32>
    %100 = vector.shape_cast %99 : vector<1x1x128xf32> to vector<1x128xf32>
    %cst_98 = arith.constant dense<0.000000e+00> : vector<8x128xf32>
    %101 = tpu.matmul %96, %98, %cst_98 {dimension_numbers = #tpu.dot_dimension_numbers<[1], [0], [0], [1], [0, 0, 1, 1], [], []>} : vector<8x8xbf16>, vector<8x128xbf16>, vector<8x128xf32> -> vector<8x128xf32>
    %102 = vector.broadcast %100 : vector<1x128xf32> to vector<8x128xf32>
    %103 = arith.addf %101, %102 : vector<8x128xf32>
    %cst_99 = arith.constant 0.000000e+00 : f32
    %104 = vector.broadcast %cst_99 : f32 to vector<8x128xf32>
    %105 = arith.maximumf %103, %104 : vector<8x128xf32>
    %106 = arith.truncf %105 : vector<8x128xf32> to vector<8x128xbf16>
    %c0_100 = arith.constant 0 : index
    %c0_101 = arith.constant 0 : index
    %c0_102 = arith.constant 0 : index
    %107 = vector.load %arg5[%c0_100, %c0_101, %c0_102] : memref<1x128x128xbf16, #tpu.memory_space<vmem>>, vector<1x128x128xbf16>
    %108 = vector.shape_cast %107 : vector<1x128x128xbf16> to vector<128x128xbf16>
    %cst_103 = arith.constant dense<0.000000e+00> : vector<8x128xf32>
    %109 = tpu.matmul %106, %108, %cst_103 {dimension_numbers = #tpu.dot_dimension_numbers<[1], [0], [0], [1], [0, 0, 1, 1], [], []>} : vector<8x128xbf16>, vector<128x128xbf16>, vector<8x128xf32> -> vector<8x128xf32>
    %110 = arith.maximumf %94, %109 : vector<8x128xf32>
    %c0_104 = arith.constant 0 : index
    %c7 = arith.constant 7 : index
    %c0_105 = arith.constant 0 : index
    %c0_106 = arith.constant 0 : index
    %111 = vector.load %arg2[%c0_104, %c7, %c0_105, %c0_106] : memref<1x8x8x8xbf16, #tpu.memory_space<vmem>>, vector<1x1x8x8xbf16>
    %112 = vector.shape_cast %111 : vector<1x1x8x8xbf16> to vector<8x8xbf16>
    %c0_107 = arith.constant 0 : index
    %c0_108 = arith.constant 0 : index
    %c0_109 = arith.constant 0 : index
    %113 = vector.load %arg3[%c0_107, %c0_108, %c0_109] : memref<1x8x128xbf16, #tpu.memory_space<vmem>>, vector<1x8x128xbf16>
    %114 = vector.shape_cast %113 : vector<1x8x128xbf16> to vector<8x128xbf16>
    %c0_110 = arith.constant 0 : index
    %c0_111 = arith.constant 0 : index
    %c0_112 = arith.constant 0 : index
    %115 = vector.load %arg4[%c0_110, %c0_111, %c0_112] : memref<1x1x128xf32, #tpu.memory_space<vmem>>, vector<1x1x128xf32>
    %116 = vector.shape_cast %115 : vector<1x1x128xf32> to vector<1x128xf32>
    %cst_113 = arith.constant dense<0.000000e+00> : vector<8x128xf32>
    %117 = tpu.matmul %112, %114, %cst_113 {dimension_numbers = #tpu.dot_dimension_numbers<[1], [0], [0], [1], [0, 0, 1, 1], [], []>} : vector<8x8xbf16>, vector<8x128xbf16>, vector<8x128xf32> -> vector<8x128xf32>
    %118 = vector.broadcast %116 : vector<1x128xf32> to vector<8x128xf32>
    %119 = arith.addf %117, %118 : vector<8x128xf32>
    %cst_114 = arith.constant 0.000000e+00 : f32
    %120 = vector.broadcast %cst_114 : f32 to vector<8x128xf32>
    %121 = arith.maximumf %119, %120 : vector<8x128xf32>
    %122 = arith.truncf %121 : vector<8x128xf32> to vector<8x128xbf16>
    %c0_115 = arith.constant 0 : index
    %c0_116 = arith.constant 0 : index
    %c0_117 = arith.constant 0 : index
    %123 = vector.load %arg5[%c0_115, %c0_116, %c0_117] : memref<1x128x128xbf16, #tpu.memory_space<vmem>>, vector<1x128x128xbf16>
    %124 = vector.shape_cast %123 : vector<1x128x128xbf16> to vector<128x128xbf16>
    %cst_118 = arith.constant dense<0.000000e+00> : vector<8x128xf32>
    %125 = tpu.matmul %122, %124, %cst_118 {dimension_numbers = #tpu.dot_dimension_numbers<[1], [0], [0], [1], [0, 0, 1, 1], [], []>} : vector<8x128xbf16>, vector<128x128xbf16>, vector<8x128xf32> -> vector<8x128xf32>
    %126 = arith.maximumf %110, %125 : vector<8x128xf32>
    %c0_119 = arith.constant 0 : index
    %c0_120 = arith.constant 0 : index
    %c0_121 = arith.constant 0 : index
    %127 = vector.load %arg6[%c0_119, %c0_120, %c0_121] : memref<1x1x128xf32, #tpu.memory_space<vmem>>, vector<1x1x128xf32>
    %128 = vector.shape_cast %127 : vector<1x1x128xf32> to vector<1x128xf32>
    %129 = vector.broadcast %128 : vector<1x128xf32> to vector<8x128xf32>
    %130 = arith.addf %126, %129 : vector<8x128xf32>
    %cst_122 = arith.constant 0.000000e+00 : f32
    %131 = vector.broadcast %cst_122 : f32 to vector<8x128xf32>
    %132 = arith.maximumf %130, %131 : vector<8x128xf32>
    %c0_123 = arith.constant 0 : index
    %c0_124 = arith.constant 0 : index
    %c0_125 = arith.constant 0 : index
    %133 = vector.load %arg7[%c0_123, %c0_124, %c0_125] : memref<1x8x128xf32, #tpu.memory_space<vmem>>, vector<1x8x128xf32>
    %134 = vector.shape_cast %133 : vector<1x8x128xf32> to vector<8x128xf32>
    %135 = vector.shape_cast %132 : vector<8x128xf32> to vector<1x8x128xf32>
    tpu.vector_store %arg7[%c0_123, %c0_124, %c0_125], %135 {strides = array<i32>} : memref<1x8x128xf32, #tpu.memory_space<vmem>>, vector<1x8x128xf32>,
    return
  }
  func.func @transform_0(%arg0: i32, %arg1: i32) -> (i32, i32, i32, i32) {
    %c0_i32 = arith.constant 0 : i32
    %c0_i32_0 = arith.constant 0 : i32
    %c0_i32_1 = arith.constant 0 : i32
    return %arg0, %c0_i32, %arg1, %c0_i32_0 : i32, i32, i32, i32
  }
  func.func @transform_1(%arg0: i32, %arg1: i32) -> (i32, i32, i32) {
    %c0_i32 = arith.constant 0 : i32
    %c0_i32_0 = arith.constant 0 : i32
    %c0_i32_1 = arith.constant 0 : i32
    return %arg0, %c0_i32, %c0_i32_0 : i32, i32, i32
  }
  func.func @transform_2(%arg0: i32, %arg1: i32) -> (i32, i32, i32) {
    %c0_i32 = arith.constant 0 : i32
    %c0_i32_0 = arith.constant 0 : i32
    %c0_i32_1 = arith.constant 0 : i32
    return %arg0, %c0_i32, %c0_i32_0 : i32, i32, i32
  }
  func.func @transform_3(%arg0: i32, %arg1: i32) -> (i32, i32, i32) {
    %c0_i32 = arith.constant 0 : i32
    %c0_i32_0 = arith.constant 0 : i32
    %c0_i32_1 = arith.constant 0 : i32
    return %arg0, %c0_i32, %c0_i32_0 : i32, i32, i32
  }
  func.func @transform_4(%arg0: i32, %arg1: i32) -> (i32, i32, i32) {
    %c0_i32 = arith.constant 0 : i32
    %c0_i32_0 = arith.constant 0 : i32
    %c0_i32_1 = arith.constant 0 : i32
    return %arg0, %c0_i32, %c0_i32_0 : i32, i32, i32
  }
  func.func @transform_5(%arg0: i32, %arg1: i32) -> (i32, i32, i32) {
    %c0_i32 = arith.constant 0 : i32
    %c0_i32_0 = arith.constant 0 : i32
    return %arg0, %arg1, %c0_i32 : i32, i32, i32
  }
}

module attributes {stable_mosaic.version = 11 : i64} {
  func.func @kernel(%arg0: i32, %arg1: i32, %arg2: memref<1x16x8x8xbf16, #tpu.memory_space<vmem>>, %arg3: memref<1x8x128xbf16, #tpu.memory_space<vmem>>, %arg4: memref<1x1x128xf32, #tpu.memory_space<vmem>>, %arg5: memref<1x128x128xbf16, #tpu.memory_space<vmem>>, %arg6: memref<1x1x128xf32, #tpu.memory_space<vmem>>, %arg7: memref<1x8x128xf32, #tpu.memory_space<vmem>>) attributes {dimension_semantics = [#tpu.dimension_semantics<parallel>, #tpu.dimension_semantics<parallel>], iteration_bounds = array<i64: 1, 4>, scalar_prefetch = 0 : i64, scratch_operands = 0 : i64, tpu.core_type = #tpu.core_type<tc>, window_params = [{transform_indices = @transform_0, window_bounds = array<i64: 1, 16, 8, 8>}, {transform_indices = @transform_1, window_bounds = array<i64: 1, 8, 128>}, {transform_indices = @transform_2, window_bounds = array<i64: 1, 1, 128>}, {transform_indices = @transform_3, window_bounds = array<i64: 1, 128, 128>}, {transform_indices = @transform_4, window_bounds = array<i64: 1, 1, 128>}, {transform_indices = @transform_5, window_bounds = array<i64: 1, 8, 128>}]} {
    %c0 = arith.constant 0 : index
    %c0_0 = arith.constant 0 : index
    %c0_1 = arith.constant 0 : index
    %c0_2 = arith.constant 0 : index
    %0 = vector.load %arg2[%c0, %c0_0, %c0_1, %c0_2] : memref<1x16x8x8xbf16, #tpu.memory_space<vmem>>, vector<1x1x8x8xbf16>
    %1 = vector.shape_cast %0 : vector<1x1x8x8xbf16> to vector<8x8xbf16>
    %c0_3 = arith.constant 0 : index
    %c0_4 = arith.constant 0 : index
    %c0_5 = arith.constant 0 : index
    %2 = vector.load %arg3[%c0_3, %c0_4, %c0_5] : memref<1x8x128xbf16, #tpu.memory_space<vmem>>, vector<1x8x128xbf16>
    %3 = vector.shape_cast %2 : vector<1x8x128xbf16> to vector<8x128xbf16>
    %c0_6 = arith.constant 0 : index
    %c0_7 = arith.constant 0 : index
    %c0_8 = arith.constant 0 : index
    %4 = vector.load %arg4[%c0_6, %c0_7, %c0_8] : memref<1x1x128xf32, #tpu.memory_space<vmem>>, vector<1x1x128xf32>
    %5 = vector.shape_cast %4 : vector<1x1x128xf32> to vector<1x128xf32>
    %cst = arith.constant dense<0.000000e+00> : vector<8x128xf32>
    %6 = tpu.matmul %1, %3, %cst {dimension_numbers = #tpu.dot_dimension_numbers<[1], [0], [0], [1], [0, 0, 1, 1], [], []>} : vector<8x8xbf16>, vector<8x128xbf16>, vector<8x128xf32> -> vector<8x128xf32>
    %7 = vector.broadcast %5 : vector<1x128xf32> to vector<8x128xf32>
    %8 = arith.addf %6, %7 : vector<8x128xf32>
    %cst_9 = arith.constant 0.000000e+00 : f32
    %9 = vector.broadcast %cst_9 : f32 to vector<8x128xf32>
    %10 = arith.maximumf %8, %9 : vector<8x128xf32>
    %11 = arith.truncf %10 : vector<8x128xf32> to vector<8x128xbf16>
    %c0_10 = arith.constant 0 : index
    %c0_11 = arith.constant 0 : index
    %c0_12 = arith.constant 0 : index
    %12 = vector.load %arg5[%c0_10, %c0_11, %c0_12] : memref<1x128x128xbf16, #tpu.memory_space<vmem>>, vector<1x128x128xbf16>
    %13 = vector.shape_cast %12 : vector<1x128x128xbf16> to vector<128x128xbf16>
    %cst_13 = arith.constant dense<0.000000e+00> : vector<8x128xf32>
    %14 = tpu.matmul %11, %13, %cst_13 {dimension_numbers = #tpu.dot_dimension_numbers<[1], [0], [0], [1], [0, 0, 1, 1], [], []>} : vector<8x128xbf16>, vector<128x128xbf16>, vector<8x128xf32> -> vector<8x128xf32>
    %c0_14 = arith.constant 0 : index
    %c1 = arith.constant 1 : index
    %c0_15 = arith.constant 0 : index
    %c0_16 = arith.constant 0 : index
    %15 = vector.load %arg2[%c0_14, %c1, %c0_15, %c0_16] : memref<1x16x8x8xbf16, #tpu.memory_space<vmem>>, vector<1x1x8x8xbf16>
    %16 = vector.shape_cast %15 : vector<1x1x8x8xbf16> to vector<8x8xbf16>
    %c0_17 = arith.constant 0 : index
    %c0_18 = arith.constant 0 : index
    %c0_19 = arith.constant 0 : index
    %17 = vector.load %arg3[%c0_17, %c0_18, %c0_19] : memref<1x8x128xbf16, #tpu.memory_space<vmem>>, vector<1x8x128xbf16>
    %18 = vector.shape_cast %17 : vector<1x8x128xbf16> to vector<8x128xbf16>
    %c0_20 = arith.constant 0 : index
    %c0_21 = arith.constant 0 : index
    %c0_22 = arith.constant 0 : index
    %19 = vector.load %arg4[%c0_20, %c0_21, %c0_22] : memref<1x1x128xf32, #tpu.memory_space<vmem>>, vector<1x1x128xf32>
    %20 = vector.shape_cast %19 : vector<1x1x128xf32> to vector<1x128xf32>
    %cst_23 = arith.constant dense<0.000000e+00> : vector<8x128xf32>
    %21 = tpu.matmul %16, %18, %cst_23 {dimension_numbers = #tpu.dot_dimension_numbers<[1], [0], [0], [1], [0, 0, 1, 1], [], []>} : vector<8x8xbf16>, vector<8x128xbf16>, vector<8x128xf32> -> vector<8x128xf32>
    %22 = vector.broadcast %20 : vector<1x128xf32> to vector<8x128xf32>
    %23 = arith.addf %21, %22 : vector<8x128xf32>
    %cst_24 = arith.constant 0.000000e+00 : f32
    %24 = vector.broadcast %cst_24 : f32 to vector<8x128xf32>
    %25 = arith.maximumf %23, %24 : vector<8x128xf32>
    %26 = arith.truncf %25 : vector<8x128xf32> to vector<8x128xbf16>
    %c0_25 = arith.constant 0 : index
    %c0_26 = arith.constant 0 : index
    %c0_27 = arith.constant 0 : index
    %27 = vector.load %arg5[%c0_25, %c0_26, %c0_27] : memref<1x128x128xbf16, #tpu.memory_space<vmem>>, vector<1x128x128xbf16>
    %28 = vector.shape_cast %27 : vector<1x128x128xbf16> to vector<128x128xbf16>
    %cst_28 = arith.constant dense<0.000000e+00> : vector<8x128xf32>
    %29 = tpu.matmul %26, %28, %cst_28 {dimension_numbers = #tpu.dot_dimension_numbers<[1], [0], [0], [1], [0, 0, 1, 1], [], []>} : vector<8x128xbf16>, vector<128x128xbf16>, vector<8x128xf32> -> vector<8x128xf32>
    %30 = arith.maximumf %14, %29 : vector<8x128xf32>
    %c0_29 = arith.constant 0 : index
    %c2 = arith.constant 2 : index
    %c0_30 = arith.constant 0 : index
    %c0_31 = arith.constant 0 : index
    %31 = vector.load %arg2[%c0_29, %c2, %c0_30, %c0_31] : memref<1x16x8x8xbf16, #tpu.memory_space<vmem>>, vector<1x1x8x8xbf16>
    %32 = vector.shape_cast %31 : vector<1x1x8x8xbf16> to vector<8x8xbf16>
    %c0_32 = arith.constant 0 : index
    %c0_33 = arith.constant 0 : index
    %c0_34 = arith.constant 0 : index
    %33 = vector.load %arg3[%c0_32, %c0_33, %c0_34] : memref<1x8x128xbf16, #tpu.memory_space<vmem>>, vector<1x8x128xbf16>
    %34 = vector.shape_cast %33 : vector<1x8x128xbf16> to vector<8x128xbf16>
    %c0_35 = arith.constant 0 : index
    %c0_36 = arith.constant 0 : index
    %c0_37 = arith.constant 0 : index
    %35 = vector.load %arg4[%c0_35, %c0_36, %c0_37] : memref<1x1x128xf32, #tpu.memory_space<vmem>>, vector<1x1x128xf32>
    %36 = vector.shape_cast %35 : vector<1x1x128xf32> to vector<1x128xf32>
    %cst_38 = arith.constant dense<0.000000e+00> : vector<8x128xf32>
    %37 = tpu.matmul %32, %34, %cst_38 {dimension_numbers = #tpu.dot_dimension_numbers<[1], [0], [0], [1], [0, 0, 1, 1], [], []>} : vector<8x8xbf16>, vector<8x128xbf16>, vector<8x128xf32> -> vector<8x128xf32>
    %38 = vector.broadcast %36 : vector<1x128xf32> to vector<8x128xf32>
    %39 = arith.addf %37, %38 : vector<8x128xf32>
    %cst_39 = arith.constant 0.000000e+00 : f32
    %40 = vector.broadcast %cst_39 : f32 to vector<8x128xf32>
    %41 = arith.maximumf %39, %40 : vector<8x128xf32>
    %42 = arith.truncf %41 : vector<8x128xf32> to vector<8x128xbf16>
    %c0_40 = arith.constant 0 : index
    %c0_41 = arith.constant 0 : index
    %c0_42 = arith.constant 0 : index
    %43 = vector.load %arg5[%c0_40, %c0_41, %c0_42] : memref<1x128x128xbf16, #tpu.memory_space<vmem>>, vector<1x128x128xbf16>
    %44 = vector.shape_cast %43 : vector<1x128x128xbf16> to vector<128x128xbf16>
    %cst_43 = arith.constant dense<0.000000e+00> : vector<8x128xf32>
    %45 = tpu.matmul %42, %44, %cst_43 {dimension_numbers = #tpu.dot_dimension_numbers<[1], [0], [0], [1], [0, 0, 1, 1], [], []>} : vector<8x128xbf16>, vector<128x128xbf16>, vector<8x128xf32> -> vector<8x128xf32>
    %46 = arith.maximumf %30, %45 : vector<8x128xf32>
    %c0_44 = arith.constant 0 : index
    %c3 = arith.constant 3 : index
    %c0_45 = arith.constant 0 : index
    %c0_46 = arith.constant 0 : index
    %47 = vector.load %arg2[%c0_44, %c3, %c0_45, %c0_46] : memref<1x16x8x8xbf16, #tpu.memory_space<vmem>>, vector<1x1x8x8xbf16>
    %48 = vector.shape_cast %47 : vector<1x1x8x8xbf16> to vector<8x8xbf16>
    %c0_47 = arith.constant 0 : index
    %c0_48 = arith.constant 0 : index
    %c0_49 = arith.constant 0 : index
    %49 = vector.load %arg3[%c0_47, %c0_48, %c0_49] : memref<1x8x128xbf16, #tpu.memory_space<vmem>>, vector<1x8x128xbf16>
    %50 = vector.shape_cast %49 : vector<1x8x128xbf16> to vector<8x128xbf16>
    %c0_50 = arith.constant 0 : index
    %c0_51 = arith.constant 0 : index
    %c0_52 = arith.constant 0 : index
    %51 = vector.load %arg4[%c0_50, %c0_51, %c0_52] : memref<1x1x128xf32, #tpu.memory_space<vmem>>, vector<1x1x128xf32>
    %52 = vector.shape_cast %51 : vector<1x1x128xf32> to vector<1x128xf32>
    %cst_53 = arith.constant dense<0.000000e+00> : vector<8x128xf32>
    %53 = tpu.matmul %48, %50, %cst_53 {dimension_numbers = #tpu.dot_dimension_numbers<[1], [0], [0], [1], [0, 0, 1, 1], [], []>} : vector<8x8xbf16>, vector<8x128xbf16>, vector<8x128xf32> -> vector<8x128xf32>
    %54 = vector.broadcast %52 : vector<1x128xf32> to vector<8x128xf32>
    %55 = arith.addf %53, %54 : vector<8x128xf32>
    %cst_54 = arith.constant 0.000000e+00 : f32
    %56 = vector.broadcast %cst_54 : f32 to vector<8x128xf32>
    %57 = arith.maximumf %55, %56 : vector<8x128xf32>
    %58 = arith.truncf %57 : vector<8x128xf32> to vector<8x128xbf16>
    %c0_55 = arith.constant 0 : index
    %c0_56 = arith.constant 0 : index
    %c0_57 = arith.constant 0 : index
    %59 = vector.load %arg5[%c0_55, %c0_56, %c0_57] : memref<1x128x128xbf16, #tpu.memory_space<vmem>>, vector<1x128x128xbf16>
    %60 = vector.shape_cast %59 : vector<1x128x128xbf16> to vector<128x128xbf16>
    %cst_58 = arith.constant dense<0.000000e+00> : vector<8x128xf32>
    %61 = tpu.matmul %58, %60, %cst_58 {dimension_numbers = #tpu.dot_dimension_numbers<[1], [0], [0], [1], [0, 0, 1, 1], [], []>} : vector<8x128xbf16>, vector<128x128xbf16>, vector<8x128xf32> -> vector<8x128xf32>
    %62 = arith.maximumf %46, %61 : vector<8x128xf32>
    %c0_59 = arith.constant 0 : index
    %c4 = arith.constant 4 : index
    %c0_60 = arith.constant 0 : index
    %c0_61 = arith.constant 0 : index
    %63 = vector.load %arg2[%c0_59, %c4, %c0_60, %c0_61] : memref<1x16x8x8xbf16, #tpu.memory_space<vmem>>, vector<1x1x8x8xbf16>
    %64 = vector.shape_cast %63 : vector<1x1x8x8xbf16> to vector<8x8xbf16>
    %c0_62 = arith.constant 0 : index
    %c0_63 = arith.constant 0 : index
    %c0_64 = arith.constant 0 : index
    %65 = vector.load %arg3[%c0_62, %c0_63, %c0_64] : memref<1x8x128xbf16, #tpu.memory_space<vmem>>, vector<1x8x128xbf16>
    %66 = vector.shape_cast %65 : vector<1x8x128xbf16> to vector<8x128xbf16>
    %c0_65 = arith.constant 0 : index
    %c0_66 = arith.constant 0 : index
    %c0_67 = arith.constant 0 : index
    %67 = vector.load %arg4[%c0_65, %c0_66, %c0_67] : memref<1x1x128xf32, #tpu.memory_space<vmem>>, vector<1x1x128xf32>
    %68 = vector.shape_cast %67 : vector<1x1x128xf32> to vector<1x128xf32>
    %cst_68 = arith.constant dense<0.000000e+00> : vector<8x128xf32>
    %69 = tpu.matmul %64, %66, %cst_68 {dimension_numbers = #tpu.dot_dimension_numbers<[1], [0], [0], [1], [0, 0, 1, 1], [], []>} : vector<8x8xbf16>, vector<8x128xbf16>, vector<8x128xf32> -> vector<8x128xf32>
    %70 = vector.broadcast %68 : vector<1x128xf32> to vector<8x128xf32>
    %71 = arith.addf %69, %70 : vector<8x128xf32>
    %cst_69 = arith.constant 0.000000e+00 : f32
    %72 = vector.broadcast %cst_69 : f32 to vector<8x128xf32>
    %73 = arith.maximumf %71, %72 : vector<8x128xf32>
    %74 = arith.truncf %73 : vector<8x128xf32> to vector<8x128xbf16>
    %c0_70 = arith.constant 0 : index
    %c0_71 = arith.constant 0 : index
    %c0_72 = arith.constant 0 : index
    %75 = vector.load %arg5[%c0_70, %c0_71, %c0_72] : memref<1x128x128xbf16, #tpu.memory_space<vmem>>, vector<1x128x128xbf16>
    %76 = vector.shape_cast %75 : vector<1x128x128xbf16> to vector<128x128xbf16>
    %cst_73 = arith.constant dense<0.000000e+00> : vector<8x128xf32>
    %77 = tpu.matmul %74, %76, %cst_73 {dimension_numbers = #tpu.dot_dimension_numbers<[1], [0], [0], [1], [0, 0, 1, 1], [], []>} : vector<8x128xbf16>, vector<128x128xbf16>, vector<8x128xf32> -> vector<8x128xf32>
    %78 = arith.maximumf %62, %77 : vector<8x128xf32>
    %c0_74 = arith.constant 0 : index
    %c5 = arith.constant 5 : index
    %c0_75 = arith.constant 0 : index
    %c0_76 = arith.constant 0 : index
    %79 = vector.load %arg2[%c0_74, %c5, %c0_75, %c0_76] : memref<1x16x8x8xbf16, #tpu.memory_space<vmem>>, vector<1x1x8x8xbf16>
    %80 = vector.shape_cast %79 : vector<1x1x8x8xbf16> to vector<8x8xbf16>
    %c0_77 = arith.constant 0 : index
    %c0_78 = arith.constant 0 : index
    %c0_79 = arith.constant 0 : index
    %81 = vector.load %arg3[%c0_77, %c0_78, %c0_79] : memref<1x8x128xbf16, #tpu.memory_space<vmem>>, vector<1x8x128xbf16>
    %82 = vector.shape_cast %81 : vector<1x8x128xbf16> to vector<8x128xbf16>
    %c0_80 = arith.constant 0 : index
    %c0_81 = arith.constant 0 : index
    %c0_82 = arith.constant 0 : index
    %83 = vector.load %arg4[%c0_80, %c0_81, %c0_82] : memref<1x1x128xf32, #tpu.memory_space<vmem>>, vector<1x1x128xf32>
    %84 = vector.shape_cast %83 : vector<1x1x128xf32> to vector<1x128xf32>
    %cst_83 = arith.constant dense<0.000000e+00> : vector<8x128xf32>
    %85 = tpu.matmul %80, %82, %cst_83 {dimension_numbers = #tpu.dot_dimension_numbers<[1], [0], [0], [1], [0, 0, 1, 1], [], []>} : vector<8x8xbf16>, vector<8x128xbf16>, vector<8x128xf32> -> vector<8x128xf32>
    %86 = vector.broadcast %84 : vector<1x128xf32> to vector<8x128xf32>
    %87 = arith.addf %85, %86 : vector<8x128xf32>
    %cst_84 = arith.constant 0.000000e+00 : f32
    %88 = vector.broadcast %cst_84 : f32 to vector<8x128xf32>
    %89 = arith.maximumf %87, %88 : vector<8x128xf32>
    %90 = arith.truncf %89 : vector<8x128xf32> to vector<8x128xbf16>
    %c0_85 = arith.constant 0 : index
    %c0_86 = arith.constant 0 : index
    %c0_87 = arith.constant 0 : index
    %91 = vector.load %arg5[%c0_85, %c0_86, %c0_87] : memref<1x128x128xbf16, #tpu.memory_space<vmem>>, vector<1x128x128xbf16>
    %92 = vector.shape_cast %91 : vector<1x128x128xbf16> to vector<128x128xbf16>
    %cst_88 = arith.constant dense<0.000000e+00> : vector<8x128xf32>
    %93 = tpu.matmul %90, %92, %cst_88 {dimension_numbers = #tpu.dot_dimension_numbers<[1], [0], [0], [1], [0, 0, 1, 1], [], []>} : vector<8x128xbf16>, vector<128x128xbf16>, vector<8x128xf32> -> vector<8x128xf32>
    %94 = arith.maximumf %78, %93 : vector<8x128xf32>
    %c0_89 = arith.constant 0 : index
    %c6 = arith.constant 6 : index
    %c0_90 = arith.constant 0 : index
    %c0_91 = arith.constant 0 : index
    %95 = vector.load %arg2[%c0_89, %c6, %c0_90, %c0_91] : memref<1x16x8x8xbf16, #tpu.memory_space<vmem>>, vector<1x1x8x8xbf16>
    %96 = vector.shape_cast %95 : vector<1x1x8x8xbf16> to vector<8x8xbf16>
    %c0_92 = arith.constant 0 : index
    %c0_93 = arith.constant 0 : index
    %c0_94 = arith.constant 0 : index
    %97 = vector.load %arg3[%c0_92, %c0_93, %c0_94] : memref<1x8x128xbf16, #tpu.memory_space<vmem>>, vector<1x8x128xbf16>
    %98 = vector.shape_cast %97 : vector<1x8x128xbf16> to vector<8x128xbf16>
    %c0_95 = arith.constant 0 : index
    %c0_96 = arith.constant 0 : index
    %c0_97 = arith.constant 0 : index
    %99 = vector.load %arg4[%c0_95, %c0_96, %c0_97] : memref<1x1x128xf32, #tpu.memory_space<vmem>>, vector<1x1x128xf32>
    %100 = vector.shape_cast %99 : vector<1x1x128xf32> to vector<1x128xf32>
    %cst_98 = arith.constant dense<0.000000e+00> : vector<8x128xf32>
    %101 = tpu.matmul %96, %98, %cst_98 {dimension_numbers = #tpu.dot_dimension_numbers<[1], [0], [0], [1], [0, 0, 1, 1], [], []>} : vector<8x8xbf16>, vector<8x128xbf16>, vector<8x128xf32> -> vector<8x128xf32>
    %102 = vector.broadcast %100 : vector<1x128xf32> to vector<8x128xf32>
    %103 = arith.addf %101, %102 : vector<8x128xf32>
    %cst_99 = arith.constant 0.000000e+00 : f32
    %104 = vector.broadcast %cst_99 : f32 to vector<8x128xf32>
    %105 = arith.maximumf %103, %104 : vector<8x128xf32>
    %106 = arith.truncf %105 : vector<8x128xf32> to vector<8x128xbf16>
    %c0_100 = arith.constant 0 : index
    %c0_101 = arith.constant 0 : index
    %c0_102 = arith.constant 0 : index
    %107 = vector.load %arg5[%c0_100, %c0_101, %c0_102] : memref<1x128x128xbf16, #tpu.memory_space<vmem>>, vector<1x128x128xbf16>
    %108 = vector.shape_cast %107 : vector<1x128x128xbf16> to vector<128x128xbf16>
    %cst_103 = arith.constant dense<0.000000e+00> : vector<8x128xf32>
    %109 = tpu.matmul %106, %108, %cst_103 {dimension_numbers = #tpu.dot_dimension_numbers<[1], [0], [0], [1], [0, 0, 1, 1], [], []>} : vector<8x128xbf16>, vector<128x128xbf16>, vector<8x128xf32> -> vector<8x128xf32>
    %110 = arith.maximumf %94, %109 : vector<8x128xf32>
    %c0_104 = arith.constant 0 : index
    %c7 = arith.constant 7 : index
    %c0_105 = arith.constant 0 : index
    %c0_106 = arith.constant 0 : index
    %111 = vector.load %arg2[%c0_104, %c7, %c0_105, %c0_106] : memref<1x16x8x8xbf16, #tpu.memory_space<vmem>>, vector<1x1x8x8xbf16>
    %112 = vector.shape_cast %111 : vector<1x1x8x8xbf16> to vector<8x8xbf16>
    %c0_107 = arith.constant 0 : index
    %c0_108 = arith.constant 0 : index
    %c0_109 = arith.constant 0 : index
    %113 = vector.load %arg3[%c0_107, %c0_108, %c0_109] : memref<1x8x128xbf16, #tpu.memory_space<vmem>>, vector<1x8x128xbf16>
    %114 = vector.shape_cast %113 : vector<1x8x128xbf16> to vector<8x128xbf16>
    %c0_110 = arith.constant 0 : index
    %c0_111 = arith.constant 0 : index
    %c0_112 = arith.constant 0 : index
    %115 = vector.load %arg4[%c0_110, %c0_111, %c0_112] : memref<1x1x128xf32, #tpu.memory_space<vmem>>, vector<1x1x128xf32>
    %116 = vector.shape_cast %115 : vector<1x1x128xf32> to vector<1x128xf32>
    %cst_113 = arith.constant dense<0.000000e+00> : vector<8x128xf32>
    %117 = tpu.matmul %112, %114, %cst_113 {dimension_numbers = #tpu.dot_dimension_numbers<[1], [0], [0], [1], [0, 0, 1, 1], [], []>} : vector<8x8xbf16>, vector<8x128xbf16>, vector<8x128xf32> -> vector<8x128xf32>
    %118 = vector.broadcast %116 : vector<1x128xf32> to vector<8x128xf32>
    %119 = arith.addf %117, %118 : vector<8x128xf32>
    %cst_114 = arith.constant 0.000000e+00 : f32
    %120 = vector.broadcast %cst_114 : f32 to vector<8x128xf32>
    %121 = arith.maximumf %119, %120 : vector<8x128xf32>
    %122 = arith.truncf %121 : vector<8x128xf32> to vector<8x128xbf16>
    %c0_115 = arith.constant 0 : index
    %c0_116 = arith.constant 0 : index
    %c0_117 = arith.constant 0 : index
    %123 = vector.load %arg5[%c0_115, %c0_116, %c0_117] : memref<1x128x128xbf16, #tpu.memory_space<vmem>>, vector<1x128x128xbf16>
    %124 = vector.shape_cast %123 : vector<1x128x128xbf16> to vector<128x128xbf16>
    %cst_118 = arith.constant dense<0.000000e+00> : vector<8x128xf32>
    %125 = tpu.matmul %122, %124, %cst_118 {dimension_numbers = #tpu.dot_dimension_numbers<[1], [0], [0], [1], [0, 0, 1, 1], [], []>} : vector<8x128xbf16>, vector<128x128xbf16>, vector<8x128xf32> -> vector<8x128xf32>
    %126 = arith.maximumf %110, %125 : vector<8x128xf32>
    %c0_119 = arith.constant 0 : index
    %c8 = arith.constant 8 : index
    %c0_120 = arith.constant 0 : index
    %c0_121 = arith.constant 0 : index
    %127 = vector.load %arg2[%c0_119, %c8, %c0_120, %c0_121] : memref<1x16x8x8xbf16, #tpu.memory_space<vmem>>, vector<1x1x8x8xbf16>
    %128 = vector.shape_cast %127 : vector<1x1x8x8xbf16> to vector<8x8xbf16>
    %c0_122 = arith.constant 0 : index
    %c0_123 = arith.constant 0 : index
    %c0_124 = arith.constant 0 : index
    %129 = vector.load %arg3[%c0_122, %c0_123, %c0_124] : memref<1x8x128xbf16, #tpu.memory_space<vmem>>, vector<1x8x128xbf16>
    %130 = vector.shape_cast %129 : vector<1x8x128xbf16> to vector<8x128xbf16>
    %c0_125 = arith.constant 0 : index
    %c0_126 = arith.constant 0 : index
    %c0_127 = arith.constant 0 : index
    %131 = vector.load %arg4[%c0_125, %c0_126, %c0_127] : memref<1x1x128xf32, #tpu.memory_space<vmem>>, vector<1x1x128xf32>
    %132 = vector.shape_cast %131 : vector<1x1x128xf32> to vector<1x128xf32>
    %cst_128 = arith.constant dense<0.000000e+00> : vector<8x128xf32>
    %133 = tpu.matmul %128, %130, %cst_128 {dimension_numbers = #tpu.dot_dimension_numbers<[1], [0], [0], [1], [0, 0, 1, 1], [], []>} : vector<8x8xbf16>, vector<8x128xbf16>, vector<8x128xf32> -> vector<8x128xf32>
    %134 = vector.broadcast %132 : vector<1x128xf32> to vector<8x128xf32>
    %135 = arith.addf %133, %134 : vector<8x128xf32>
    %cst_129 = arith.constant 0.000000e+00 : f32
    %136 = vector.broadcast %cst_129 : f32 to vector<8x128xf32>
    %137 = arith.maximumf %135, %136 : vector<8x128xf32>
    %138 = arith.truncf %137 : vector<8x128xf32> to vector<8x128xbf16>
    %c0_130 = arith.constant 0 : index
    %c0_131 = arith.constant 0 : index
    %c0_132 = arith.constant 0 : index
    %139 = vector.load %arg5[%c0_130, %c0_131, %c0_132] : memref<1x128x128xbf16, #tpu.memory_space<vmem>>, vector<1x128x128xbf16>
    %140 = vector.shape_cast %139 : vector<1x128x128xbf16> to vector<128x128xbf16>
    %cst_133 = arith.constant dense<0.000000e+00> : vector<8x128xf32>
    %141 = tpu.matmul %138, %140, %cst_133 {dimension_numbers = #tpu.dot_dimension_numbers<[1], [0], [0], [1], [0, 0, 1, 1], [], []>} : vector<8x128xbf16>, vector<128x128xbf16>, vector<8x128xf32> -> vector<8x128xf32>
    %142 = arith.maximumf %126, %141 : vector<8x128xf32>
    %c0_134 = arith.constant 0 : index
    %c9 = arith.constant 9 : index
    %c0_135 = arith.constant 0 : index
    %c0_136 = arith.constant 0 : index
    %143 = vector.load %arg2[%c0_134, %c9, %c0_135, %c0_136] : memref<1x16x8x8xbf16, #tpu.memory_space<vmem>>, vector<1x1x8x8xbf16>
    %144 = vector.shape_cast %143 : vector<1x1x8x8xbf16> to vector<8x8xbf16>
    %c0_137 = arith.constant 0 : index
    %c0_138 = arith.constant 0 : index
    %c0_139 = arith.constant 0 : index
    %145 = vector.load %arg3[%c0_137, %c0_138, %c0_139] : memref<1x8x128xbf16, #tpu.memory_space<vmem>>, vector<1x8x128xbf16>
    %146 = vector.shape_cast %145 : vector<1x8x128xbf16> to vector<8x128xbf16>
    %c0_140 = arith.constant 0 : index
    %c0_141 = arith.constant 0 : index
    %c0_142 = arith.constant 0 : index
    %147 = vector.load %arg4[%c0_140, %c0_141, %c0_142] : memref<1x1x128xf32, #tpu.memory_space<vmem>>, vector<1x1x128xf32>
    %148 = vector.shape_cast %147 : vector<1x1x128xf32> to vector<1x128xf32>
    %cst_143 = arith.constant dense<0.000000e+00> : vector<8x128xf32>
    %149 = tpu.matmul %144, %146, %cst_143 {dimension_numbers = #tpu.dot_dimension_numbers<[1], [0], [0], [1], [0, 0, 1, 1], [], []>} : vector<8x8xbf16>, vector<8x128xbf16>, vector<8x128xf32> -> vector<8x128xf32>
    %150 = vector.broadcast %148 : vector<1x128xf32> to vector<8x128xf32>
    %151 = arith.addf %149, %150 : vector<8x128xf32>
    %cst_144 = arith.constant 0.000000e+00 : f32
    %152 = vector.broadcast %cst_144 : f32 to vector<8x128xf32>
    %153 = arith.maximumf %151, %152 : vector<8x128xf32>
    %154 = arith.truncf %153 : vector<8x128xf32> to vector<8x128xbf16>
    %c0_145 = arith.constant 0 : index
    %c0_146 = arith.constant 0 : index
    %c0_147 = arith.constant 0 : index
    %155 = vector.load %arg5[%c0_145, %c0_146, %c0_147] : memref<1x128x128xbf16, #tpu.memory_space<vmem>>, vector<1x128x128xbf16>
    %156 = vector.shape_cast %155 : vector<1x128x128xbf16> to vector<128x128xbf16>
    %cst_148 = arith.constant dense<0.000000e+00> : vector<8x128xf32>
    %157 = tpu.matmul %154, %156, %cst_148 {dimension_numbers = #tpu.dot_dimension_numbers<[1], [0], [0], [1], [0, 0, 1, 1], [], []>} : vector<8x128xbf16>, vector<128x128xbf16>, vector<8x128xf32> -> vector<8x128xf32>
    %158 = arith.maximumf %142, %157 : vector<8x128xf32>
    %c0_149 = arith.constant 0 : index
    %c10 = arith.constant 10 : index
    %c0_150 = arith.constant 0 : index
    %c0_151 = arith.constant 0 : index
    %159 = vector.load %arg2[%c0_149, %c10, %c0_150, %c0_151] : memref<1x16x8x8xbf16, #tpu.memory_space<vmem>>, vector<1x1x8x8xbf16>
    %160 = vector.shape_cast %159 : vector<1x1x8x8xbf16> to vector<8x8xbf16>
    %c0_152 = arith.constant 0 : index
    %c0_153 = arith.constant 0 : index
    %c0_154 = arith.constant 0 : index
    %161 = vector.load %arg3[%c0_152, %c0_153, %c0_154] : memref<1x8x128xbf16, #tpu.memory_space<vmem>>, vector<1x8x128xbf16>
    %162 = vector.shape_cast %161 : vector<1x8x128xbf16> to vector<8x128xbf16>
    %c0_155 = arith.constant 0 : index
    %c0_156 = arith.constant 0 : index
    %c0_157 = arith.constant 0 : index
    %163 = vector.load %arg4[%c0_155, %c0_156, %c0_157] : memref<1x1x128xf32, #tpu.memory_space<vmem>>, vector<1x1x128xf32>
    %164 = vector.shape_cast %163 : vector<1x1x128xf32> to vector<1x128xf32>
    %cst_158 = arith.constant dense<0.000000e+00> : vector<8x128xf32>
    %165 = tpu.matmul %160, %162, %cst_158 {dimension_numbers = #tpu.dot_dimension_numbers<[1], [0], [0], [1], [0, 0, 1, 1], [], []>} : vector<8x8xbf16>, vector<8x128xbf16>, vector<8x128xf32> -> vector<8x128xf32>
    %166 = vector.broadcast %164 : vector<1x128xf32> to vector<8x128xf32>
    %167 = arith.addf %165, %166 : vector<8x128xf32>
    %cst_159 = arith.constant 0.000000e+00 : f32
    %168 = vector.broadcast %cst_159 : f32 to vector<8x128xf32>
    %169 = arith.maximumf %167, %168 : vector<8x128xf32>
    %170 = arith.truncf %169 : vector<8x128xf32> to vector<8x128xbf16>
    %c0_160 = arith.constant 0 : index
    %c0_161 = arith.constant 0 : index
    %c0_162 = arith.constant 0 : index
    %171 = vector.load %arg5[%c0_160, %c0_161, %c0_162] : memref<1x128x128xbf16, #tpu.memory_space<vmem>>, vector<1x128x128xbf16>
    %172 = vector.shape_cast %171 : vector<1x128x128xbf16> to vector<128x128xbf16>
    %cst_163 = arith.constant dense<0.000000e+00> : vector<8x128xf32>
    %173 = tpu.matmul %170, %172, %cst_163 {dimension_numbers = #tpu.dot_dimension_numbers<[1], [0], [0], [1], [0, 0, 1, 1], [], []>} : vector<8x128xbf16>, vector<128x128xbf16>, vector<8x128xf32> -> vector<8x128xf32>
    %174 = arith.maximumf %158, %173 : vector<8x128xf32>
    %c0_164 = arith.constant 0 : index
    %c11 = arith.constant 11 : index
    %c0_165 = arith.constant 0 : index
    %c0_166 = arith.constant 0 : index
    %175 = vector.load %arg2[%c0_164, %c11, %c0_165, %c0_166] : memref<1x16x8x8xbf16, #tpu.memory_space<vmem>>, vector<1x1x8x8xbf16>
    %176 = vector.shape_cast %175 : vector<1x1x8x8xbf16> to vector<8x8xbf16>
    %c0_167 = arith.constant 0 : index
    %c0_168 = arith.constant 0 : index
    %c0_169 = arith.constant 0 : index
    %177 = vector.load %arg3[%c0_167, %c0_168, %c0_169] : memref<1x8x128xbf16, #tpu.memory_space<vmem>>, vector<1x8x128xbf16>
    %178 = vector.shape_cast %177 : vector<1x8x128xbf16> to vector<8x128xbf16>
    %c0_170 = arith.constant 0 : index
    %c0_171 = arith.constant 0 : index
    %c0_172 = arith.constant 0 : index
    %179 = vector.load %arg4[%c0_170, %c0_171, %c0_172] : memref<1x1x128xf32, #tpu.memory_space<vmem>>, vector<1x1x128xf32>
    %180 = vector.shape_cast %179 : vector<1x1x128xf32> to vector<1x128xf32>
    %cst_173 = arith.constant dense<0.000000e+00> : vector<8x128xf32>
    %181 = tpu.matmul %176, %178, %cst_173 {dimension_numbers = #tpu.dot_dimension_numbers<[1], [0], [0], [1], [0, 0, 1, 1], [], []>} : vector<8x8xbf16>, vector<8x128xbf16>, vector<8x128xf32> -> vector<8x128xf32>
    %182 = vector.broadcast %180 : vector<1x128xf32> to vector<8x128xf32>
    %183 = arith.addf %181, %182 : vector<8x128xf32>
    %cst_174 = arith.constant 0.000000e+00 : f32
    %184 = vector.broadcast %cst_174 : f32 to vector<8x128xf32>
    %185 = arith.maximumf %183, %184 : vector<8x128xf32>
    %186 = arith.truncf %185 : vector<8x128xf32> to vector<8x128xbf16>
    %c0_175 = arith.constant 0 : index
    %c0_176 = arith.constant 0 : index
    %c0_177 = arith.constant 0 : index
    %187 = vector.load %arg5[%c0_175, %c0_176, %c0_177] : memref<1x128x128xbf16, #tpu.memory_space<vmem>>, vector<1x128x128xbf16>
    %188 = vector.shape_cast %187 : vector<1x128x128xbf16> to vector<128x128xbf16>
    %cst_178 = arith.constant dense<0.000000e+00> : vector<8x128xf32>
    %189 = tpu.matmul %186, %188, %cst_178 {dimension_numbers = #tpu.dot_dimension_numbers<[1], [0], [0], [1], [0, 0, 1, 1], [], []>} : vector<8x128xbf16>, vector<128x128xbf16>, vector<8x128xf32> -> vector<8x128xf32>
    %190 = arith.maximumf %174, %189 : vector<8x128xf32>
    %c0_179 = arith.constant 0 : index
    %c12 = arith.constant 12 : index
    %c0_180 = arith.constant 0 : index
    %c0_181 = arith.constant 0 : index
    %191 = vector.load %arg2[%c0_179, %c12, %c0_180, %c0_181] : memref<1x16x8x8xbf16, #tpu.memory_space<vmem>>, vector<1x1x8x8xbf16>
    %192 = vector.shape_cast %191 : vector<1x1x8x8xbf16> to vector<8x8xbf16>
    %c0_182 = arith.constant 0 : index
    %c0_183 = arith.constant 0 : index
    %c0_184 = arith.constant 0 : index
    %193 = vector.load %arg3[%c0_182, %c0_183, %c0_184] : memref<1x8x128xbf16, #tpu.memory_space<vmem>>, vector<1x8x128xbf16>
    %194 = vector.shape_cast %193 : vector<1x8x128xbf16> to vector<8x128xbf16>
    %c0_185 = arith.constant 0 : index
    %c0_186 = arith.constant 0 : index
    %c0_187 = arith.constant 0 : index
    %195 = vector.load %arg4[%c0_185, %c0_186, %c0_187] : memref<1x1x128xf32, #tpu.memory_space<vmem>>, vector<1x1x128xf32>
    %196 = vector.shape_cast %195 : vector<1x1x128xf32> to vector<1x128xf32>
    %cst_188 = arith.constant dense<0.000000e+00> : vector<8x128xf32>
    %197 = tpu.matmul %192, %194, %cst_188 {dimension_numbers = #tpu.dot_dimension_numbers<[1], [0], [0], [1], [0, 0, 1, 1], [], []>} : vector<8x8xbf16>, vector<8x128xbf16>, vector<8x128xf32> -> vector<8x128xf32>
    %198 = vector.broadcast %196 : vector<1x128xf32> to vector<8x128xf32>
    %199 = arith.addf %197, %198 : vector<8x128xf32>
    %cst_189 = arith.constant 0.000000e+00 : f32
    %200 = vector.broadcast %cst_189 : f32 to vector<8x128xf32>
    %201 = arith.maximumf %199, %200 : vector<8x128xf32>
    %202 = arith.truncf %201 : vector<8x128xf32> to vector<8x128xbf16>
    %c0_190 = arith.constant 0 : index
    %c0_191 = arith.constant 0 : index
    %c0_192 = arith.constant 0 : index
    %203 = vector.load %arg5[%c0_190, %c0_191, %c0_192] : memref<1x128x128xbf16, #tpu.memory_space<vmem>>, vector<1x128x128xbf16>
    %204 = vector.shape_cast %203 : vector<1x128x128xbf16> to vector<128x128xbf16>
    %cst_193 = arith.constant dense<0.000000e+00> : vector<8x128xf32>
    %205 = tpu.matmul %202, %204, %cst_193 {dimension_numbers = #tpu.dot_dimension_numbers<[1], [0], [0], [1], [0, 0, 1, 1], [], []>} : vector<8x128xbf16>, vector<128x128xbf16>, vector<8x128xf32> -> vector<8x128xf32>
    %206 = arith.maximumf %190, %205 : vector<8x128xf32>
    %c0_194 = arith.constant 0 : index
    %c13 = arith.constant 13 : index
    %c0_195 = arith.constant 0 : index
    %c0_196 = arith.constant 0 : index
    %207 = vector.load %arg2[%c0_194, %c13, %c0_195, %c0_196] : memref<1x16x8x8xbf16, #tpu.memory_space<vmem>>, vector<1x1x8x8xbf16>
    %208 = vector.shape_cast %207 : vector<1x1x8x8xbf16> to vector<8x8xbf16>
    %c0_197 = arith.constant 0 : index
    %c0_198 = arith.constant 0 : index
    %c0_199 = arith.constant 0 : index
    %209 = vector.load %arg3[%c0_197, %c0_198, %c0_199] : memref<1x8x128xbf16, #tpu.memory_space<vmem>>, vector<1x8x128xbf16>
    %210 = vector.shape_cast %209 : vector<1x8x128xbf16> to vector<8x128xbf16>
    %c0_200 = arith.constant 0 : index
    %c0_201 = arith.constant 0 : index
    %c0_202 = arith.constant 0 : index
    %211 = vector.load %arg4[%c0_200, %c0_201, %c0_202] : memref<1x1x128xf32, #tpu.memory_space<vmem>>, vector<1x1x128xf32>
    %212 = vector.shape_cast %211 : vector<1x1x128xf32> to vector<1x128xf32>
    %cst_203 = arith.constant dense<0.000000e+00> : vector<8x128xf32>
    %213 = tpu.matmul %208, %210, %cst_203 {dimension_numbers = #tpu.dot_dimension_numbers<[1], [0], [0], [1], [0, 0, 1, 1], [], []>} : vector<8x8xbf16>, vector<8x128xbf16>, vector<8x128xf32> -> vector<8x128xf32>
    %214 = vector.broadcast %212 : vector<1x128xf32> to vector<8x128xf32>
    %215 = arith.addf %213, %214 : vector<8x128xf32>
    %cst_204 = arith.constant 0.000000e+00 : f32
    %216 = vector.broadcast %cst_204 : f32 to vector<8x128xf32>
    %217 = arith.maximumf %215, %216 : vector<8x128xf32>
    %218 = arith.truncf %217 : vector<8x128xf32> to vector<8x128xbf16>
    %c0_205 = arith.constant 0 : index
    %c0_206 = arith.constant 0 : index
    %c0_207 = arith.constant 0 : index
    %219 = vector.load %arg5[%c0_205, %c0_206, %c0_207] : memref<1x128x128xbf16, #tpu.memory_space<vmem>>, vector<1x128x128xbf16>
    %220 = vector.shape_cast %219 : vector<1x128x128xbf16> to vector<128x128xbf16>
    %cst_208 = arith.constant dense<0.000000e+00> : vector<8x128xf32>
    %221 = tpu.matmul %218, %220, %cst_208 {dimension_numbers = #tpu.dot_dimension_numbers<[1], [0], [0], [1], [0, 0, 1, 1], [], []>} : vector<8x128xbf16>, vector<128x128xbf16>, vector<8x128xf32> -> vector<8x128xf32>
    %222 = arith.maximumf %206, %221 : vector<8x128xf32>
    %c0_209 = arith.constant 0 : index
    %c14 = arith.constant 14 : index
    %c0_210 = arith.constant 0 : index
    %c0_211 = arith.constant 0 : index
    %223 = vector.load %arg2[%c0_209, %c14, %c0_210, %c0_211] : memref<1x16x8x8xbf16, #tpu.memory_space<vmem>>, vector<1x1x8x8xbf16>
    %224 = vector.shape_cast %223 : vector<1x1x8x8xbf16> to vector<8x8xbf16>
    %c0_212 = arith.constant 0 : index
    %c0_213 = arith.constant 0 : index
    %c0_214 = arith.constant 0 : index
    %225 = vector.load %arg3[%c0_212, %c0_213, %c0_214] : memref<1x8x128xbf16, #tpu.memory_space<vmem>>, vector<1x8x128xbf16>
    %226 = vector.shape_cast %225 : vector<1x8x128xbf16> to vector<8x128xbf16>
    %c0_215 = arith.constant 0 : index
    %c0_216 = arith.constant 0 : index
    %c0_217 = arith.constant 0 : index
    %227 = vector.load %arg4[%c0_215, %c0_216, %c0_217] : memref<1x1x128xf32, #tpu.memory_space<vmem>>, vector<1x1x128xf32>
    %228 = vector.shape_cast %227 : vector<1x1x128xf32> to vector<1x128xf32>
    %cst_218 = arith.constant dense<0.000000e+00> : vector<8x128xf32>
    %229 = tpu.matmul %224, %226, %cst_218 {dimension_numbers = #tpu.dot_dimension_numbers<[1], [0], [0], [1], [0, 0, 1, 1], [], []>} : vector<8x8xbf16>, vector<8x128xbf16>, vector<8x128xf32> -> vector<8x128xf32>
    %230 = vector.broadcast %228 : vector<1x128xf32> to vector<8x128xf32>
    %231 = arith.addf %229, %230 : vector<8x128xf32>
    %cst_219 = arith.constant 0.000000e+00 : f32
    %232 = vector.broadcast %cst_219 : f32 to vector<8x128xf32>
    %233 = arith.maximumf %231, %232 : vector<8x128xf32>
    %234 = arith.truncf %233 : vector<8x128xf32> to vector<8x128xbf16>
    %c0_220 = arith.constant 0 : index
    %c0_221 = arith.constant 0 : index
    %c0_222 = arith.constant 0 : index
    %235 = vector.load %arg5[%c0_220, %c0_221, %c0_222] : memref<1x128x128xbf16, #tpu.memory_space<vmem>>, vector<1x128x128xbf16>
    %236 = vector.shape_cast %235 : vector<1x128x128xbf16> to vector<128x128xbf16>
    %cst_223 = arith.constant dense<0.000000e+00> : vector<8x128xf32>
    %237 = tpu.matmul %234, %236, %cst_223 {dimension_numbers = #tpu.dot_dimension_numbers<[1], [0], [0], [1], [0, 0, 1, 1], [], []>} : vector<8x128xbf16>, vector<128x128xbf16>, vector<8x128xf32> -> vector<8x128xf32>
    %238 = arith.maximumf %222, %237 : vector<8x128xf32>
    %c0_224 = arith.constant 0 : index
    %c15 = arith.constant 15 : index
    %c0_225 = arith.constant 0 : index
    %c0_226 = arith.constant 0 : index
    %239 = vector.load %arg2[%c0_224, %c15, %c0_225, %c0_226] : memref<1x16x8x8xbf16, #tpu.memory_space<vmem>>, vector<1x1x8x8xbf16>
    %240 = vector.shape_cast %239 : vector<1x1x8x8xbf16> to vector<8x8xbf16>
    %c0_227 = arith.constant 0 : index
    %c0_228 = arith.constant 0 : index
    %c0_229 = arith.constant 0 : index
    %241 = vector.load %arg3[%c0_227, %c0_228, %c0_229] : memref<1x8x128xbf16, #tpu.memory_space<vmem>>, vector<1x8x128xbf16>
    %242 = vector.shape_cast %241 : vector<1x8x128xbf16> to vector<8x128xbf16>
    %c0_230 = arith.constant 0 : index
    %c0_231 = arith.constant 0 : index
    %c0_232 = arith.constant 0 : index
    %243 = vector.load %arg4[%c0_230, %c0_231, %c0_232] : memref<1x1x128xf32, #tpu.memory_space<vmem>>, vector<1x1x128xf32>
    %244 = vector.shape_cast %243 : vector<1x1x128xf32> to vector<1x128xf32>
    %cst_233 = arith.constant dense<0.000000e+00> : vector<8x128xf32>
    %245 = tpu.matmul %240, %242, %cst_233 {dimension_numbers = #tpu.dot_dimension_numbers<[1], [0], [0], [1], [0, 0, 1, 1], [], []>} : vector<8x8xbf16>, vector<8x128xbf16>, vector<8x128xf32> -> vector<8x128xf32>
    %246 = vector.broadcast %244 : vector<1x128xf32> to vector<8x128xf32>
    %247 = arith.addf %245, %246 : vector<8x128xf32>
    %cst_234 = arith.constant 0.000000e+00 : f32
    %248 = vector.broadcast %cst_234 : f32 to vector<8x128xf32>
    %249 = arith.maximumf %247, %248 : vector<8x128xf32>
    %250 = arith.truncf %249 : vector<8x128xf32> to vector<8x128xbf16>
    %c0_235 = arith.constant 0 : index
    %c0_236 = arith.constant 0 : index
    %c0_237 = arith.constant 0 : index
    %251 = vector.load %arg5[%c0_235, %c0_236, %c0_237] : memref<1x128x128xbf16, #tpu.memory_space<vmem>>, vector<1x128x128xbf16>
    %252 = vector.shape_cast %251 : vector<1x128x128xbf16> to vector<128x128xbf16>
    %cst_238 = arith.constant dense<0.000000e+00> : vector<8x128xf32>
    %253 = tpu.matmul %250, %252, %cst_238 {dimension_numbers = #tpu.dot_dimension_numbers<[1], [0], [0], [1], [0, 0, 1, 1], [], []>} : vector<8x128xbf16>, vector<128x128xbf16>, vector<8x128xf32> -> vector<8x128xf32>
    %254 = arith.maximumf %238, %253 : vector<8x128xf32>
    %c0_239 = arith.constant 0 : index
    %c0_240 = arith.constant 0 : index
    %c0_241 = arith.constant 0 : index
    %255 = vector.load %arg6[%c0_239, %c0_240, %c0_241] : memref<1x1x128xf32, #tpu.memory_space<vmem>>, vector<1x1x128xf32>
    %256 = vector.shape_cast %255 : vector<1x1x128xf32> to vector<1x128xf32>
    %257 = vector.broadcast %256 : vector<1x128xf32> to vector<8x128xf32>
    %258 = arith.addf %254, %257 : vector<8x128xf32>
    %cst_242 = arith.constant 0.000000e+00 : f32
    %259 = vector.broadcast %cst_242 : f32 to vector<8x128xf32>
    %260 = arith.maximumf %258, %259 : vector<8x128xf32>
    %c0_243 = arith.constant 0 : index
    %c0_244 = arith.constant 0 : index
    %c0_245 = arith.constant 0 : index
    %261 = vector.load %arg7[%c0_243, %c0_244, %c0_245] : memref<1x8x128xf32, #tpu.memory_space<vmem>>, vector<1x8x128xf32>
    %262 = vector.shape_cast %261 : vector<1x8x128xf32> to vector<8x128xf32>
    %263 = vector.shape_cast %260 : vector<8x128xf32> to vector<1x8x128xf32>
    tpu.vector_store %arg7[%c0_243, %c0_244, %c0_245], %263 {strides = array<i32>} : memref<1x8x128xf32, #tpu.memory_space<vmem>>, vector<1x8x128xf32>,
    return
  }
  func.func @transform_0(%arg0: i32, %arg1: i32) -> (i32, i32, i32, i32) {
    %c0_i32 = arith.constant 0 : i32
    %c0_i32_0 = arith.constant 0 : i32
    %c0_i32_1 = arith.constant 0 : i32
    return %arg0, %c0_i32, %arg1, %c0_i32_0 : i32, i32, i32, i32
  }
  func.func @transform_1(%arg0: i32, %arg1: i32) -> (i32, i32, i32) {
    %c0_i32 = arith.constant 0 : i32
    %c0_i32_0 = arith.constant 0 : i32
    %c0_i32_1 = arith.constant 0 : i32
    return %arg0, %c0_i32, %c0_i32_0 : i32, i32, i32
  }
  func.func @transform_2(%arg0: i32, %arg1: i32) -> (i32, i32, i32) {
    %c0_i32 = arith.constant 0 : i32
    %c0_i32_0 = arith.constant 0 : i32
    %c0_i32_1 = arith.constant 0 : i32
    return %arg0, %c0_i32, %c0_i32_0 : i32, i32, i32
  }
  func.func @transform_3(%arg0: i32, %arg1: i32) -> (i32, i32, i32) {
    %c0_i32 = arith.constant 0 : i32
    %c0_i32_0 = arith.constant 0 : i32
    %c0_i32_1 = arith.constant 0 : i32
    return %arg0, %c0_i32, %c0_i32_0 : i32, i32, i32
  }
  func.func @transform_4(%arg0: i32, %arg1: i32) -> (i32, i32, i32) {
    %c0_i32 = arith.constant 0 : i32
    %c0_i32_0 = arith.constant 0 : i32
    %c0_i32_1 = arith.constant 0 : i32
    return %arg0, %c0_i32, %c0_i32_0 : i32, i32, i32
  }
  func.func @transform_5(%arg0: i32, %arg1: i32) -> (i32, i32, i32) {
    %c0_i32 = arith.constant 0 : i32
    %c0_i32_0 = arith.constant 0 : i32
    return %arg0, %arg1, %c0_i32 : i32, i32, i32
  }
}

</mosaic_0001>

<llo_original>
// kernel: custom-call.12
$region0: #{custom-call.12}
  %s0 = inlined_call_operand.vmem [shape: f32[2,64], index: 0, kind: output, shape index: {}]

// kernel: a_call__.2
$region0: #{a_call__.2}
  #allocation0 [shape = 'u32[]', space=smem, size = 0x4, offset = 0x4, fixed_abs, tag = 'smem constant byte address 0x4 - core index']
  #allocation1 [shape = 'u32[144,128]{1,0:T(1,128)}', space=vmem, size = 0x12000, scoped, tag = 'internal scratch']
  %s0 = inlined_call_operand.vmem [shape: bf16[1,8,32,8], index: 0, kind: input, shape index: {}]
  %s1 = inlined_call_operand.vmem [shape: bf16[1,8,128], index: 1, kind: input, shape index: {}]
  %s2 = inlined_call_operand.vmem [shape: f32[1,1,128], index: 2, kind: input, shape index: {}]
  %s3 = inlined_call_operand.vmem [shape: bf16[1,128,128], index: 3, kind: input, shape index: {}]
  %s4 = inlined_call_operand.vmem [shape: f32[1,1,128], index: 4, kind: input, shape index: {}]
  %s5 = inlined_call_operand.vmem [shape: f32[1,32,128], index: 5, kind: output, shape index: {}]
  %s6 = sld [smem:[#allocation0]]
  $region94: #{a_call__.2} parent=0
    _
  %s8 = ssub.s32 1, %s6
  %s9 = scalar_select 0, %s8, %s6
  $region1: #{a_call__.2} parent=0
    #allocation2 [shape = 'u8[32768]{0}', space=vmem, size = 0x8000, scoped, tag = 'input window, operand 0']
    loop: start=0, step=1, limit=6
    $region2: #{a_call__.2} parent=1 // loop_pre_header
      _
    $region3: #{a_call__.2} parent=1 // loop_header
      %s11 = sphi 0, %s15
      %p12 = scmp.ge.s32.totalorder %s11, 6
      %s18 = sphi 0, %s30
      %s19 = sphi 0, %s26
      %s20 = sphi 0, %s18
      %s21 = sphi 0, %s19
      %s22 = sphi 0, %s20
      %s23 = sphi 0, %s21
      %s35 = sphi 0, %s37
      %s38 = sphi 0, %s35
      %s39 = sphi 0, %s38
      %s55 = sphi 0, %s39
      %s61 = sphi 0, %s63
      %s64 = sphi 0, %s61
      %s65 = sphi 0, %s64
      %s81 = sphi 0, %s65
      %s87 = sphi 0, %s89
      %s90 = sphi 0, %s87
      %s91 = sphi 0, %s90
      %s107 = sphi 0, %s91
      %s113 = sphi 0, %s115
      %s116 = sphi 0, %s113
      %s117 = sphi 0, %s116
      %s133 = sphi 0, %s117
      %s139 = sphi 0, %s141
      %s142 = sphi 0, %s139
      %s143 = sphi 0, %s142
      %s159 = sphi 0, %s143
      %s167 = sphi 0, %s169
      %s170 = sphi 0, %s167
      %s171 = sphi 0, %s170
      %s187 = sphi 0, %s171
    $region4: #{a_call__.2} parent=1 // loop_header_branch
      %14 = sbr.rel (%p12) target = $region8
    $region5: #{a_call__.2} parent=1 // loop_body
      %s16 = ssub.s32 %s11, 1
      %s17 = ssub.s32 %s11, 2
      %s24 = sadd.s32 1, %s19
      %p25 = scmp.ge.s32.totalorder %s24, 4
      %s26 = scalar_select %p25, 0, %s24
      %s27 = sadd.s32 1, %s18
      %s28 = scalar_select %p25, %s27, %s18
      %p29 = scmp.ge.s32.totalorder %s28, 1
      %s30 = scalar_select %p29, 0, %s28
      %s31 = ssub.s32 %s18, %s30
      %s32 = ssub.s32 %s19, %s26
      %s33 = sor.u32 %s31, %s32
      %p34 = scmp.eq.s32.totalorder %s33, 0
      %s36 = sadd.s32 %s35, 1
      %s37 = scalar_select %p34, %s35, %s36
      %p40 = pneg %p34
      %p41 = scmp.eq.s32.totalorder %s11, 3
      %p42 = por %p40, %p41
      %p43 = scmp.ne.s32.totalorder %s35, %s38
      %p44 = scmp.eq.s32.totalorder %s11, 0
      %p45 = por %p43, %p44
      %p46 = scmp.ne.s32.totalorder %s35, %s38
      %p47 = scmp.eq.s32.totalorder %s16, 3
      %p48 = por %p46, %p47
      %p49 = scmp.ne.s32.totalorder %s38, %s39
      %p50 = scmp.eq.s32.totalorder %s16, 0
      %p51 = por %p49, %p50
      %p52 = scmp.ne.s32.totalorder %s38, %s39
      %p53 = scmp.eq.s32.totalorder %s17, 3
      %p54 = por %p52, %p53
      %p56 = scmp.ne.s32.totalorder %s39, %s55
      %p57 = scmp.eq.s32.totalorder %s17, 0
      %p58 = por %p56, %p57
      %s59 = ssub.s32 %s18, %s30
      %p60 = scmp.eq.s32.totalorder %s59, 0
      %s62 = sadd.s32 %s61, 1
      %s63 = scalar_select %p60, %s61, %s62
      %p66 = pneg %p60
      %p67 = scmp.eq.s32.totalorder %s11, 3
      %p68 = por %p66, %p67
      %p69 = scmp.ne.s32.totalorder %s61, %s64
      %p70 = scmp.eq.s32.totalorder %s11, 0
      %p71 = por %p69, %p70
      %p72 = scmp.ne.s32.totalorder %s61, %s64
      %p73 = scmp.eq.s32.totalorder %s16, 3
      %p74 = por %p72, %p73
      %p75 = scmp.ne.s32.totalorder %s64, %s65
      %p76 = scmp.eq.s32.totalorder %s16, 0
      %p77 = por %p75, %p76
      %p78 = scmp.ne.s32.totalorder %s64, %s65
      %p79 = scmp.eq.s32.totalorder %s17, 3
      %p80 = por %p78, %p79
      %p82 = scmp.ne.s32.totalorder %s65, %s81
      %p83 = scmp.eq.s32.totalorder %s17, 0
      %p84 = por %p82, %p83
      %s85 = ssub.s32 %s18, %s30
      %p86 = scmp.eq.s32.totalorder %s85, 0
      %s88 = sadd.s32 %s87, 1
      %s89 = scalar_select %p86, %s87, %s88
      %p92 = pneg %p86
      %p93 = scmp.eq.s32.totalorder %s11, 3
      %p94 = por %p92, %p93
      %p95 = scmp.ne.s32.totalorder %s87, %s90
      %p96 = scmp.eq.s32.totalorder %s11, 0
      %p97 = por %p95, %p96
      %p98 = scmp.ne.s32.totalorder %s87, %s90
      %p99 = scmp.eq.s32.totalorder %s16, 3
      %p100 = por %p98, %p99
      %p101 = scmp.ne.s32.totalorder %s90, %s91
      %p102 = scmp.eq.s32.totalorder %s16, 0
      %p103 = por %p101, %p102
      %p104 = scmp.ne.s32.totalorder %s90, %s91
      %p105 = scmp.eq.s32.totalorder %s17, 3
      %p106 = por %p104, %p105
      %p108 = scmp.ne.s32.totalorder %s91, %s107
      %p109 = scmp.eq.s32.totalorder %s17, 0
      %p110 = por %p108, %p109
      %s111 = ssub.s32 %s18, %s30
      %p112 = scmp.eq.s32.totalorder %s111, 0
      %s114 = sadd.s32 %s113, 1
      %s115 = scalar_select %p112, %s113, %s114
      %p118 = pneg %p112
      %p119 = scmp.eq.s32.totalorder %s11, 3
      %p120 = por %p118, %p119
      %p121 = scmp.ne.s32.totalorder %s113, %s116
      %p122 = scmp.eq.s32.totalorder %s11, 0
      %p123 = por %p121, %p122
      %p124 = scmp.ne.s32.totalorder %s113, %s116
      %p125 = scmp.eq.s32.totalorder %s16, 3
      %p126 = por %p124, %p125
      %p127 = scmp.ne.s32.totalorder %s116, %s117
      %p128 = scmp.eq.s32.totalorder %s16, 0
      %p129 = por %p127, %p128
      %p130 = scmp.ne.s32.totalorder %s116, %s117
      %p131 = scmp.eq.s32.totalorder %s17, 3
      %p132 = por %p130, %p131
      %p134 = scmp.ne.s32.totalorder %s117, %s133
      %p135 = scmp.eq.s32.totalorder %s17, 0
      %p136 = por %p134, %p135
      %s137 = ssub.s32 %s18, %s30
      %p138 = scmp.eq.s32.totalorder %s137, 0
      %s140 = sadd.s32 %s139, 1
      %s141 = scalar_select %p138, %s139, %s140
      %p144 = pneg %p138
      %p145 = scmp.eq.s32.totalorder %s11, 3
      %p146 = por %p144, %p145
      %p147 = scmp.ne.s32.totalorder %s139, %s142
      %p148 = scmp.eq.s32.totalorder %s11, 0
      %p149 = por %p147, %p148
      %p150 = scmp.ne.s32.totalorder %s139, %s142
      %p151 = scmp.eq.s32.totalorder %s16, 3
      %p152 = por %p150, %p151
      %p153 = scmp.ne.s32.totalorder %s142, %s143
      %p154 = scmp.eq.s32.totalorder %s16, 0
      %p155 = por %p153, %p154
      %p156 = scmp.ne.s32.totalorder %s142, %s143
      %p157 = scmp.eq.s32.totalorder %s17, 3
      %p158 = por %p156, %p157
      %p160 = scmp.ne.s32.totalorder %s143, %s159
      %p161 = scmp.eq.s32.totalorder %s17, 0
      %p162 = por %p160, %p161
      %s163 = ssub.s32 %s18, %s30
      %s164 = ssub.s32 %s19, %s26
      %s165 = sor.u32 %s163, %s164
      %p166 = scmp.eq.s32.totalorder %s165, 0
      %s168 = sadd.s32 %s167, 1
      %s169 = scalar_select %p166, %s167, %s168
      %p172 = pneg %p166
      %p173 = scmp.eq.s32.totalorder %s11, 3
      %p174 = por %p172, %p173
      %p175 = scmp.ne.s32.totalorder %s167, %s170
      %p176 = scmp.eq.s32.totalorder %s11, 0
      %p177 = por %p175, %p176
      %p178 = scmp.ne.s32.totalorder %s167, %s170
      %p179 = scmp.eq.s32.totalorder %s16, 3
      %p180 = por %p178, %p179
      %p181 = scmp.ne.s32.totalorder %s170, %s171
      %p182 = scmp.eq.s32.totalorder %s16, 0
      %p183 = por %p181, %p182
      %p184 = scmp.ne.s32.totalorder %s170, %s171
      %p185 = scmp.eq.s32.totalorder %s17, 3
      %p186 = por %p184, %p185
      %p188 = scmp.ne.s32.totalorder %s171, %s187
      %p189 = scmp.eq.s32.totalorder %s17, 0
      %p190 = por %p188, %p189
      %p191 = scmp.le.s32.totalorder 1, %s11
      %p192 = scmp.lt.s32.totalorder %s11, 5
      %p193 = pnand %p191, %p192
      %p194 = pneg %p193
      // Predicated region
      $region9: #{a_call__.2} parent=5 // pred_check
        _
      $region10: #{a_call__.2} parent=5 // pred_check_branch
        %196 = sbr.rel (%p193) target = $region12
      $region11: #{a_call__.2} parent=5 // pred_region
        %s197 = ssub.s32 %s11, 1
        // Predicated region
        $region13: #{a_call__.2} parent=11 // pred_check
          %p198 = pneg %p77
        $region14: #{a_call__.2} parent=11 // pred_check_branch
          %200 = sbr.rel (%p198) target = $region16
        $region15: #{a_call__.2} parent=11 // pred_region
          %p201 = scmp.lt.s32.totalorder %s20, 0
          %s202 = scalar_select %p201, %s20, 0
          %s203 = smul.addr %s202, 4
          %s204 = scalar_lea.vmem %s1, %s203
        $region16: #{a_call__.2} parent=11 // pred_fallthru
          _
        // Predicated region
        $region17: #{a_call__.2} parent=11 // pred_check
          %p205 = pneg %p103
        $region18: #{a_call__.2} parent=11 // pred_check_branch
          %207 = sbr.rel (%p205) target = $region20
        $region19: #{a_call__.2} parent=11 // pred_region
          %p208 = scmp.lt.s32.totalorder %s20, 0
          %s209 = scalar_select %p208, %s20, 0
          %s210 = scalar_lea.vmem %s2, %s209
        $region20: #{a_call__.2} parent=11 // pred_fallthru
          _
        // Predicated region
        $region21: #{a_call__.2} parent=11 // pred_check
          %p211 = pneg %p129
        $region22: #{a_call__.2} parent=11 // pred_check_branch
          %213 = sbr.rel (%p211) target = $region24
        $region23: #{a_call__.2} parent=11 // pred_region
          %p214 = scmp.lt.s32.totalorder %s20, 0
          %s215 = scalar_select %p214, %s20, 0
          %s216 = smul.addr %s215, 16
          %s217 = smul.addr %s216, 4
          %s218 = scalar_lea.vmem %s3, %s217
        $region24: #{a_call__.2} parent=11 // pred_fallthru
          _
        // Predicated region
        $region25: #{a_call__.2} parent=11 // pred_check
          %p219 = pneg %p155
        $region26: #{a_call__.2} parent=11 // pred_check_branch
          %221 = sbr.rel (%p219) target = $region28
        $region27: #{a_call__.2} parent=11 // pred_region
          %p222 = scmp.lt.s32.totalorder %s20, 0
          %s223 = scalar_select %p222, %s20, 0
          %s224 = scalar_lea.vmem %s4, %s223
        $region28: #{a_call__.2} parent=11 // pred_fallthru
          _
      $region12: #{a_call__.2} parent=5 // pred_fallthru
        _
      %p225 = scmp.lt.s32.totalorder %s11, 4
      // Predicated region
      $region29: #{a_call__.2} parent=5 // pred_check
        %p226 = pneg %p225
      $region30: #{a_call__.2} parent=5 // pred_check_branch
        %228 = sbr.rel (%p226) target = $region32
      $region31: #{a_call__.2} parent=5 // pred_region
        // Predicated region
        $region33: #{a_call__.2} parent=31 // pred_check
          %p229 = pneg %p45
        $region34: #{a_call__.2} parent=31 // pred_check_branch
          %231 = sbr.rel (%p229) target = $region36
        $region35: #{a_call__.2} parent=31 // pred_region
          %s232 = sand.u32 %s35, 1
          %s233 = sand.u32 %s35, 1
          %s234 = smul.addr %s233, 32
          %s235 = scalar_lea.vmem [#allocation2], %s234
          %s236 = smul.addr %s18, 32
          %s237 = sadd.s32 %s19, %s236
          %s238 = smul.addr %s237, 4
          %s239 = scalar_lea.vmem %s0, %s238
          // Predicated region
          $region37: #{a_call__.2} parent=35 // pred_check
            _
          $region38: #{a_call__.2} parent=35 // pred_check_branch
            %241 = sbr.rel (0) target = $region40
          $region39: #{a_call__.2} parent=35 // pred_region
            // Predicated region
            $region41: #{a_call__.2} parent=39 // pred_check
              _
            $region42: #{a_call__.2} parent=39 // pred_check_branch
              %243 = sbr.rel target = $region44
            $region43: #{a_call__.2} parent=39 // pred_region
              // Predicated region
              $region56: #{a_call__.2} parent=43 // pred_check
                _
              $region57: #{a_call__.2} parent=43 // pred_check_branch
                %272 = sbr.rel (0) target = $region59
              $region58: #{a_call__.2} parent=43 // pred_region
                loop: start=0, step=1, limit=1
                $region60: #{a_call__.2} parent=58 // loop_pre_header
                  _
                $region61: #{a_call__.2} parent=58 // loop_header
                  %s274 = sphi 0, %s278
                  %p275 = scmp.ge.s32.totalorder %s274, 1
                  %s279 = sphi %s239, %s239
                  %s280 = sphi %s235, %s235
                $region62: #{a_call__.2} parent=58 // loop_header_branch
                  %277 = sbr.rel (%p275) target = $region66
                $region63: #{a_call__.2} parent=58 // loop_body
                  _
                $region64: #{a_call__.2} parent=58 // loop_footer
                  %s278 = sadd.s32 1, %s274
                $region65: #{a_call__.2} parent=58 // loop_footer_branch
                  %273 = sbr.rel target = $region61
                $region66: #{a_call__.2} parent=58 // loop_exit
                  _
                loop: start=0, step=1, limit=1
                $region67: #{a_call__.2} parent=58 // loop_pre_header
                  _
                $region68: #{a_call__.2} parent=58 // loop_header
                  %s283 = sphi 0, %s287
                  %p284 = scmp.ge.s32.totalorder %s283, 1
                  %s288 = sphi %s239, %s239
                  %s289 = sphi %s235, %s235
                $region69: #{a_call__.2} parent=58 // loop_header_branch
                  %286 = sbr.rel (%p284) target = $region73
                $region70: #{a_call__.2} parent=58 // loop_body
                  %v290 = vld [vmem:[%s288] sm:$0xf]
                  %291 = vst [vmem:[%s289] sm:$0xf] %v290
                  %v292 = vld [vmem:[%s288 + $0x10] sm:$0xf]
                  %293 = vst [vmem:[%s289 + $0x4] sm:$0xf] %v292
                  %v294 = vld [vmem:[%s288 + $0x20] sm:$0xf]
                  %295 = vst [vmem:[%s289 + $0x8] sm:$0xf] %v294
                  %v296 = vld [vmem:[%s288 + $0x30] sm:$0xf]
                  %297 = vst [vmem:[%s289 + $0xc] sm:$0xf] %v296
                  %v298 = vld [vmem:[%s288 + $0x40] sm:$0xf]
                  %299 = vst [vmem:[%s289 + $0x10] sm:$0xf] %v298
                  %v300 = vld [vmem:[%s288 + $0x50] sm:$0xf]
                  %301 = vst [vmem:[%s289 + $0x14] sm:$0xf] %v300
                  %v302 = vld [vmem:[%s288 + $0x60] sm:$0xf]
                  %303 = vst [vmem:[%s289 + $0x18] sm:$0xf] %v302
                  %v304 = vld [vmem:[%s288 + $0x70] sm:$0xf]
                  %305 = vst [vmem:[%s289 + $0x1c] sm:$0xf] %v304
                $region71: #{a_call__.2} parent=58 // loop_footer
                  %s287 = sadd.s32 1, %s283
                $region72: #{a_call__.2} parent=58 // loop_footer_branch
                  %282 = sbr.rel target = $region68
                $region73: #{a_call__.2} parent=58 // loop_exit
                  _
              $region59: #{a_call__.2} parent=43 // pred_fallthru
                _
            $region44: #{a_call__.2} parent=39 // pred_fallthru
              _
            // Predicated region
            $region45: #{a_call__.2} parent=39 // pred_check
              _
            $region46: #{a_call__.2} parent=39 // pred_check_branch
              %245 = sbr.rel (0) target = $region48
            $region47: #{a_call__.2} parent=39 // pred_region
              loop: start=0, step=1, limit=1
              $region49: #{a_call__.2} parent=47 // loop_pre_header
                _
              $region50: #{a_call__.2} parent=47 // loop_header
                %s248 = sphi 0, %s252
                %p249 = scmp.ge.s32.totalorder %s248, 1
                %s253 = sphi %s239, %s239
                %s254 = sphi %s235, %s235
              $region51: #{a_call__.2} parent=47 // loop_header_branch
                %251 = sbr.rel (%p249) target = $region55
              $region52: #{a_call__.2} parent=47 // loop_body
                %v255 = vld [vmem:[%s253] sm:$0xf]
                %256 = vst [vmem:[%s254] sm:$0xf] %v255
                %v257 = vld [vmem:[%s253 + $0x10] sm:$0xf]
                %258 = vst [vmem:[%s254 + $0x4] sm:$0xf] %v257
                %v259 = vld [vmem:[%s253 + $0x20] sm:$0xf]
                %260 = vst [vmem:[%s254 + $0x8] sm:$0xf] %v259
                %v261 = vld [vmem:[%s253 + $0x30] sm:$0xf]
                %262 = vst [vmem:[%s254 + $0xc] sm:$0xf] %v261
                %v263 = vld [vmem:[%s253 + $0x40] sm:$0xf]
                %264 = vst [vmem:[%s254 + $0x10] sm:$0xf] %v263
                %v265 = vld [vmem:[%s253 + $0x50] sm:$0xf]
                %266 = vst [vmem:[%s254 + $0x14] sm:$0xf] %v265
                %v267 = vld [vmem:[%s253 + $0x60] sm:$0xf]
                %268 = vst [vmem:[%s254 + $0x18] sm:$0xf] %v267
                %v269 = vld [vmem:[%s253 + $0x70] sm:$0xf]
                %270 = vst [vmem:[%s254 + $0x1c] sm:$0xf] %v269
              $region53: #{a_call__.2} parent=47 // loop_footer
                %s252 = sadd.s32 1, %s248
              $region54: #{a_call__.2} parent=47 // loop_footer_branch
                %247 = sbr.rel target = $region50
              $region55: #{a_call__.2} parent=47 // loop_exit
                _
            $region48: #{a_call__.2} parent=39 // pred_fallthru
              _
          $region40: #{a_call__.2} parent=35 // pred_fallthru
            _
          %306 = vnop
        $region36: #{a_call__.2} parent=31 // pred_fallthru
          _
      $region32: #{a_call__.2} parent=5 // pred_fallthru
        _
      %p307 = scmp.le.s32.totalorder 1, %s11
      %p308 = scmp.lt.s32.totalorder %s11, 5
      %p309 = pnand %p307, %p308
      %p310 = pneg %p309
      // Predicated region
      $region74: #{a_call__.2} parent=5 // pred_check
        _
      $region75: #{a_call__.2} parent=5 // pred_check_branch
        %312 = sbr.rel (%p309) target = $region77
      $region76: #{a_call__.2} parent=5 // pred_region
        %s313 = ssub.s32 %s11, 1
        %s314 = sand.u32 %s38, 1
        %s315 = sand.u32 %s38, 1
        %s316 = smul.addr %s315, 32
        %s317 = scalar_lea.vmem [#allocation2], %s316
        // Predicated region
        $region78: #{a_call__.2} parent=76 // pred_check
          %p318 = pneg %p51
        $region79: #{a_call__.2} parent=76 // pred_check_branch
          %320 = sbr.rel (%p318) target = $region81
        $region80: #{a_call__.2} parent=76 // pred_region
          _
        $region81: #{a_call__.2} parent=76 // pred_fallthru
          _
        %s321 = sand.u32 %s38, 1
        %s322 = sand.u32 %s38, 1
        %s323 = smul.addr %s322, 32
        %s324 = scalar_lea.vmem [#allocation2], %s323
        %p325 = pneg %p51
        %p326 = pneg %p48
        %p327 = scmp.lt.s32.totalorder %s20, 0
        %s328 = scalar_select %p327, %s20, 0
        %s329 = smul.addr %s328, 4
        %s330 = scalar_lea.vmem %s1, %s329
        %p331 = pneg %p77
        %p332 = pneg %p74
        %p333 = scmp.lt.s32.totalorder %s20, 0
        %s334 = scalar_select %p333, %s20, 0
        %s335 = scalar_lea.vmem %s2, %s334
        %p336 = pneg %p103
        %p337 = pneg %p100
        %p338 = scmp.lt.s32.totalorder %s20, 0
        %s339 = scalar_select %p338, %s20, 0
        %s340 = smul.addr %s339, 16
        %s341 = smul.addr %s340, 4
        %s342 = scalar_lea.vmem %s3, %s341
        %p343 = pneg %p129
        %p344 = pneg %p126
        %p345 = scmp.lt.s32.totalorder %s20, 0
        %s346 = scalar_select %p345, %s20, 0
        %s347 = scalar_lea.vmem %s4, %s346
        %p348 = pneg %p155
        %p349 = pneg %p152
        %p350 = pneg %p183
        %p351 = pneg %p180
        %p352 = scmp.lt.s32.totalorder %s20, 0
        %s353 = scalar_select %p352, %s20, 0
        %p354 = scmp.lt.s32.totalorder %s21, 3
        %s355 = scalar_select %p354, %s21, 3
        %s356 = smul.addr %s353, 4
        %s357 = sadd.s32 %s355, %s356
        %s358 = smul.addr %s357, 8
        %s359 = scalar_lea.vmem %s5, %s358
        %p360 = scmp.lt.s32.totalorder %s20, 0
        %s361 = scalar_select %p360, %s20, 0
        %s362 = smul.addr %s361, 4
        %s363 = scalar_lea.vmem %s1, %s362
        %p364 = scmp.lt.s32.totalorder %s20, 0
        %s365 = scalar_select %p364, %s20, 0
        %s366 = scalar_lea.vmem %s2, %s365
        %p367 = scmp.lt.s32.totalorder %s20, 0
        %s368 = scalar_select %p367, %s20, 0
        %s369 = smul.addr %s368, 16
        %s370 = smul.addr %s369, 4
        %s371 = scalar_lea.vmem %s3, %s370
        %p372 = scmp.lt.s32.totalorder %s20, 0
        %s373 = scalar_select %p372, %s20, 0
        %s374 = scalar_lea.vmem %s4, %s373
        %p375 = scmp.lt.s32.totalorder %s20, 0
        %s376 = scalar_select %p375, %s20, 0
        %p377 = scmp.lt.s32.totalorder %s21, 3
        %s378 = scalar_select %p377, %s21, 3
        %s379 = smul.addr %s376, 4
        %s380 = sadd.s32 %s378, %s379
        %s381 = smul.addr %s380, 8
        %s382 = scalar_lea.vmem %s5, %s381
        %v384 = vld [vmem:[%s317] sm:$0xf]
        %v385 = vld [vmem:[%s363] sm:$0xf]
        %v386 = vld [vmem:[%s366] sm:$0x1]
        %v388 = vlaneseq
        %v389 = vshrl.u32 %v388, 7
        %v390 = vsub.s32 0, %v389
        %v391 = vrot.slane %v386, %v390
        %vm393 = vcmask 64512
        %v395 = vsel %vm393, %v384, 0
        %vm397 = vcmask 1043456
        %v399 = vsel %vm397, %v385, 0
        %401 = vmatprep.subr.bf16.mxu0 0
        %402 = vmatpush1.bf16.msra.mxu0 %v399
        %403 = vmatprep.subr.bf16.mxu0 0
        %404 = vmatpush1.bf16.msra.mxu0 0
        %405 = vmatprep.subr.bf16.mxu0 0
        %406 = vmatpush1.bf16.msra.mxu0 0
        %407 = vmatprep.subr.bf16.mxu0 0
        %408 = vmatpush1.bf16.msra.mxu0 0
        %409 = vmatprep.subr.bf16.mxu0 0
        %410 = vmatpush1.bf16.msra.mxu0 0
        %411 = vmatprep.subr.bf16.mxu0 0
        %412 = vmatpush1.bf16.msra.mxu0 0
        %413 = vmatprep.subr.bf16.mxu0 0
        %414 = vmatpush1.bf16.msra.mxu0 0
        %415 = vmatprep.subr.bf16.mxu0 0
        %416 = vmatpush1.bf16.msra.mxu0 0
        %417 = vmatprep.subr.bf16.mxu0 0
        %418 = vmatpush1.bf16.msra.mxu0 0
        %419 = vmatprep.subr.bf16.mxu0 0
        %420 = vmatpush1.bf16.msra.mxu0 0
        %421 = vmatprep.subr.bf16.mxu0 0
        %422 = vmatpush1.bf16.msra.mxu0 0
        %423 = vmatprep.subr.bf16.mxu0 0
        %424 = vmatpush1.bf16.msra.mxu0 0
        %425 = vmatprep.subr.bf16.mxu0 0
        %426 = vmatpush1.bf16.msra.mxu0 0
        %427 = vmatprep.subr.bf16.mxu0 0
        %428 = vmatpush1.bf16.msra.mxu0 0
        %429 = vmatprep.subr.bf16.mxu0 0
        %430 = vmatpush1.bf16.msra.mxu0 0
        %431 = vmatprep.subr.bf16.mxu0 0
        %432 = vmatpush1.bf16.msra.mxu0 0
        %433 = vmatprep.mubr.bf16.mxu0 0
        %434 = vmatmul.mubr.bf16.gmra.mrb[0].mxu0 %v395
        %v435 = vpop.f32.mrb[0].mxu0
        %v436 = vadd.f32 %v391, %v435
        %v437 = vpop.f32.mrb[0].mxu0
        %v438 = vpop.f32.mrb[0].mxu0
        %v439 = vpop.f32.mrb[0].mxu0
        %440 = vdwg.mxu0
        %v441 = vmax.f32 %v436, 0.0
        %v442 = vpack.c.bf16 %v441, %v441
        %v443 = vld [vmem:[%s371] sm:$0xf]
        %v444 = vld [vmem:[%s371 + $0x4] sm:$0xf]
        %v445 = vld [vmem:[%s371 + $0x8] sm:$0xf]
        %v446 = vld [vmem:[%s371 + $0xc] sm:$0xf]
        %v447 = vld [vmem:[%s371 + $0x10] sm:$0xf]
        %v448 = vld [vmem:[%s371 + $0x14] sm:$0xf]
        %v449 = vld [vmem:[%s371 + $0x18] sm:$0xf]
        %v450 = vld [vmem:[%s371 + $0x1c] sm:$0xf]
        %v451 = vld [vmem:[%s371 + $0x20] sm:$0xf]
        %v452 = vld [vmem:[%s371 + $0x24] sm:$0xf]
        %v453 = vld [vmem:[%s371 + $0x28] sm:$0xf]
        %v454 = vld [vmem:[%s371 + $0x2c] sm:$0xf]
        %v455 = vld [vmem:[%s371 + $0x30] sm:$0xf]
        %v456 = vld [vmem:[%s371 + $0x34] sm:$0xf]
        %v457 = vld [vmem:[%s371 + $0x38] sm:$0xf]
        %v458 = vld [vmem:[%s371 + $0x3c] sm:$0xf]
        %v475 = vunpack.c.l.b16 %v443
        %v476 = vunpack.c.l.b16 %v444
        %v477 = vunpack.c.l.b16 %v445
        %v478 = vunpack.c.l.b16 %v446
        %v479 = vunpack.c.l.b16 %v447
        %v480 = vunpack.c.l.b16 %v448
        %v481 = vunpack.c.l.b16 %v449
        %v482 = vunpack.c.l.b16 %v450
        %v483 = vunpack.c.l.b16 %v451
        %v484 = vunpack.c.l.b16 %v452
        %v485 = vunpack.c.l.b16 %v453
        %v486 = vunpack.c.l.b16 %v454
        %v487 = vunpack.c.l.b16 %v455
        %v488 = vunpack.c.l.b16 %v456
        %v489 = vunpack.c.l.b16 %v457
        %v490 = vunpack.c.l.b16 %v458
        %v491 = vpack.c.b16 %v476, %v475
        %v492 = vpack.c.b16 %v478, %v477
        %v493 = vpack.c.b16 %v480, %v479
        %v494 = vpack.c.b16 %v482, %v481
        %v495 = vpack.c.b16 %v484, %v483
        %v496 = vpack.c.b16 %v486, %v485
        %v497 = vpack.c.b16 %v488, %v487
        %v498 = vpack.c.b16 %v490, %v489
        %507 = vmatprep.subr.bf16.mxu0 0
        %508 = vmatpush1.bf16.msra.mxu0 %v491
        %509 = vmatprep.subr.bf16.mxu0 0
        %510 = vmatpush1.bf16.msra.mxu0 %v492
        %511 = vmatprep.subr.bf16.mxu0 0
        %512 = vmatpush1.bf16.msra.mxu0 %v493
        %513 = vmatprep.subr.bf16.mxu0 0
        %514 = vmatpush1.bf16.msra.mxu0 %v494
        %515 = vmatprep.subr.bf16.mxu0 0
        %516 = vmatpush1.bf16.msra.mxu0 %v495
        %517 = vmatprep.subr.bf16.mxu0 0
        %518 = vmatpush1.bf16.msra.mxu0 %v496
        %519 = vmatprep.subr.bf16.mxu0 0
        %520 = vmatpush1.bf16.msra.mxu0 %v497
        %521 = vmatprep.subr.bf16.mxu0 0
        %522 = vmatpush1.bf16.msra.mxu0 %v498
        %523 = vmatprep.subr.bf16.mxu0 0
        %524 = vmatpush1.bf16.msra.mxu0 0
        %525 = vmatprep.subr.bf16.mxu0 0
        %526 = vmatpush1.bf16.msra.mxu0 0
        %527 = vmatprep.subr.bf16.mxu0 0
        %528 = vmatpush1.bf16.msra.mxu0 0
        %529 = vmatprep.subr.bf16.mxu0 0
        %530 = vmatpush1.bf16.msra.mxu0 0
        %531 = vmatprep.subr.bf16.mxu0 0
        %532 = vmatpush1.bf16.msra.mxu0 0
        %533 = vmatprep.subr.bf16.mxu0 0
        %534 = vmatpush1.bf16.msra.mxu0 0
        %535 = vmatprep.subr.bf16.mxu0 0
        %536 = vmatpush1.bf16.msra.mxu0 0
        %537 = vmatprep.subr.bf16.mxu0 0
        %538 = vmatpush1.bf16.msra.mxu0 0
        %539 = vmatprep.mubr.bf16.mxu0 0
        %540 = vmatmul.mubr.bf16.gmra.mrb[0].mxu0 %v442
        %v541 = vpop.f32.mrb[0].mxu0
        %v542 = vadd.f32 0.0, %v541
        %v543 = vpop.f32.mrb[0].mxu0
        %v544 = vpop.f32.mrb[0].mxu0
        %v545 = vpop.f32.mrb[0].mxu0
        %546 = vdwg.mxu0
        %s547 = scalar_lea.vmem %s317, 4 [#allocation2]
        %v548 = vld [vmem:[%s547] sm:$0xf]
        %v550 = vsel %vm393, %v548, 0
        %552 = vmatprep.subr.bf16.mxu0 0
        %553 = vmatpush1.bf16.msra.mxu0 %v399
        %554 = vmatprep.subr.bf16.mxu0 0
        %555 = vmatpush1.bf16.msra.mxu0 0
        %556 = vmatprep.subr.bf16.mxu0 0
        %557 = vmatpush1.bf16.msra.mxu0 0
        %558 = vmatprep.subr.bf16.mxu0 0
        %559 = vmatpush1.bf16.msra.mxu0 0
        %560 = vmatprep.subr.bf16.mxu0 0
        %561 = vmatpush1.bf16.msra.mxu0 0
        %562 = vmatprep.subr.bf16.mxu0 0
        %563 = vmatpush1.bf16.msra.mxu0 0
        %564 = vmatprep.subr.bf16.mxu0 0
        %565 = vmatpush1.bf16.msra.mxu0 0
        %566 = vmatprep.subr.bf16.mxu0 0
        %567 = vmatpush1.bf16.msra.mxu0 0
        %568 = vmatprep.subr.bf16.mxu0 0
        %569 = vmatpush1.bf16.msra.mxu0 0
        %570 = vmatprep.subr.bf16.mxu0 0
        %571 = vmatpush1.bf16.msra.mxu0 0
        %572 = vmatprep.subr.bf16.mxu0 0
        %573 = vmatpush1.bf16.msra.mxu0 0
        %574 = vmatprep.subr.bf16.mxu0 0
        %575 = vmatpush1.bf16.msra.mxu0 0
        %576 = vmatprep.subr.bf16.mxu0 0
        %577 = vmatpush1.bf16.msra.mxu0 0
        %578 = vmatprep.subr.bf16.mxu0 0
        %579 = vmatpush1.bf16.msra.mxu0 0
        %580 = vmatprep.subr.bf16.mxu0 0
        %581 = vmatpush1.bf16.msra.mxu0 0
        %582 = vmatprep.subr.bf16.mxu0 0
        %583 = vmatpush1.bf16.msra.mxu0 0
        %584 = vmatprep.mubr.bf16.mxu0 0
        %585 = vmatmul.mubr.bf16.gmra.mrb[0].mxu0 %v550
        %v586 = vpop.f32.mrb[0].mxu0
        %v587 = vadd.f32 %v391, %v586
        %v588 = vpop.f32.mrb[0].mxu0
        %v589 = vpop.f32.mrb[0].mxu0
        %v590 = vpop.f32.mrb[0].mxu0
        %591 = vdwg.mxu0
        %v592 = vmax.f32 %v587, 0.0
        %v593 = vpack.c.bf16 %v592, %v592
        %594 = vmatprep.subr.bf16.mxu0 0
        %595 = vmatpush1.bf16.msra.mxu0 %v491
        %596 = vmatprep.subr.bf16.mxu0 0
        %597 = vmatpush1.bf16.msra.mxu0 %v492
        %598 = vmatprep.subr.bf16.mxu0 0
        %599 = vmatpush1.bf16.msra.mxu0 %v493
        %600 = vmatprep.subr.bf16.mxu0 0
        %601 = vmatpush1.bf16.msra.mxu0 %v494
        %602 = vmatprep.subr.bf16.mxu0 0
        %603 = vmatpush1.bf16.msra.mxu0 %v495
        %604 = vmatprep.subr.bf16.mxu0 0
        %605 = vmatpush1.bf16.msra.mxu0 %v496
        %606 = vmatprep.subr.bf16.mxu0 0
        %607 = vmatpush1.bf16.msra.mxu0 %v497
        %608 = vmatprep.subr.bf16.mxu0 0
        %609 = vmatpush1.bf16.msra.mxu0 %v498
        %610 = vmatprep.subr.bf16.mxu0 0
        %611 = vmatpush1.bf16.msra.mxu0 0
        %612 = vmatprep.subr.bf16.mxu0 0
        %613 = vmatpush1.bf16.msra.mxu0 0
        %614 = vmatprep.subr.bf16.mxu0 0
        %615 = vmatpush1.bf16.msra.mxu0 0
        %616 = vmatprep.subr.bf16.mxu0 0
        %617 = vmatpush1.bf16.msra.mxu0 0
        %618 = vmatprep.subr.bf16.mxu0 0
        %619 = vmatpush1.bf16.msra.mxu0 0
        %620 = vmatprep.subr.bf16.mxu0 0
        %621 = vmatpush1.bf16.msra.mxu0 0
        %622 = vmatprep.subr.bf16.mxu0 0
        %623 = vmatpush1.bf16.msra.mxu0 0
        %624 = vmatprep.subr.bf16.mxu0 0
        %625 = vmatpush1.bf16.msra.mxu0 0
        %626 = vmatprep.mubr.bf16.mxu0 0
        %627 = vmatmul.mubr.bf16.gmra.mrb[0].mxu0 %v593
        %v628 = vpop.f32.mrb[0].mxu0
        %v629 = vadd.f32 0.0, %v628
        %v630 = vpop.f32.mrb[0].mxu0
        %v631 = vpop.f32.mrb[0].mxu0
        %v632 = vpop.f32.mrb[0].mxu0
        %633 = vdwg.mxu0
        %v634 = vmax.f32 %v542, %v629
        %s635 = scalar_lea.vmem %s317, 8 [#allocation2]
        %v636 = vld [vmem:[%s635] sm:$0xf]
        %v638 = vsel %vm393, %v636, 0
        %640 = vmatprep.subr.bf16.mxu0 0
        %641 = vmatpush1.bf16.msra.mxu0 %v399
        %642 = vmatprep.subr.bf16.mxu0 0
        %643 = vmatpush1.bf16.msra.mxu0 0
        %644 = vmatprep.subr.bf16.mxu0 0
        %645 = vmatpush1.bf16.msra.mxu0 0
        %646 = vmatprep.subr.bf16.mxu0 0
        %647 = vmatpush1.bf16.msra.mxu0 0
        %648 = vmatprep.subr.bf16.mxu0 0
        %649 = vmatpush1.bf16.msra.mxu0 0
        %650 = vmatprep.subr.bf16.mxu0 0
        %651 = vmatpush1.bf16.msra.mxu0 0
        %652 = vmatprep.subr.bf16.mxu0 0
        %653 = vmatpush1.bf16.msra.mxu0 0
        %654 = vmatprep.subr.bf16.mxu0 0
        %655 = vmatpush1.bf16.msra.mxu0 0
        %656 = vmatprep.subr.bf16.mxu0 0
        %657 = vmatpush1.bf16.msra.mxu0 0
        %658 = vmatprep.subr.bf16.mxu0 0
        %659 = vmatpush1.bf16.msra.mxu0 0
        %660 = vmatprep.subr.bf16.mxu0 0
        %661 = vmatpush1.bf16.msra.mxu0 0
        %662 = vmatprep.subr.bf16.mxu0 0
        %663 = vmatpush1.bf16.msra.mxu0 0
        %664 = vmatprep.subr.bf16.mxu0 0
        %665 = vmatpush1.bf16.msra.mxu0 0
        %666 = vmatprep.subr.bf16.mxu0 0
        %667 = vmatpush1.bf16.msra.mxu0 0
        %668 = vmatprep.subr.bf16.mxu0 0
        %669 = vmatpush1.bf16.msra.mxu0 0
        %670 = vmatprep.subr.bf16.mxu0 0
        %671 = vmatpush1.bf16.msra.mxu0 0
        %672 = vmatprep.mubr.bf16.mxu0 0
        %673 = vmatmul.mubr.bf16.gmra.mrb[0].mxu0 %v638
        %v674 = vpop.f32.mrb[0].mxu0
        %v675 = vadd.f32 %v391, %v674
        %v676 = vpop.f32.mrb[0].mxu0
        %v677 = vpop.f32.mrb[0].mxu0
        %v678 = vpop.f32.mrb[0].mxu0
        %679 = vdwg.mxu0
        %v680 = vmax.f32 %v675, 0.0
        %v681 = vpack.c.bf16 %v680, %v680
        %682 = vmatprep.subr.bf16.mxu0 0
        %683 = vmatpush1.bf16.msra.mxu0 %v491
        %684 = vmatprep.subr.bf16.mxu0 0
        %685 = vmatpush1.bf16.msra.mxu0 %v492
        %686 = vmatprep.subr.bf16.mxu0 0
        %687 = vmatpush1.bf16.msra.mxu0 %v493
        %688 = vmatprep.subr.bf16.mxu0 0
        %689 = vmatpush1.bf16.msra.mxu0 %v494
        %690 = vmatprep.subr.bf16.mxu0 0
        %691 = vmatpush1.bf16.msra.mxu0 %v495
        %692 = vmatprep.subr.bf16.mxu0 0
        %693 = vmatpush1.bf16.msra.mxu0 %v496
        %694 = vmatprep.subr.bf16.mxu0 0
        %695 = vmatpush1.bf16.msra.mxu0 %v497
        %696 = vmatprep.subr.bf16.mxu0 0
        %697 = vmatpush1.bf16.msra.mxu0 %v498
        %698 = vmatprep.subr.bf16.mxu0 0
        %699 = vmatpush1.bf16.msra.mxu0 0
        %700 = vmatprep.subr.bf16.mxu0 0
        %701 = vmatpush1.bf16.msra.mxu0 0
        %702 = vmatprep.subr.bf16.mxu0 0
        %703 = vmatpush1.bf16.msra.mxu0 0
        %704 = vmatprep.subr.bf16.mxu0 0
        %705 = vmatpush1.bf16.msra.mxu0 0
        %706 = vmatprep.subr.bf16.mxu0 0
        %707 = vmatpush1.bf16.msra.mxu0 0
        %708 = vmatprep.subr.bf16.mxu0 0
        %709 = vmatpush1.bf16.msra.mxu0 0
        %710 = vmatprep.subr.bf16.mxu0 0
        %711 = vmatpush1.bf16.msra.mxu0 0
        %712 = vmatprep.subr.bf16.mxu0 0
        %713 = vmatpush1.bf16.msra.mxu0 0
        %714 = vmatprep.mubr.bf16.mxu0 0
        %715 = vmatmul.mubr.bf16.gmra.mrb[0].mxu0 %v681
        %v716 = vpop.f32.mrb[0].mxu0
        %v717 = vadd.f32 0.0, %v716
        %v718 = vpop.f32.mrb[0].mxu0
        %v719 = vpop.f32.mrb[0].mxu0
        %v720 = vpop.f32.mrb[0].mxu0
        %721 = vdwg.mxu0
        %v722 = vmax.f32 %v634, %v717
        %s723 = scalar_lea.vmem %s317, 12 [#allocation2]
        %v724 = vld [vmem:[%s723] sm:$0xf]
        %v726 = vsel %vm393, %v724, 0
        %728 = vmatprep.subr.bf16.mxu0 0
        %729 = vmatpush1.bf16.msra.mxu0 %v399
        %730 = vmatprep.subr.bf16.mxu0 0
        %731 = vmatpush1.bf16.msra.mxu0 0
        %732 = vmatprep.subr.bf16.mxu0 0
        %733 = vmatpush1.bf16.msra.mxu0 0
        %734 = vmatprep.subr.bf16.mxu0 0
        %735 = vmatpush1.bf16.msra.mxu0 0
        %736 = vmatprep.subr.bf16.mxu0 0
        %737 = vmatpush1.bf16.msra.mxu0 0
        %738 = vmatprep.subr.bf16.mxu0 0
        %739 = vmatpush1.bf16.msra.mxu0 0
        %740 = vmatprep.subr.bf16.mxu0 0
        %741 = vmatpush1.bf16.msra.mxu0 0
        %742 = vmatprep.subr.bf16.mxu0 0
        %743 = vmatpush1.bf16.msra.mxu0 0
        %744 = vmatprep.subr.bf16.mxu0 0
        %745 = vmatpush1.bf16.msra.mxu0 0
        %746 = vmatprep.subr.bf16.mxu0 0
        %747 = vmatpush1.bf16.msra.mxu0 0
        %748 = vmatprep.subr.bf16.mxu0 0
        %749 = vmatpush1.bf16.msra.mxu0 0
        %750 = vmatprep.subr.bf16.mxu0 0
        %751 = vmatpush1.bf16.msra.mxu0 0
        %752 = vmatprep.subr.bf16.mxu0 0
        %753 = vmatpush1.bf16.msra.mxu0 0
        %754 = vmatprep.subr.bf16.mxu0 0
        %755 = vmatpush1.bf16.msra.mxu0 0
        %756 = vmatprep.subr.bf16.mxu0 0
        %757 = vmatpush1.bf16.msra.mxu0 0
        %758 = vmatprep.subr.bf16.mxu0 0
        %759 = vmatpush1.bf16.msra.mxu0 0
        %760 = vmatprep.mubr.bf16.mxu0 0
        %761 = vmatmul.mubr.bf16.gmra.mrb[0].mxu0 %v726
        %v762 = vpop.f32.mrb[0].mxu0
        %v763 = vadd.f32 %v391, %v762
        %v764 = vpop.f32.mrb[0].mxu0
        %v765 = vpop.f32.mrb[0].mxu0
        %v766 = vpop.f32.mrb[0].mxu0
        %767 = vdwg.mxu0
        %v768 = vmax.f32 %v763, 0.0
        %v769 = vpack.c.bf16 %v768, %v768
        %770 = vmatprep.subr.bf16.mxu0 0
        %771 = vmatpush1.bf16.msra.mxu0 %v491
        %772 = vmatprep.subr.bf16.mxu0 0
        %773 = vmatpush1.bf16.msra.mxu0 %v492
        %774 = vmatprep.subr.bf16.mxu0 0
        %775 = vmatpush1.bf16.msra.mxu0 %v493
        %776 = vmatprep.subr.bf16.mxu0 0
        %777 = vmatpush1.bf16.msra.mxu0 %v494
        %778 = vmatprep.subr.bf16.mxu0 0
        %779 = vmatpush1.bf16.msra.mxu0 %v495
        %780 = vmatprep.subr.bf16.mxu0 0
        %781 = vmatpush1.bf16.msra.mxu0 %v496
        %782 = vmatprep.subr.bf16.mxu0 0
        %783 = vmatpush1.bf16.msra.mxu0 %v497
        %784 = vmatprep.subr.bf16.mxu0 0
        %785 = vmatpush1.bf16.msra.mxu0 %v498
        %786 = vmatprep.subr.bf16.mxu0 0
        %787 = vmatpush1.bf16.msra.mxu0 0
        %788 = vmatprep.subr.bf16.mxu0 0
        %789 = vmatpush1.bf16.msra.mxu0 0
        %790 = vmatprep.subr.bf16.mxu0 0
        %791 = vmatpush1.bf16.msra.mxu0 0
        %792 = vmatprep.subr.bf16.mxu0 0
        %793 = vmatpush1.bf16.msra.mxu0 0
        %794 = vmatprep.subr.bf16.mxu0 0
        %795 = vmatpush1.bf16.msra.mxu0 0
        %796 = vmatprep.subr.bf16.mxu0 0
        %797 = vmatpush1.bf16.msra.mxu0 0
        %798 = vmatprep.subr.bf16.mxu0 0
        %799 = vmatpush1.bf16.msra.mxu0 0
        %800 = vmatprep.subr.bf16.mxu0 0
        %801 = vmatpush1.bf16.msra.mxu0 0
        %802 = vmatprep.mubr.bf16.mxu0 0
        %803 = vmatmul.mubr.bf16.gmra.mrb[0].mxu0 %v769
        %v804 = vpop.f32.mrb[0].mxu0
        %v805 = vadd.f32 0.0, %v804
        %v806 = vpop.f32.mrb[0].mxu0
        %v807 = vpop.f32.mrb[0].mxu0
        %v808 = vpop.f32.mrb[0].mxu0
        %809 = vdwg.mxu0
        %v810 = vmax.f32 %v722, %v805
        %s811 = scalar_lea.vmem %s317, 16 [#allocation2]
        %v812 = vld [vmem:[%s811] sm:$0xf]
        %v814 = vsel %vm393, %v812, 0
        %816 = vmatprep.subr.bf16.mxu0 0
        %817 = vmatpush1.bf16.msra.mxu0 %v399
        %818 = vmatprep.subr.bf16.mxu0 0
        %819 = vmatpush1.bf16.msra.mxu0 0
        %820 = vmatprep.subr.bf16.mxu0 0
        %821 = vmatpush1.bf16.msra.mxu0 0
        %822 = vmatprep.subr.bf16.mxu0 0
        %823 = vmatpush1.bf16.msra.mxu0 0
        %824 = vmatprep.subr.bf16.mxu0 0
        %825 = vmatpush1.bf16.msra.mxu0 0
        %826 = vmatprep.subr.bf16.mxu0 0
        %827 = vmatpush1.bf16.msra.mxu0 0
        %828 = vmatprep.subr.bf16.mxu0 0
        %829 = vmatpush1.bf16.msra.mxu0 0
        %830 = vmatprep.subr.bf16.mxu0 0
        %831 = vmatpush1.bf16.msra.mxu0 0
        %832 = vmatprep.subr.bf16.mxu0 0
        %833 = vmatpush1.bf16.msra.mxu0 0
        %834 = vmatprep.subr.bf16.mxu0 0
        %835 = vmatpush1.bf16.msra.mxu0 0
        %836 = vmatprep.subr.bf16.mxu0 0
        %837 = vmatpush1.bf16.msra.mxu0 0
        %838 = vmatprep.subr.bf16.mxu0 0
        %839 = vmatpush1.bf16.msra.mxu0 0
        %840 = vmatprep.subr.bf16.mxu0 0
        %841 = vmatpush1.bf16.msra.mxu0 0
        %842 = vmatprep.subr.bf16.mxu0 0
        %843 = vmatpush1.bf16.msra.mxu0 0
        %844 = vmatprep.subr.bf16.mxu0 0
        %845 = vmatpush1.bf16.msra.mxu0 0
        %846 = vmatprep.subr.bf16.mxu0 0
        %847 = vmatpush1.bf16.msra.mxu0 0
        %848 = vmatprep.mubr.bf16.mxu0 0
        %849 = vmatmul.mubr.bf16.gmra.mrb[0].mxu0 %v814
        %v850 = vpop.f32.mrb[0].mxu0
        %v851 = vadd.f32 %v391, %v850
        %v852 = vpop.f32.mrb[0].mxu0
        %v853 = vpop.f32.mrb[0].mxu0
        %v854 = vpop.f32.mrb[0].mxu0
        %855 = vdwg.mxu0
        %v856 = vmax.f32 %v851, 0.0
        %v857 = vpack.c.bf16 %v856, %v856
        %858 = vmatprep.subr.bf16.mxu0 0
        %859 = vmatpush1.bf16.msra.mxu0 %v491
        %860 = vmatprep.subr.bf16.mxu0 0
        %861 = vmatpush1.bf16.msra.mxu0 %v492
        %862 = vmatprep.subr.bf16.mxu0 0
        %863 = vmatpush1.bf16.msra.mxu0 %v493
        %864 = vmatprep.subr.bf16.mxu0 0
        %865 = vmatpush1.bf16.msra.mxu0 %v494
        %866 = vmatprep.subr.bf16.mxu0 0
        %867 = vmatpush1.bf16.msra.mxu0 %v495
        %868 = vmatprep.subr.bf16.mxu0 0
        %869 = vmatpush1.bf16.msra.mxu0 %v496
        %870 = vmatprep.subr.bf16.mxu0 0
        %871 = vmatpush1.bf16.msra.mxu0 %v497
        %872 = vmatprep.subr.bf16.mxu0 0
        %873 = vmatpush1.bf16.msra.mxu0 %v498
        %874 = vmatprep.subr.bf16.mxu0 0
        %875 = vmatpush1.bf16.msra.mxu0 0
        %876 = vmatprep.subr.bf16.mxu0 0
        %877 = vmatpush1.bf16.msra.mxu0 0
        %878 = vmatprep.subr.bf16.mxu0 0
        %879 = vmatpush1.bf16.msra.mxu0 0
        %880 = vmatprep.subr.bf16.mxu0 0
        %881 = vmatpush1.bf16.msra.mxu0 0
        %882 = vmatprep.subr.bf16.mxu0 0
        %883 = vmatpush1.bf16.msra.mxu0 0
        %884 = vmatprep.subr.bf16.mxu0 0
        %885 = vmatpush1.bf16.msra.mxu0 0
        %886 = vmatprep.subr.bf16.mxu0 0
        %887 = vmatpush1.bf16.msra.mxu0 0
        %888 = vmatprep.subr.bf16.mxu0 0
        %889 = vmatpush1.bf16.msra.mxu0 0
        %890 = vmatprep.mubr.bf16.mxu0 0
        %891 = vmatmul.mubr.bf16.gmra.mrb[0].mxu0 %v857
        %v892 = vpop.f32.mrb[0].mxu0
        %v893 = vadd.f32 0.0, %v892
        %v894 = vpop.f32.mrb[0].mxu0
        %v895 = vpop.f32.mrb[0].mxu0
        %v896 = vpop.f32.mrb[0].mxu0
        %897 = vdwg.mxu0
        %v898 = vmax.f32 %v810, %v893
        %s899 = scalar_lea.vmem %s317, 20 [#allocation2]
        %v900 = vld [vmem:[%s899] sm:$0xf]
        %v902 = vsel %vm393, %v900, 0
        %904 = vmatprep.subr.bf16.mxu0 0
        %905 = vmatpush1.bf16.msra.mxu0 %v399
        %906 = vmatprep.subr.bf16.mxu0 0
        %907 = vmatpush1.bf16.msra.mxu0 0
        %908 = vmatprep.subr.bf16.mxu0 0
        %909 = vmatpush1.bf16.msra.mxu0 0
        %910 = vmatprep.subr.bf16.mxu0 0
        %911 = vmatpush1.bf16.msra.mxu0 0
        %912 = vmatprep.subr.bf16.mxu0 0
        %913 = vmatpush1.bf16.msra.mxu0 0
        %914 = vmatprep.subr.bf16.mxu0 0
        %915 = vmatpush1.bf16.msra.mxu0 0
        %916 = vmatprep.subr.bf16.mxu0 0
        %917 = vmatpush1.bf16.msra.mxu0 0
        %918 = vmatprep.subr.bf16.mxu0 0
        %919 = vmatpush1.bf16.msra.mxu0 0
        %920 = vmatprep.subr.bf16.mxu0 0
        %921 = vmatpush1.bf16.msra.mxu0 0
        %922 = vmatprep.subr.bf16.mxu0 0
        %923 = vmatpush1.bf16.msra.mxu0 0
        %924 = vmatprep.subr.bf16.mxu0 0
        %925 = vmatpush1.bf16.msra.mxu0 0
        %926 = vmatprep.subr.bf16.mxu0 0
        %927 = vmatpush1.bf16.msra.mxu0 0
        %928 = vmatprep.subr.bf16.mxu0 0
        %929 = vmatpush1.bf16.msra.mxu0 0
        %930 = vmatprep.subr.bf16.mxu0 0
        %931 = vmatpush1.bf16.msra.mxu0 0
        %932 = vmatprep.subr.bf16.mxu0 0
        %933 = vmatpush1.bf16.msra.mxu0 0
        %934 = vmatprep.subr.bf16.mxu0 0
        %935 = vmatpush1.bf16.msra.mxu0 0
        %936 = vmatprep.mubr.bf16.mxu0 0
        %937 = vmatmul.mubr.bf16.gmra.mrb[0].mxu0 %v902
        %v938 = vpop.f32.mrb[0].mxu0
        %v939 = vadd.f32 %v391, %v938
        %v940 = vpop.f32.mrb[0].mxu0
        %v941 = vpop.f32.mrb[0].mxu0
        %v942 = vpop.f32.mrb[0].mxu0
        %943 = vdwg.mxu0
        %v944 = vmax.f32 %v939, 0.0
        %v945 = vpack.c.bf16 %v944, %v944
        %946 = vmatprep.subr.bf16.mxu0 0
        %947 = vmatpush1.bf16.msra.mxu0 %v491
        %948 = vmatprep.subr.bf16.mxu0 0
        %949 = vmatpush1.bf16.msra.mxu0 %v492
        %950 = vmatprep.subr.bf16.mxu0 0
        %951 = vmatpush1.bf16.msra.mxu0 %v493
        %952 = vmatprep.subr.bf16.mxu0 0
        %953 = vmatpush1.bf16.msra.mxu0 %v494
        %954 = vmatprep.subr.bf16.mxu0 0
        %955 = vmatpush1.bf16.msra.mxu0 %v495
        %956 = vmatprep.subr.bf16.mxu0 0
        %957 = vmatpush1.bf16.msra.mxu0 %v496
        %958 = vmatprep.subr.bf16.mxu0 0
        %959 = vmatpush1.bf16.msra.mxu0 %v497
        %960 = vmatprep.subr.bf16.mxu0 0
        %961 = vmatpush1.bf16.msra.mxu0 %v498
        %962 = vmatprep.subr.bf16.mxu0 0
        %963 = vmatpush1.bf16.msra.mxu0 0
        %964 = vmatprep.subr.bf16.mxu0 0
        %965 = vmatpush1.bf16.msra.mxu0 0
        %966 = vmatprep.subr.bf16.mxu0 0
        %967 = vmatpush1.bf16.msra.mxu0 0
        %968 = vmatprep.subr.bf16.mxu0 0
        %969 = vmatpush1.bf16.msra.mxu0 0
        %970 = vmatprep.subr.bf16.mxu0 0
        %971 = vmatpush1.bf16.msra.mxu0 0
        %972 = vmatprep.subr.bf16.mxu0 0
        %973 = vmatpush1.bf16.msra.mxu0 0
        %974 = vmatprep.subr.bf16.mxu0 0
        %975 = vmatpush1.bf16.msra.mxu0 0
        %976 = vmatprep.subr.bf16.mxu0 0
        %977 = vmatpush1.bf16.msra.mxu0 0
        %978 = vmatprep.mubr.bf16.mxu0 0
        %979 = vmatmul.mubr.bf16.gmra.mrb[0].mxu0 %v945
        %v980 = vpop.f32.mrb[0].mxu0
        %v981 = vadd.f32 0.0, %v980
        %v982 = vpop.f32.mrb[0].mxu0
        %v983 = vpop.f32.mrb[0].mxu0
        %v984 = vpop.f32.mrb[0].mxu0
        %985 = vdwg.mxu0
        %v986 = vmax.f32 %v898, %v981
        %s987 = scalar_lea.vmem %s317, 24 [#allocation2]
        %v988 = vld [vmem:[%s987] sm:$0xf]
        %v990 = vsel %vm393, %v988, 0
        %992 = vmatprep.subr.bf16.mxu0 0
        %993 = vmatpush1.bf16.msra.mxu0 %v399
        %994 = vmatprep.subr.bf16.mxu0 0
        %995 = vmatpush1.bf16.msra.mxu0 0
        %996 = vmatprep.subr.bf16.mxu0 0
        %997 = vmatpush1.bf16.msra.mxu0 0
        %998 = vmatprep.subr.bf16.mxu0 0
        %999 = vmatpush1.bf16.msra.mxu0 0
        %1000 = vmatprep.subr.bf16.mxu0 0
        %1001 = vmatpush1.bf16.msra.mxu0 0
        %1002 = vmatprep.subr.bf16.mxu0 0
        %1003 = vmatpush1.bf16.msra.mxu0 0
        %1004 = vmatprep.subr.bf16.mxu0 0
        %1005 = vmatpush1.bf16.msra.mxu0 0
        %1006 = vmatprep.subr.bf16.mxu0 0
        %1007 = vmatpush1.bf16.msra.mxu0 0
        %1008 = vmatprep.subr.bf16.mxu0 0
        %1009 = vmatpush1.bf16.msra.mxu0 0
        %1010 = vmatprep.subr.bf16.mxu0 0
        %1011 = vmatpush1.bf16.msra.mxu0 0
        %1012 = vmatprep.subr.bf16.mxu0 0
        %1013 = vmatpush1.bf16.msra.mxu0 0
        %1014 = vmatprep.subr.bf16.mxu0 0
        %1015 = vmatpush1.bf16.msra.mxu0 0
        %1016 = vmatprep.subr.bf16.mxu0 0
        %1017 = vmatpush1.bf16.msra.mxu0 0
        %1018 = vmatprep.subr.bf16.mxu0 0
        %1019 = vmatpush1.bf16.msra.mxu0 0
        %1020 = vmatprep.subr.bf16.mxu0 0
        %1021 = vmatpush1.bf16.msra.mxu0 0
        %1022 = vmatprep.subr.bf16.mxu0 0
        %1023 = vmatpush1.bf16.msra.mxu0 0
        %1024 = vmatprep.mubr.bf16.mxu0 0
        %1025 = vmatmul.mubr.bf16.gmra.mrb[0].mxu0 %v990
        %v1026 = vpop.f32.mrb[0].mxu0
        %v1027 = vadd.f32 %v391, %v1026
        %v1028 = vpop.f32.mrb[0].mxu0
        %v1029 = vpop.f32.mrb[0].mxu0
        %v1030 = vpop.f32.mrb[0].mxu0
        %1031 = vdwg.mxu0
        %v1032 = vmax.f32 %v1027, 0.0
        %v1033 = vpack.c.bf16 %v1032, %v1032
        %1034 = vmatprep.subr.bf16.mxu0 0
        %1035 = vmatpush1.bf16.msra.mxu0 %v491
        %1036 = vmatprep.subr.bf16.mxu0 0
        %1037 = vmatpush1.bf16.msra.mxu0 %v492
        %1038 = vmatprep.subr.bf16.mxu0 0
        %1039 = vmatpush1.bf16.msra.mxu0 %v493
        %1040 = vmatprep.subr.bf16.mxu0 0
        %1041 = vmatpush1.bf16.msra.mxu0 %v494
        %1042 = vmatprep.subr.bf16.mxu0 0
        %1043 = vmatpush1.bf16.msra.mxu0 %v495
        %1044 = vmatprep.subr.bf16.mxu0 0
        %1045 = vmatpush1.bf16.msra.mxu0 %v496
        %1046 = vmatprep.subr.bf16.mxu0 0
        %1047 = vmatpush1.bf16.msra.mxu0 %v497
        %1048 = vmatprep.subr.bf16.mxu0 0
        %1049 = vmatpush1.bf16.msra.mxu0 %v498
        %1050 = vmatprep.subr.bf16.mxu0 0
        %1051 = vmatpush1.bf16.msra.mxu0 0
        %1052 = vmatprep.subr.bf16.mxu0 0
        %1053 = vmatpush1.bf16.msra.mxu0 0
        %1054 = vmatprep.subr.bf16.mxu0 0
        %1055 = vmatpush1.bf16.msra.mxu0 0
        %1056 = vmatprep.subr.bf16.mxu0 0
        %1057 = vmatpush1.bf16.msra.mxu0 0
        %1058 = vmatprep.subr.bf16.mxu0 0
        %1059 = vmatpush1.bf16.msra.mxu0 0
        %1060 = vmatprep.subr.bf16.mxu0 0
        %1061 = vmatpush1.bf16.msra.mxu0 0
        %1062 = vmatprep.subr.bf16.mxu0 0
        %1063 = vmatpush1.bf16.msra.mxu0 0
        %1064 = vmatprep.subr.bf16.mxu0 0
        %1065 = vmatpush1.bf16.msra.mxu0 0
        %1066 = vmatprep.mubr.bf16.mxu0 0
        %1067 = vmatmul.mubr.bf16.gmra.mrb[0].mxu0 %v1033
        %v1068 = vpop.f32.mrb[0].mxu0
        %v1069 = vadd.f32 0.0, %v1068
        %v1070 = vpop.f32.mrb[0].mxu0
        %v1071 = vpop.f32.mrb[0].mxu0
        %v1072 = vpop.f32.mrb[0].mxu0
        %1073 = vdwg.mxu0
        %v1074 = vmax.f32 %v986, %v1069
        %s1075 = scalar_lea.vmem %s317, 28 [#allocation2]
        %v1076 = vld [vmem:[%s1075] sm:$0xf]
        %v1078 = vsel %vm393, %v1076, 0
        %1080 = vmatprep.subr.bf16.mxu0 0
        %1081 = vmatpush1.bf16.msra.mxu0 %v399
        %1082 = vmatprep.subr.bf16.mxu0 0
        %1083 = vmatpush1.bf16.msra.mxu0 0
        %1084 = vmatprep.subr.bf16.mxu0 0
        %1085 = vmatpush1.bf16.msra.mxu0 0
        %1086 = vmatprep.subr.bf16.mxu0 0
        %1087 = vmatpush1.bf16.msra.mxu0 0
        %1088 = vmatprep.subr.bf16.mxu0 0
        %1089 = vmatpush1.bf16.msra.mxu0 0
        %1090 = vmatprep.subr.bf16.mxu0 0
        %1091 = vmatpush1.bf16.msra.mxu0 0
        %1092 = vmatprep.subr.bf16.mxu0 0
        %1093 = vmatpush1.bf16.msra.mxu0 0
        %1094 = vmatprep.subr.bf16.mxu0 0
        %1095 = vmatpush1.bf16.msra.mxu0 0
        %1096 = vmatprep.subr.bf16.mxu0 0
        %1097 = vmatpush1.bf16.msra.mxu0 0
        %1098 = vmatprep.subr.bf16.mxu0 0
        %1099 = vmatpush1.bf16.msra.mxu0 0
        %1100 = vmatprep.subr.bf16.mxu0 0
        %1101 = vmatpush1.bf16.msra.mxu0 0
        %1102 = vmatprep.subr.bf16.mxu0 0
        %1103 = vmatpush1.bf16.msra.mxu0 0
        %1104 = vmatprep.subr.bf16.mxu0 0
        %1105 = vmatpush1.bf16.msra.mxu0 0
        %1106 = vmatprep.subr.bf16.mxu0 0
        %1107 = vmatpush1.bf16.msra.mxu0 0
        %1108 = vmatprep.subr.bf16.mxu0 0
        %1109 = vmatpush1.bf16.msra.mxu0 0
        %1110 = vmatprep.subr.bf16.mxu0 0
        %1111 = vmatpush1.bf16.msra.mxu0 0
        %1112 = vmatprep.mubr.bf16.mxu0 0
        %1113 = vmatmul.mubr.bf16.gmra.mrb[0].mxu0 %v1078
        %v1114 = vpop.f32.mrb[0].mxu0
        %v1115 = vadd.f32 %v391, %v1114
        %v1116 = vpop.f32.mrb[0].mxu0
        %v1117 = vpop.f32.mrb[0].mxu0
        %v1118 = vpop.f32.mrb[0].mxu0
        %1119 = vdwg.mxu0
        %v1120 = vmax.f32 %v1115, 0.0
        %v1121 = vpack.c.bf16 %v1120, %v1120
        %1122 = vmatprep.subr.bf16.mxu0 0
        %1123 = vmatpush1.bf16.msra.mxu0 %v491
        %1124 = vmatprep.subr.bf16.mxu0 0
        %1125 = vmatpush1.bf16.msra.mxu0 %v492
        %1126 = vmatprep.subr.bf16.mxu0 0
        %1127 = vmatpush1.bf16.msra.mxu0 %v493
        %1128 = vmatprep.subr.bf16.mxu0 0
        %1129 = vmatpush1.bf16.msra.mxu0 %v494
        %1130 = vmatprep.subr.bf16.mxu0 0
        %1131 = vmatpush1.bf16.msra.mxu0 %v495
        %1132 = vmatprep.subr.bf16.mxu0 0
        %1133 = vmatpush1.bf16.msra.mxu0 %v496
        %1134 = vmatprep.subr.bf16.mxu0 0
        %1135 = vmatpush1.bf16.msra.mxu0 %v497
        %1136 = vmatprep.subr.bf16.mxu0 0
        %1137 = vmatpush1.bf16.msra.mxu0 %v498
        %1138 = vmatprep.subr.bf16.mxu0 0
        %1139 = vmatpush1.bf16.msra.mxu0 0
        %1140 = vmatprep.subr.bf16.mxu0 0
        %1141 = vmatpush1.bf16.msra.mxu0 0
        %1142 = vmatprep.subr.bf16.mxu0 0
        %1143 = vmatpush1.bf16.msra.mxu0 0
        %1144 = vmatprep.subr.bf16.mxu0 0
        %1145 = vmatpush1.bf16.msra.mxu0 0
        %1146 = vmatprep.subr.bf16.mxu0 0
        %1147 = vmatpush1.bf16.msra.mxu0 0
        %1148 = vmatprep.subr.bf16.mxu0 0
        %1149 = vmatpush1.bf16.msra.mxu0 0
        %1150 = vmatprep.subr.bf16.mxu0 0
        %1151 = vmatpush1.bf16.msra.mxu0 0
        %1152 = vmatprep.subr.bf16.mxu0 0
        %1153 = vmatpush1.bf16.msra.mxu0 0
        %1154 = vmatprep.mubr.bf16.mxu0 0
        %1155 = vmatmul.mubr.bf16.gmra.mrb[0].mxu0 %v1121
        %v1156 = vpop.f32.mrb[0].mxu0
        %v1157 = vadd.f32 0.0, %v1156
        %v1158 = vpop.f32.mrb[0].mxu0
        %v1159 = vpop.f32.mrb[0].mxu0
        %v1160 = vpop.f32.mrb[0].mxu0
        %1161 = vdwg.mxu0
        %v1162 = vmax.f32 %v1074, %v1157
        %v1163 = vld [vmem:[%s374] sm:$0x1]
        %v1165 = vlaneseq
        %v1166 = vshrl.u32 %v1165, 7
        %v1167 = vsub.s32 0, %v1166
        %v1168 = vrot.slane %v1163, %v1167
        %v1170 = vadd.f32 %v1162, %v1168
        %v1171 = vmax.f32 %v1170, 0.0
        %1172 = vst [vmem:[%s382] sm:$0xff] %v1171
        %p1173 = scmp.lt.s32.totalorder %s20, 0
        %s1174 = scalar_select %p1173, %s20, 0
        %p1175 = scmp.lt.s32.totalorder %s21, 3
        %s1176 = scalar_select %p1175, %s21, 3
        %s1177 = smul.addr %s1174, 4
        %s1178 = sadd.s32 %s1176, %s1177
        %s1179 = smul.addr %s1178, 8
        %s1180 = scalar_lea.vmem %s5, %s1179
        // Predicated region
        $region82: #{a_call__.2} parent=76 // pred_check
          %p1181 = pneg %p180
        $region83: #{a_call__.2} parent=76 // pred_check_branch
          %1183 = sbr.rel (%p1181) target = $region85
        $region84: #{a_call__.2} parent=76 // pred_region
          _
        $region85: #{a_call__.2} parent=76 // pred_fallthru
          _
      $region77: #{a_call__.2} parent=5 // pred_fallthru
        _
      %p1184 = scmp.le.s32.totalorder 2, %s11
      // Predicated region
      $region86: #{a_call__.2} parent=5 // pred_check
        %p1185 = pneg %p1184
      $region87: #{a_call__.2} parent=5 // pred_check_branch
        %1187 = sbr.rel (%p1185) target = $region89
      $region88: #{a_call__.2} parent=5 // pred_region
        %s1188 = ssub.s32 %s11, 2
        // Predicated region
        $region90: #{a_call__.2} parent=88 // pred_check
          %p1189 = pneg %p186
        $region91: #{a_call__.2} parent=88 // pred_check_branch
          %1191 = sbr.rel (%p1189) target = $region93
        $region92: #{a_call__.2} parent=88 // pred_region
          %p1192 = scmp.lt.s32.totalorder %s22, 0
          %s1193 = scalar_select %p1192, %s22, 0
          %p1194 = scmp.lt.s32.totalorder %s23, 3
          %s1195 = scalar_select %p1194, %s23, 3
          %s1196 = smul.addr %s1193, 4
          %s1197 = sadd.s32 %s1195, %s1196
          %s1198 = smul.addr %s1197, 8
          %s1199 = scalar_lea.vmem %s5, %s1198
        $region93: #{a_call__.2} parent=88 // pred_fallthru
          _
      $region89: #{a_call__.2} parent=5 // pred_fallthru
        _
    $region6: #{a_call__.2} parent=1 // loop_footer
      %s15 = sadd.s32 1, %s11
    $region7: #{a_call__.2} parent=1 // loop_footer_branch
      %10 = sbr.rel target = $region3
    $region8: #{a_call__.2} parent=1 // loop_exit
      _

// kernel: a_call__.3
$region0: #{a_call__.3}
  #allocation0 [shape = 'u32[]', space=smem, size = 0x4, offset = 0x4, fixed_abs, tag = 'smem constant byte address 0x4 - core index']
  #allocation1 [shape = 'u32[144,128]{1,0:T(1,128)}', space=vmem, size = 0x12000, scoped, tag = 'internal scratch']
  %s0 = inlined_call_operand.vmem [shape: bf16[1,16,32,8], index: 0, kind: input, shape index: {}]
  %s1 = inlined_call_operand.vmem [shape: bf16[1,8,128], index: 1, kind: input, shape index: {}]
  %s2 = inlined_call_operand.vmem [shape: f32[1,1,128], index: 2, kind: input, shape index: {}]
  %s3 = inlined_call_operand.vmem [shape: bf16[1,128,128], index: 3, kind: input, shape index: {}]
  %s4 = inlined_call_operand.vmem [shape: f32[1,1,128], index: 4, kind: input, shape index: {}]
  %s5 = inlined_call_operand.vmem [shape: f32[1,32,128], index: 5, kind: output, shape index: {}]
  %s6 = sld [smem:[#allocation0]]
  $region94: #{a_call__.3} parent=0
    _
  %s8 = ssub.s32 1, %s6
  %s9 = scalar_select 0, %s8, %s6
  $region1: #{a_call__.3} parent=0
    #allocation2 [shape = 'u8[65536]{0}', space=vmem, size = 0x10000, scoped, tag = 'input window, operand 0']
    loop: start=0, step=1, limit=6
    $region2: #{a_call__.3} parent=1 // loop_pre_header
      _
    $region3: #{a_call__.3} parent=1 // loop_header
      %s11 = sphi 0, %s15
      %p12 = scmp.ge.s32.totalorder %s11, 6
      %s18 = sphi 0, %s30
      %s19 = sphi 0, %s26
      %s20 = sphi 0, %s18
      %s21 = sphi 0, %s19
      %s22 = sphi 0, %s20
      %s23 = sphi 0, %s21
      %s35 = sphi 0, %s37
      %s38 = sphi 0, %s35
      %s39 = sphi 0, %s38
      %s55 = sphi 0, %s39
      %s61 = sphi 0, %s63
      %s64 = sphi 0, %s61
      %s65 = sphi 0, %s64
      %s81 = sphi 0, %s65
      %s87 = sphi 0, %s89
      %s90 = sphi 0, %s87
      %s91 = sphi 0, %s90
      %s107 = sphi 0, %s91
      %s113 = sphi 0, %s115
      %s116 = sphi 0, %s113
      %s117 = sphi 0, %s116
      %s133 = sphi 0, %s117
      %s139 = sphi 0, %s141
      %s142 = sphi 0, %s139
      %s143 = sphi 0, %s142
      %s159 = sphi 0, %s143
      %s167 = sphi 0, %s169
      %s170 = sphi 0, %s167
      %s171 = sphi 0, %s170
      %s187 = sphi 0, %s171
    $region4: #{a_call__.3} parent=1 // loop_header_branch
      %14 = sbr.rel (%p12) target = $region8
    $region5: #{a_call__.3} parent=1 // loop_body
      %s16 = ssub.s32 %s11, 1
      %s17 = ssub.s32 %s11, 2
      %s24 = sadd.s32 1, %s19
      %p25 = scmp.ge.s32.totalorder %s24, 4
      %s26 = scalar_select %p25, 0, %s24
      %s27 = sadd.s32 1, %s18
      %s28 = scalar_select %p25, %s27, %s18
      %p29 = scmp.ge.s32.totalorder %s28, 1
      %s30 = scalar_select %p29, 0, %s28
      %s31 = ssub.s32 %s18, %s30
      %s32 = ssub.s32 %s19, %s26
      %s33 = sor.u32 %s31, %s32
      %p34 = scmp.eq.s32.totalorder %s33, 0
      %s36 = sadd.s32 %s35, 1
      %s37 = scalar_select %p34, %s35, %s36
      %p40 = pneg %p34
      %p41 = scmp.eq.s32.totalorder %s11, 3
      %p42 = por %p40, %p41
      %p43 = scmp.ne.s32.totalorder %s35, %s38
      %p44 = scmp.eq.s32.totalorder %s11, 0
      %p45 = por %p43, %p44
      %p46 = scmp.ne.s32.totalorder %s35, %s38
      %p47 = scmp.eq.s32.totalorder %s16, 3
      %p48 = por %p46, %p47
      %p49 = scmp.ne.s32.totalorder %s38, %s39
      %p50 = scmp.eq.s32.totalorder %s16, 0
      %p51 = por %p49, %p50
      %p52 = scmp.ne.s32.totalorder %s38, %s39
      %p53 = scmp.eq.s32.totalorder %s17, 3
      %p54 = por %p52, %p53
      %p56 = scmp.ne.s32.totalorder %s39, %s55
      %p57 = scmp.eq.s32.totalorder %s17, 0
      %p58 = por %p56, %p57
      %s59 = ssub.s32 %s18, %s30
      %p60 = scmp.eq.s32.totalorder %s59, 0
      %s62 = sadd.s32 %s61, 1
      %s63 = scalar_select %p60, %s61, %s62
      %p66 = pneg %p60
      %p67 = scmp.eq.s32.totalorder %s11, 3
      %p68 = por %p66, %p67
      %p69 = scmp.ne.s32.totalorder %s61, %s64
      %p70 = scmp.eq.s32.totalorder %s11, 0
      %p71 = por %p69, %p70
      %p72 = scmp.ne.s32.totalorder %s61, %s64
      %p73 = scmp.eq.s32.totalorder %s16, 3
      %p74 = por %p72, %p73
      %p75 = scmp.ne.s32.totalorder %s64, %s65
      %p76 = scmp.eq.s32.totalorder %s16, 0
      %p77 = por %p75, %p76
      %p78 = scmp.ne.s32.totalorder %s64, %s65
      %p79 = scmp.eq.s32.totalorder %s17, 3
      %p80 = por %p78, %p79
      %p82 = scmp.ne.s32.totalorder %s65, %s81
      %p83 = scmp.eq.s32.totalorder %s17, 0
      %p84 = por %p82, %p83
      %s85 = ssub.s32 %s18, %s30
      %p86 = scmp.eq.s32.totalorder %s85, 0
      %s88 = sadd.s32 %s87, 1
      %s89 = scalar_select %p86, %s87, %s88
      %p92 = pneg %p86
      %p93 = scmp.eq.s32.totalorder %s11, 3
      %p94 = por %p92, %p93
      %p95 = scmp.ne.s32.totalorder %s87, %s90
      %p96 = scmp.eq.s32.totalorder %s11, 0
      %p97 = por %p95, %p96
      %p98 = scmp.ne.s32.totalorder %s87, %s90
      %p99 = scmp.eq.s32.totalorder %s16, 3
      %p100 = por %p98, %p99
      %p101 = scmp.ne.s32.totalorder %s90, %s91
      %p102 = scmp.eq.s32.totalorder %s16, 0
      %p103 = por %p101, %p102
      %p104 = scmp.ne.s32.totalorder %s90, %s91
      %p105 = scmp.eq.s32.totalorder %s17, 3
      %p106 = por %p104, %p105
      %p108 = scmp.ne.s32.totalorder %s91, %s107
      %p109 = scmp.eq.s32.totalorder %s17, 0
      %p110 = por %p108, %p109
      %s111 = ssub.s32 %s18, %s30
      %p112 = scmp.eq.s32.totalorder %s111, 0
      %s114 = sadd.s32 %s113, 1
      %s115 = scalar_select %p112, %s113, %s114
      %p118 = pneg %p112
      %p119 = scmp.eq.s32.totalorder %s11, 3
      %p120 = por %p118, %p119
      %p121 = scmp.ne.s32.totalorder %s113, %s116
      %p122 = scmp.eq.s32.totalorder %s11, 0
      %p123 = por %p121, %p122
      %p124 = scmp.ne.s32.totalorder %s113, %s116
      %p125 = scmp.eq.s32.totalorder %s16, 3
      %p126 = por %p124, %p125
      %p127 = scmp.ne.s32.totalorder %s116, %s117
      %p128 = scmp.eq.s32.totalorder %s16, 0
      %p129 = por %p127, %p128
      %p130 = scmp.ne.s32.totalorder %s116, %s117
      %p131 = scmp.eq.s32.totalorder %s17, 3
      %p132 = por %p130, %p131
      %p134 = scmp.ne.s32.totalorder %s117, %s133
      %p135 = scmp.eq.s32.totalorder %s17, 0
      %p136 = por %p134, %p135
      %s137 = ssub.s32 %s18, %s30
      %p138 = scmp.eq.s32.totalorder %s137, 0
      %s140 = sadd.s32 %s139, 1
      %s141 = scalar_select %p138, %s139, %s140
      %p144 = pneg %p138
      %p145 = scmp.eq.s32.totalorder %s11, 3
      %p146 = por %p144, %p145
      %p147 = scmp.ne.s32.totalorder %s139, %s142
      %p148 = scmp.eq.s32.totalorder %s11, 0
      %p149 = por %p147, %p148
      %p150 = scmp.ne.s32.totalorder %s139, %s142
      %p151 = scmp.eq.s32.totalorder %s16, 3
      %p152 = por %p150, %p151
      %p153 = scmp.ne.s32.totalorder %s142, %s143
      %p154 = scmp.eq.s32.totalorder %s16, 0
      %p155 = por %p153, %p154
      %p156 = scmp.ne.s32.totalorder %s142, %s143
      %p157 = scmp.eq.s32.totalorder %s17, 3
      %p158 = por %p156, %p157
      %p160 = scmp.ne.s32.totalorder %s143, %s159
      %p161 = scmp.eq.s32.totalorder %s17, 0
      %p162 = por %p160, %p161
      %s163 = ssub.s32 %s18, %s30
      %s164 = ssub.s32 %s19, %s26
      %s165 = sor.u32 %s163, %s164
      %p166 = scmp.eq.s32.totalorder %s165, 0
      %s168 = sadd.s32 %s167, 1
      %s169 = scalar_select %p166, %s167, %s168
      %p172 = pneg %p166
      %p173 = scmp.eq.s32.totalorder %s11, 3
      %p174 = por %p172, %p173
      %p175 = scmp.ne.s32.totalorder %s167, %s170
      %p176 = scmp.eq.s32.totalorder %s11, 0
      %p177 = por %p175, %p176
      %p178 = scmp.ne.s32.totalorder %s167, %s170
      %p179 = scmp.eq.s32.totalorder %s16, 3
      %p180 = por %p178, %p179
      %p181 = scmp.ne.s32.totalorder %s170, %s171
      %p182 = scmp.eq.s32.totalorder %s16, 0
      %p183 = por %p181, %p182
      %p184 = scmp.ne.s32.totalorder %s170, %s171
      %p185 = scmp.eq.s32.totalorder %s17, 3
      %p186 = por %p184, %p185
      %p188 = scmp.ne.s32.totalorder %s171, %s187
      %p189 = scmp.eq.s32.totalorder %s17, 0
      %p190 = por %p188, %p189
      %p191 = scmp.le.s32.totalorder 1, %s11
      %p192 = scmp.lt.s32.totalorder %s11, 5
      %p193 = pnand %p191, %p192
      %p194 = pneg %p193
      // Predicated region
      $region9: #{a_call__.3} parent=5 // pred_check
        _
      $region10: #{a_call__.3} parent=5 // pred_check_branch
        %196 = sbr.rel (%p193) target = $region12
      $region11: #{a_call__.3} parent=5 // pred_region
        %s197 = ssub.s32 %s11, 1
        // Predicated region
        $region13: #{a_call__.3} parent=11 // pred_check
          %p198 = pneg %p77
        $region14: #{a_call__.3} parent=11 // pred_check_branch
          %200 = sbr.rel (%p198) target = $region16
        $region15: #{a_call__.3} parent=11 // pred_region
          %p201 = scmp.lt.s32.totalorder %s20, 0
          %s202 = scalar_select %p201, %s20, 0
          %s203 = smul.addr %s202, 4
          %s204 = scalar_lea.vmem %s1, %s203
        $region16: #{a_call__.3} parent=11 // pred_fallthru
          _
        // Predicated region
        $region17: #{a_call__.3} parent=11 // pred_check
          %p205 = pneg %p103
        $region18: #{a_call__.3} parent=11 // pred_check_branch
          %207 = sbr.rel (%p205) target = $region20
        $region19: #{a_call__.3} parent=11 // pred_region
          %p208 = scmp.lt.s32.totalorder %s20, 0
          %s209 = scalar_select %p208, %s20, 0
          %s210 = scalar_lea.vmem %s2, %s209
        $region20: #{a_call__.3} parent=11 // pred_fallthru
          _
        // Predicated region
        $region21: #{a_call__.3} parent=11 // pred_check
          %p211 = pneg %p129
        $region22: #{a_call__.3} parent=11 // pred_check_branch
          %213 = sbr.rel (%p211) target = $region24
        $region23: #{a_call__.3} parent=11 // pred_region
          %p214 = scmp.lt.s32.totalorder %s20, 0
          %s215 = scalar_select %p214, %s20, 0
          %s216 = smul.addr %s215, 16
          %s217 = smul.addr %s216, 4
          %s218 = scalar_lea.vmem %s3, %s217
        $region24: #{a_call__.3} parent=11 // pred_fallthru
          _
        // Predicated region
        $region25: #{a_call__.3} parent=11 // pred_check
          %p219 = pneg %p155
        $region26: #{a_call__.3} parent=11 // pred_check_branch
          %221 = sbr.rel (%p219) target = $region28
        $region27: #{a_call__.3} parent=11 // pred_region
          %p222 = scmp.lt.s32.totalorder %s20, 0
          %s223 = scalar_select %p222, %s20, 0
          %s224 = scalar_lea.vmem %s4, %s223
        $region28: #{a_call__.3} parent=11 // pred_fallthru
          _
      $region12: #{a_call__.3} parent=5 // pred_fallthru
        _
      %p225 = scmp.lt.s32.totalorder %s11, 4
      // Predicated region
      $region29: #{a_call__.3} parent=5 // pred_check
        %p226 = pneg %p225
      $region30: #{a_call__.3} parent=5 // pred_check_branch
        %228 = sbr.rel (%p226) target = $region32
      $region31: #{a_call__.3} parent=5 // pred_region
        // Predicated region
        $region33: #{a_call__.3} parent=31 // pred_check
          %p229 = pneg %p45
        $region34: #{a_call__.3} parent=31 // pred_check_branch
          %231 = sbr.rel (%p229) target = $region36
        $region35: #{a_call__.3} parent=31 // pred_region
          %s232 = sand.u32 %s35, 1
          %s233 = sand.u32 %s35, 1
          %s234 = smul.addr %s233, 64
          %s235 = scalar_lea.vmem [#allocation2], %s234
          %s236 = smul.addr %s18, 64
          %s237 = sadd.s32 %s19, %s236
          %s238 = smul.addr %s237, 4
          %s239 = scalar_lea.vmem %s0, %s238
          // Predicated region
          $region37: #{a_call__.3} parent=35 // pred_check
            _
          $region38: #{a_call__.3} parent=35 // pred_check_branch
            %241 = sbr.rel (0) target = $region40
          $region39: #{a_call__.3} parent=35 // pred_region
            // Predicated region
            $region41: #{a_call__.3} parent=39 // pred_check
              _
            $region42: #{a_call__.3} parent=39 // pred_check_branch
              %243 = sbr.rel target = $region44
            $region43: #{a_call__.3} parent=39 // pred_region
              // Predicated region
              $region56: #{a_call__.3} parent=43 // pred_check
                _
              $region57: #{a_call__.3} parent=43 // pred_check_branch
                %288 = sbr.rel (0) target = $region59
              $region58: #{a_call__.3} parent=43 // pred_region
                loop: start=0, step=1, limit=1
                $region60: #{a_call__.3} parent=58 // loop_pre_header
                  _
                $region61: #{a_call__.3} parent=58 // loop_header
                  %s290 = sphi 0, %s294
                  %p291 = scmp.ge.s32.totalorder %s290, 1
                  %s295 = sphi %s239, %s239
                  %s296 = sphi %s235, %s235
                $region62: #{a_call__.3} parent=58 // loop_header_branch
                  %293 = sbr.rel (%p291) target = $region66
                $region63: #{a_call__.3} parent=58 // loop_body
                  _
                $region64: #{a_call__.3} parent=58 // loop_footer
                  %s294 = sadd.s32 1, %s290
                $region65: #{a_call__.3} parent=58 // loop_footer_branch
                  %289 = sbr.rel target = $region61
                $region66: #{a_call__.3} parent=58 // loop_exit
                  _
                loop: start=0, step=1, limit=1
                $region67: #{a_call__.3} parent=58 // loop_pre_header
                  _
                $region68: #{a_call__.3} parent=58 // loop_header
                  %s299 = sphi 0, %s303
                  %p300 = scmp.ge.s32.totalorder %s299, 1
                  %s304 = sphi %s239, %s239
                  %s305 = sphi %s235, %s235
                $region69: #{a_call__.3} parent=58 // loop_header_branch
                  %302 = sbr.rel (%p300) target = $region73
                $region70: #{a_call__.3} parent=58 // loop_body
                  %v306 = vld [vmem:[%s304] sm:$0xf]
                  %307 = vst [vmem:[%s305] sm:$0xf] %v306
                  %v308 = vld [vmem:[%s304 + $0x10] sm:$0xf]
                  %309 = vst [vmem:[%s305 + $0x4] sm:$0xf] %v308
                  %v310 = vld [vmem:[%s304 + $0x20] sm:$0xf]
                  %311 = vst [vmem:[%s305 + $0x8] sm:$0xf] %v310
                  %v312 = vld [vmem:[%s304 + $0x30] sm:$0xf]
                  %313 = vst [vmem:[%s305 + $0xc] sm:$0xf] %v312
                  %v314 = vld [vmem:[%s304 + $0x40] sm:$0xf]
                  %315 = vst [vmem:[%s305 + $0x10] sm:$0xf] %v314
                  %v316 = vld [vmem:[%s304 + $0x50] sm:$0xf]
                  %317 = vst [vmem:[%s305 + $0x14] sm:$0xf] %v316
                  %v318 = vld [vmem:[%s304 + $0x60] sm:$0xf]
                  %319 = vst [vmem:[%s305 + $0x18] sm:$0xf] %v318
                  %v320 = vld [vmem:[%s304 + $0x70] sm:$0xf]
                  %321 = vst [vmem:[%s305 + $0x1c] sm:$0xf] %v320
                  %v322 = vld [vmem:[%s304 + $0x80] sm:$0xf]
                  %323 = vst [vmem:[%s305 + $0x20] sm:$0xf] %v322
                  %v324 = vld [vmem:[%s304 + $0x90] sm:$0xf]
                  %325 = vst [vmem:[%s305 + $0x24] sm:$0xf] %v324
                  %v326 = vld [vmem:[%s304 + $0xa0] sm:$0xf]
                  %327 = vst [vmem:[%s305 + $0x28] sm:$0xf] %v326
                  %v328 = vld [vmem:[%s304 + $0xb0] sm:$0xf]
                  %329 = vst [vmem:[%s305 + $0x2c] sm:$0xf] %v328
                  %v330 = vld [vmem:[%s304 + $0xc0] sm:$0xf]
                  %331 = vst [vmem:[%s305 + $0x30] sm:$0xf] %v330
                  %v332 = vld [vmem:[%s304 + $0xd0] sm:$0xf]
                  %333 = vst [vmem:[%s305 + $0x34] sm:$0xf] %v332
                  %v334 = vld [vmem:[%s304 + $0xe0] sm:$0xf]
                  %335 = vst [vmem:[%s305 + $0x38] sm:$0xf] %v334
                  %v336 = vld [vmem:[%s304 + $0xf0] sm:$0xf]
                  %337 = vst [vmem:[%s305 + $0x3c] sm:$0xf] %v336
                $region71: #{a_call__.3} parent=58 // loop_footer
                  %s303 = sadd.s32 1, %s299
                $region72: #{a_call__.3} parent=58 // loop_footer_branch
                  %298 = sbr.rel target = $region68
                $region73: #{a_call__.3} parent=58 // loop_exit
                  _
              $region59: #{a_call__.3} parent=43 // pred_fallthru
                _
            $region44: #{a_call__.3} parent=39 // pred_fallthru
              _
            // Predicated region
            $region45: #{a_call__.3} parent=39 // pred_check
              _
            $region46: #{a_call__.3} parent=39 // pred_check_branch
              %245 = sbr.rel (0) target = $region48
            $region47: #{a_call__.3} parent=39 // pred_region
              loop: start=0, step=1, limit=1
              $region49: #{a_call__.3} parent=47 // loop_pre_header
                _
              $region50: #{a_call__.3} parent=47 // loop_header
                %s248 = sphi 0, %s252
                %p249 = scmp.ge.s32.totalorder %s248, 1
                %s253 = sphi %s239, %s239
                %s254 = sphi %s235, %s235
              $region51: #{a_call__.3} parent=47 // loop_header_branch
                %251 = sbr.rel (%p249) target = $region55
              $region52: #{a_call__.3} parent=47 // loop_body
                %v255 = vld [vmem:[%s253] sm:$0xf]
                %256 = vst [vmem:[%s254] sm:$0xf] %v255
                %v257 = vld [vmem:[%s253 + $0x10] sm:$0xf]
                %258 = vst [vmem:[%s254 + $0x4] sm:$0xf] %v257
                %v259 = vld [vmem:[%s253 + $0x20] sm:$0xf]
                %260 = vst [vmem:[%s254 + $0x8] sm:$0xf] %v259
                %v261 = vld [vmem:[%s253 + $0x30] sm:$0xf]
                %262 = vst [vmem:[%s254 + $0xc] sm:$0xf] %v261
                %v263 = vld [vmem:[%s253 + $0x40] sm:$0xf]
                %264 = vst [vmem:[%s254 + $0x10] sm:$0xf] %v263
                %v265 = vld [vmem:[%s253 + $0x50] sm:$0xf]
                %266 = vst [vmem:[%s254 + $0x14] sm:$0xf] %v265
                %v267 = vld [vmem:[%s253 + $0x60] sm:$0xf]
                %268 = vst [vmem:[%s254 + $0x18] sm:$0xf] %v267
                %v269 = vld [vmem:[%s253 + $0x70] sm:$0xf]
                %270 = vst [vmem:[%s254 + $0x1c] sm:$0xf] %v269
                %v271 = vld [vmem:[%s253 + $0x80] sm:$0xf]
                %272 = vst [vmem:[%s254 + $0x20] sm:$0xf] %v271
                %v273 = vld [vmem:[%s253 + $0x90] sm:$0xf]
                %274 = vst [vmem:[%s254 + $0x24] sm:$0xf] %v273
                %v275 = vld [vmem:[%s253 + $0xa0] sm:$0xf]
                %276 = vst [vmem:[%s254 + $0x28] sm:$0xf] %v275
                %v277 = vld [vmem:[%s253 + $0xb0] sm:$0xf]
                %278 = vst [vmem:[%s254 + $0x2c] sm:$0xf] %v277
                %v279 = vld [vmem:[%s253 + $0xc0] sm:$0xf]
                %280 = vst [vmem:[%s254 + $0x30] sm:$0xf] %v279
                %v281 = vld [vmem:[%s253 + $0xd0] sm:$0xf]
                %282 = vst [vmem:[%s254 + $0x34] sm:$0xf] %v281
                %v283 = vld [vmem:[%s253 + $0xe0] sm:$0xf]
                %284 = vst [vmem:[%s254 + $0x38] sm:$0xf] %v283
                %v285 = vld [vmem:[%s253 + $0xf0] sm:$0xf]
                %286 = vst [vmem:[%s254 + $0x3c] sm:$0xf] %v285
              $region53: #{a_call__.3} parent=47 // loop_footer
                %s252 = sadd.s32 1, %s248
              $region54: #{a_call__.3} parent=47 // loop_footer_branch
                %247 = sbr.rel target = $region50
              $region55: #{a_call__.3} parent=47 // loop_exit
                _
            $region48: #{a_call__.3} parent=39 // pred_fallthru
              _
          $region40: #{a_call__.3} parent=35 // pred_fallthru
            _
          %338 = vnop
        $region36: #{a_call__.3} parent=31 // pred_fallthru
          _
      $region32: #{a_call__.3} parent=5 // pred_fallthru
        _
      %p339 = scmp.le.s32.totalorder 1, %s11
      %p340 = scmp.lt.s32.totalorder %s11, 5
      %p341 = pnand %p339, %p340
      %p342 = pneg %p341
      // Predicated region
      $region74: #{a_call__.3} parent=5 // pred_check
        _
      $region75: #{a_call__.3} parent=5 // pred_check_branch
        %344 = sbr.rel (%p341) target = $region77
      $region76: #{a_call__.3} parent=5 // pred_region
        %s345 = ssub.s32 %s11, 1
        %s346 = sand.u32 %s38, 1
        %s347 = sand.u32 %s38, 1
        %s348 = smul.addr %s347, 64
        %s349 = scalar_lea.vmem [#allocation2], %s348
        // Predicated region
        $region78: #{a_call__.3} parent=76 // pred_check
          %p350 = pneg %p51
        $region79: #{a_call__.3} parent=76 // pred_check_branch
          %352 = sbr.rel (%p350) target = $region81
        $region80: #{a_call__.3} parent=76 // pred_region
          _
        $region81: #{a_call__.3} parent=76 // pred_fallthru
          _
        %s353 = sand.u32 %s38, 1
        %s354 = sand.u32 %s38, 1
        %s355 = smul.addr %s354, 64
        %s356 = scalar_lea.vmem [#allocation2], %s355
        %p357 = pneg %p51
        %p358 = pneg %p48
        %p359 = scmp.lt.s32.totalorder %s20, 0
        %s360 = scalar_select %p359, %s20, 0
        %s361 = smul.addr %s360, 4
        %s362 = scalar_lea.vmem %s1, %s361
        %p363 = pneg %p77
        %p364 = pneg %p74
        %p365 = scmp.lt.s32.totalorder %s20, 0
        %s366 = scalar_select %p365, %s20, 0
        %s367 = scalar_lea.vmem %s2, %s366
        %p368 = pneg %p103
        %p369 = pneg %p100
        %p370 = scmp.lt.s32.totalorder %s20, 0
        %s371 = scalar_select %p370, %s20, 0
        %s372 = smul.addr %s371, 16
        %s373 = smul.addr %s372, 4
        %s374 = scalar_lea.vmem %s3, %s373
        %p375 = pneg %p129
        %p376 = pneg %p126
        %p377 = scmp.lt.s32.totalorder %s20, 0
        %s378 = scalar_select %p377, %s20, 0
        %s379 = scalar_lea.vmem %s4, %s378
        %p380 = pneg %p155
        %p381 = pneg %p152
        %p382 = pneg %p183
        %p383 = pneg %p180
        %p384 = scmp.lt.s32.totalorder %s20, 0
        %s385 = scalar_select %p384, %s20, 0
        %p386 = scmp.lt.s32.totalorder %s21, 3
        %s387 = scalar_select %p386, %s21, 3
        %s388 = smul.addr %s385, 4
        %s389 = sadd.s32 %s387, %s388
        %s390 = smul.addr %s389, 8
        %s391 = scalar_lea.vmem %s5, %s390
        %p392 = scmp.lt.s32.totalorder %s20, 0
        %s393 = scalar_select %p392, %s20, 0
        %s394 = smul.addr %s393, 4
        %s395 = scalar_lea.vmem %s1, %s394
        %p396 = scmp.lt.s32.totalorder %s20, 0
        %s397 = scalar_select %p396, %s20, 0
        %s398 = scalar_lea.vmem %s2, %s397
        %p399 = scmp.lt.s32.totalorder %s20, 0
        %s400 = scalar_select %p399, %s20, 0
        %s401 = smul.addr %s400, 16
        %s402 = smul.addr %s401, 4
        %s403 = scalar_lea.vmem %s3, %s402
        %p404 = scmp.lt.s32.totalorder %s20, 0
        %s405 = scalar_select %p404, %s20, 0
        %s406 = scalar_lea.vmem %s4, %s405
        %p407 = scmp.lt.s32.totalorder %s20, 0
        %s408 = scalar_select %p407, %s20, 0
        %p409 = scmp.lt.s32.totalorder %s21, 3
        %s410 = scalar_select %p409, %s21, 3
        %s411 = smul.addr %s408, 4
        %s412 = sadd.s32 %s410, %s411
        %s413 = smul.addr %s412, 8
        %s414 = scalar_lea.vmem %s5, %s413
        %v416 = vld [vmem:[%s349] sm:$0xf]
        %v417 = vld [vmem:[%s395] sm:$0xf]
        %v418 = vld [vmem:[%s398] sm:$0x1]
        %v420 = vlaneseq
        %v421 = vshrl.u32 %v420, 7
        %v422 = vsub.s32 0, %v421
        %v423 = vrot.slane %v418, %v422
        %vm425 = vcmask 64512
        %v427 = vsel %vm425, %v416, 0
        %vm429 = vcmask 1043456
        %v431 = vsel %vm429, %v417, 0
        %433 = vmatprep.subr.bf16.mxu0 0
        %434 = vmatpush1.bf16.msra.mxu0 %v431
        %435 = vmatprep.subr.bf16.mxu0 0
        %436 = vmatpush1.bf16.msra.mxu0 0
        %437 = vmatprep.subr.bf16.mxu0 0
        %438 = vmatpush1.bf16.msra.mxu0 0
        %439 = vmatprep.subr.bf16.mxu0 0
        %440 = vmatpush1.bf16.msra.mxu0 0
        %441 = vmatprep.subr.bf16.mxu0 0
        %442 = vmatpush1.bf16.msra.mxu0 0
        %443 = vmatprep.subr.bf16.mxu0 0
        %444 = vmatpush1.bf16.msra.mxu0 0
        %445 = vmatprep.subr.bf16.mxu0 0
        %446 = vmatpush1.bf16.msra.mxu0 0
        %447 = vmatprep.subr.bf16.mxu0 0
        %448 = vmatpush1.bf16.msra.mxu0 0
        %449 = vmatprep.subr.bf16.mxu0 0
        %450 = vmatpush1.bf16.msra.mxu0 0
        %451 = vmatprep.subr.bf16.mxu0 0
        %452 = vmatpush1.bf16.msra.mxu0 0
        %453 = vmatprep.subr.bf16.mxu0 0
        %454 = vmatpush1.bf16.msra.mxu0 0
        %455 = vmatprep.subr.bf16.mxu0 0
        %456 = vmatpush1.bf16.msra.mxu0 0
        %457 = vmatprep.subr.bf16.mxu0 0
        %458 = vmatpush1.bf16.msra.mxu0 0
        %459 = vmatprep.subr.bf16.mxu0 0
        %460 = vmatpush1.bf16.msra.mxu0 0
        %461 = vmatprep.subr.bf16.mxu0 0
        %462 = vmatpush1.bf16.msra.mxu0 0
        %463 = vmatprep.subr.bf16.mxu0 0
        %464 = vmatpush1.bf16.msra.mxu0 0
        %465 = vmatprep.mubr.bf16.mxu0 0
        %466 = vmatmul.mubr.bf16.gmra.mrb[0].mxu0 %v427
        %v467 = vpop.f32.mrb[0].mxu0
        %v468 = vadd.f32 %v423, %v467
        %v469 = vpop.f32.mrb[0].mxu0
        %v470 = vpop.f32.mrb[0].mxu0
        %v471 = vpop.f32.mrb[0].mxu0
        %472 = vdwg.mxu0
        %v473 = vmax.f32 %v468, 0.0
        %v474 = vpack.c.bf16 %v473, %v473
        %v475 = vld [vmem:[%s403] sm:$0xf]
        %v476 = vld [vmem:[%s403 + $0x4] sm:$0xf]
        %v477 = vld [vmem:[%s403 + $0x8] sm:$0xf]
        %v478 = vld [vmem:[%s403 + $0xc] sm:$0xf]
        %v479 = vld [vmem:[%s403 + $0x10] sm:$0xf]
        %v480 = vld [vmem:[%s403 + $0x14] sm:$0xf]
        %v481 = vld [vmem:[%s403 + $0x18] sm:$0xf]
        %v482 = vld [vmem:[%s403 + $0x1c] sm:$0xf]
        %v483 = vld [vmem:[%s403 + $0x20] sm:$0xf]
        %v484 = vld [vmem:[%s403 + $0x24] sm:$0xf]
        %v485 = vld [vmem:[%s403 + $0x28] sm:$0xf]
        %v486 = vld [vmem:[%s403 + $0x2c] sm:$0xf]
        %v487 = vld [vmem:[%s403 + $0x30] sm:$0xf]
        %v488 = vld [vmem:[%s403 + $0x34] sm:$0xf]
        %v489 = vld [vmem:[%s403 + $0x38] sm:$0xf]
        %v490 = vld [vmem:[%s403 + $0x3c] sm:$0xf]
        %v507 = vunpack.c.l.b16 %v475
        %v508 = vunpack.c.l.b16 %v476
        %v509 = vunpack.c.l.b16 %v477
        %v510 = vunpack.c.l.b16 %v478
        %v511 = vunpack.c.l.b16 %v479
        %v512 = vunpack.c.l.b16 %v480
        %v513 = vunpack.c.l.b16 %v481
        %v514 = vunpack.c.l.b16 %v482
        %v515 = vunpack.c.l.b16 %v483
        %v516 = vunpack.c.l.b16 %v484
        %v517 = vunpack.c.l.b16 %v485
        %v518 = vunpack.c.l.b16 %v486
        %v519 = vunpack.c.l.b16 %v487
        %v520 = vunpack.c.l.b16 %v488
        %v521 = vunpack.c.l.b16 %v489
        %v522 = vunpack.c.l.b16 %v490
        %v523 = vpack.c.b16 %v508, %v507
        %v524 = vpack.c.b16 %v510, %v509
        %v525 = vpack.c.b16 %v512, %v511
        %v526 = vpack.c.b16 %v514, %v513
        %v527 = vpack.c.b16 %v516, %v515
        %v528 = vpack.c.b16 %v518, %v517
        %v529 = vpack.c.b16 %v520, %v519
        %v530 = vpack.c.b16 %v522, %v521
        %539 = vmatprep.subr.bf16.mxu0 0
        %540 = vmatpush1.bf16.msra.mxu0 %v523
        %541 = vmatprep.subr.bf16.mxu0 0
        %542 = vmatpush1.bf16.msra.mxu0 %v524
        %543 = vmatprep.subr.bf16.mxu0 0
        %544 = vmatpush1.bf16.msra.mxu0 %v525
        %545 = vmatprep.subr.bf16.mxu0 0
        %546 = vmatpush1.bf16.msra.mxu0 %v526
        %547 = vmatprep.subr.bf16.mxu0 0
        %548 = vmatpush1.bf16.msra.mxu0 %v527
        %549 = vmatprep.subr.bf16.mxu0 0
        %550 = vmatpush1.bf16.msra.mxu0 %v528
        %551 = vmatprep.subr.bf16.mxu0 0
        %552 = vmatpush1.bf16.msra.mxu0 %v529
        %553 = vmatprep.subr.bf16.mxu0 0
        %554 = vmatpush1.bf16.msra.mxu0 %v530
        %555 = vmatprep.subr.bf16.mxu0 0
        %556 = vmatpush1.bf16.msra.mxu0 0
        %557 = vmatprep.subr.bf16.mxu0 0
        %558 = vmatpush1.bf16.msra.mxu0 0
        %559 = vmatprep.subr.bf16.mxu0 0
        %560 = vmatpush1.bf16.msra.mxu0 0
        %561 = vmatprep.subr.bf16.mxu0 0
        %562 = vmatpush1.bf16.msra.mxu0 0
        %563 = vmatprep.subr.bf16.mxu0 0
        %564 = vmatpush1.bf16.msra.mxu0 0
        %565 = vmatprep.subr.bf16.mxu0 0
        %566 = vmatpush1.bf16.msra.mxu0 0
        %567 = vmatprep.subr.bf16.mxu0 0
        %568 = vmatpush1.bf16.msra.mxu0 0
        %569 = vmatprep.subr.bf16.mxu0 0
        %570 = vmatpush1.bf16.msra.mxu0 0
        %571 = vmatprep.mubr.bf16.mxu0 0
        %572 = vmatmul.mubr.bf16.gmra.mrb[0].mxu0 %v474
        %v573 = vpop.f32.mrb[0].mxu0
        %v574 = vadd.f32 0.0, %v573
        %v575 = vpop.f32.mrb[0].mxu0
        %v576 = vpop.f32.mrb[0].mxu0
        %v577 = vpop.f32.mrb[0].mxu0
        %578 = vdwg.mxu0
        %s579 = scalar_lea.vmem %s349, 4 [#allocation2]
        %v580 = vld [vmem:[%s579] sm:$0xf]
        %v582 = vsel %vm425, %v580, 0
        %584 = vmatprep.subr.bf16.mxu0 0
        %585 = vmatpush1.bf16.msra.mxu0 %v431
        %586 = vmatprep.subr.bf16.mxu0 0
        %587 = vmatpush1.bf16.msra.mxu0 0
        %588 = vmatprep.subr.bf16.mxu0 0
        %589 = vmatpush1.bf16.msra.mxu0 0
        %590 = vmatprep.subr.bf16.mxu0 0
        %591 = vmatpush1.bf16.msra.mxu0 0
        %592 = vmatprep.subr.bf16.mxu0 0
        %593 = vmatpush1.bf16.msra.mxu0 0
        %594 = vmatprep.subr.bf16.mxu0 0
        %595 = vmatpush1.bf16.msra.mxu0 0
        %596 = vmatprep.subr.bf16.mxu0 0
        %597 = vmatpush1.bf16.msra.mxu0 0
        %598 = vmatprep.subr.bf16.mxu0 0
        %599 = vmatpush1.bf16.msra.mxu0 0
        %600 = vmatprep.subr.bf16.mxu0 0
        %601 = vmatpush1.bf16.msra.mxu0 0
        %602 = vmatprep.subr.bf16.mxu0 0
        %603 = vmatpush1.bf16.msra.mxu0 0
        %604 = vmatprep.subr.bf16.mxu0 0
        %605 = vmatpush1.bf16.msra.mxu0 0
        %606 = vmatprep.subr.bf16.mxu0 0
        %607 = vmatpush1.bf16.msra.mxu0 0
        %608 = vmatprep.subr.bf16.mxu0 0
        %609 = vmatpush1.bf16.msra.mxu0 0
        %610 = vmatprep.subr.bf16.mxu0 0
        %611 = vmatpush1.bf16.msra.mxu0 0
        %612 = vmatprep.subr.bf16.mxu0 0
        %613 = vmatpush1.bf16.msra.mxu0 0
        %614 = vmatprep.subr.bf16.mxu0 0
        %615 = vmatpush1.bf16.msra.mxu0 0
        %616 = vmatprep.mubr.bf16.mxu0 0
        %617 = vmatmul.mubr.bf16.gmra.mrb[0].mxu0 %v582
        %v618 = vpop.f32.mrb[0].mxu0
        %v619 = vadd.f32 %v423, %v618
        %v620 = vpop.f32.mrb[0].mxu0
        %v621 = vpop.f32.mrb[0].mxu0
        %v622 = vpop.f32.mrb[0].mxu0
        %623 = vdwg.mxu0
        %v624 = vmax.f32 %v619, 0.0
        %v625 = vpack.c.bf16 %v624, %v624
        %626 = vmatprep.subr.bf16.mxu0 0
        %627 = vmatpush1.bf16.msra.mxu0 %v523
        %628 = vmatprep.subr.bf16.mxu0 0
        %629 = vmatpush1.bf16.msra.mxu0 %v524
        %630 = vmatprep.subr.bf16.mxu0 0
        %631 = vmatpush1.bf16.msra.mxu0 %v525
        %632 = vmatprep.subr.bf16.mxu0 0
        %633 = vmatpush1.bf16.msra.mxu0 %v526
        %634 = vmatprep.subr.bf16.mxu0 0
        %635 = vmatpush1.bf16.msra.mxu0 %v527
        %636 = vmatprep.subr.bf16.mxu0 0
        %637 = vmatpush1.bf16.msra.mxu0 %v528
        %638 = vmatprep.subr.bf16.mxu0 0
        %639 = vmatpush1.bf16.msra.mxu0 %v529
        %640 = vmatprep.subr.bf16.mxu0 0
        %641 = vmatpush1.bf16.msra.mxu0 %v530
        %642 = vmatprep.subr.bf16.mxu0 0
        %643 = vmatpush1.bf16.msra.mxu0 0
        %644 = vmatprep.subr.bf16.mxu0 0
        %645 = vmatpush1.bf16.msra.mxu0 0
        %646 = vmatprep.subr.bf16.mxu0 0
        %647 = vmatpush1.bf16.msra.mxu0 0
        %648 = vmatprep.subr.bf16.mxu0 0
        %649 = vmatpush1.bf16.msra.mxu0 0
        %650 = vmatprep.subr.bf16.mxu0 0
        %651 = vmatpush1.bf16.msra.mxu0 0
        %652 = vmatprep.subr.bf16.mxu0 0
        %653 = vmatpush1.bf16.msra.mxu0 0
        %654 = vmatprep.subr.bf16.mxu0 0
        %655 = vmatpush1.bf16.msra.mxu0 0
        %656 = vmatprep.subr.bf16.mxu0 0
        %657 = vmatpush1.bf16.msra.mxu0 0
        %658 = vmatprep.mubr.bf16.mxu0 0
        %659 = vmatmul.mubr.bf16.gmra.mrb[0].mxu0 %v625
        %v660 = vpop.f32.mrb[0].mxu0
        %v661 = vadd.f32 0.0, %v660
        %v662 = vpop.f32.mrb[0].mxu0
        %v663 = vpop.f32.mrb[0].mxu0
        %v664 = vpop.f32.mrb[0].mxu0
        %665 = vdwg.mxu0
        %v666 = vmax.f32 %v574, %v661
        %s667 = scalar_lea.vmem %s349, 8 [#allocation2]
        %v668 = vld [vmem:[%s667] sm:$0xf]
        %v670 = vsel %vm425, %v668, 0
        %672 = vmatprep.subr.bf16.mxu0 0
        %673 = vmatpush1.bf16.msra.mxu0 %v431
        %674 = vmatprep.subr.bf16.mxu0 0
        %675 = vmatpush1.bf16.msra.mxu0 0
        %676 = vmatprep.subr.bf16.mxu0 0
        %677 = vmatpush1.bf16.msra.mxu0 0
        %678 = vmatprep.subr.bf16.mxu0 0
        %679 = vmatpush1.bf16.msra.mxu0 0
        %680 = vmatprep.subr.bf16.mxu0 0
        %681 = vmatpush1.bf16.msra.mxu0 0
        %682 = vmatprep.subr.bf16.mxu0 0
        %683 = vmatpush1.bf16.msra.mxu0 0
        %684 = vmatprep.subr.bf16.mxu0 0
        %685 = vmatpush1.bf16.msra.mxu0 0
        %686 = vmatprep.subr.bf16.mxu0 0
        %687 = vmatpush1.bf16.msra.mxu0 0
        %688 = vmatprep.subr.bf16.mxu0 0
        %689 = vmatpush1.bf16.msra.mxu0 0
        %690 = vmatprep.subr.bf16.mxu0 0
        %691 = vmatpush1.bf16.msra.mxu0 0
        %692 = vmatprep.subr.bf16.mxu0 0
        %693 = vmatpush1.bf16.msra.mxu0 0
        %694 = vmatprep.subr.bf16.mxu0 0
        %695 = vmatpush1.bf16.msra.mxu0 0
        %696 = vmatprep.subr.bf16.mxu0 0
        %697 = vmatpush1.bf16.msra.mxu0 0
        %698 = vmatprep.subr.bf16.mxu0 0
        %699 = vmatpush1.bf16.msra.mxu0 0
        %700 = vmatprep.subr.bf16.mxu0 0
        %701 = vmatpush1.bf16.msra.mxu0 0
        %702 = vmatprep.subr.bf16.mxu0 0
        %703 = vmatpush1.bf16.msra.mxu0 0
        %704 = vmatprep.mubr.bf16.mxu0 0
        %705 = vmatmul.mubr.bf16.gmra.mrb[0].mxu0 %v670
        %v706 = vpop.f32.mrb[0].mxu0
        %v707 = vadd.f32 %v423, %v706
        %v708 = vpop.f32.mrb[0].mxu0
        %v709 = vpop.f32.mrb[0].mxu0
        %v710 = vpop.f32.mrb[0].mxu0
        %711 = vdwg.mxu0
        %v712 = vmax.f32 %v707, 0.0
        %v713 = vpack.c.bf16 %v712, %v712
        %714 = vmatprep.subr.bf16.mxu0 0
        %715 = vmatpush1.bf16.msra.mxu0 %v523
        %716 = vmatprep.subr.bf16.mxu0 0
        %717 = vmatpush1.bf16.msra.mxu0 %v524
        %718 = vmatprep.subr.bf16.mxu0 0
        %719 = vmatpush1.bf16.msra.mxu0 %v525
        %720 = vmatprep.subr.bf16.mxu0 0
        %721 = vmatpush1.bf16.msra.mxu0 %v526
        %722 = vmatprep.subr.bf16.mxu0 0
        %723 = vmatpush1.bf16.msra.mxu0 %v527
        %724 = vmatprep.subr.bf16.mxu0 0
        %725 = vmatpush1.bf16.msra.mxu0 %v528
        %726 = vmatprep.subr.bf16.mxu0 0
        %727 = vmatpush1.bf16.msra.mxu0 %v529
        %728 = vmatprep.subr.bf16.mxu0 0
        %729 = vmatpush1.bf16.msra.mxu0 %v530
        %730 = vmatprep.subr.bf16.mxu0 0
        %731 = vmatpush1.bf16.msra.mxu0 0
        %732 = vmatprep.subr.bf16.mxu0 0
        %733 = vmatpush1.bf16.msra.mxu0 0
        %734 = vmatprep.subr.bf16.mxu0 0
        %735 = vmatpush1.bf16.msra.mxu0 0
        %736 = vmatprep.subr.bf16.mxu0 0
        %737 = vmatpush1.bf16.msra.mxu0 0
        %738 = vmatprep.subr.bf16.mxu0 0
        %739 = vmatpush1.bf16.msra.mxu0 0
        %740 = vmatprep.subr.bf16.mxu0 0
        %741 = vmatpush1.bf16.msra.mxu0 0
        %742 = vmatprep.subr.bf16.mxu0 0
        %743 = vmatpush1.bf16.msra.mxu0 0
        %744 = vmatprep.subr.bf16.mxu0 0
        %745 = vmatpush1.bf16.msra.mxu0 0
        %746 = vmatprep.mubr.bf16.mxu0 0
        %747 = vmatmul.mubr.bf16.gmra.mrb[0].mxu0 %v713
        %v748 = vpop.f32.mrb[0].mxu0
        %v749 = vadd.f32 0.0, %v748
        %v750 = vpop.f32.mrb[0].mxu0
        %v751 = vpop.f32.mrb[0].mxu0
        %v752 = vpop.f32.mrb[0].mxu0
        %753 = vdwg.mxu0
        %v754 = vmax.f32 %v666, %v749
        %s755 = scalar_lea.vmem %s349, 12 [#allocation2]
        %v756 = vld [vmem:[%s755] sm:$0xf]
        %v758 = vsel %vm425, %v756, 0
        %760 = vmatprep.subr.bf16.mxu0 0
        %761 = vmatpush1.bf16.msra.mxu0 %v431
        %762 = vmatprep.subr.bf16.mxu0 0
        %763 = vmatpush1.bf16.msra.mxu0 0
        %764 = vmatprep.subr.bf16.mxu0 0
        %765 = vmatpush1.bf16.msra.mxu0 0
        %766 = vmatprep.subr.bf16.mxu0 0
        %767 = vmatpush1.bf16.msra.mxu0 0
        %768 = vmatprep.subr.bf16.mxu0 0
        %769 = vmatpush1.bf16.msra.mxu0 0
        %770 = vmatprep.subr.bf16.mxu0 0
        %771 = vmatpush1.bf16.msra.mxu0 0
        %772 = vmatprep.subr.bf16.mxu0 0
        %773 = vmatpush1.bf16.msra.mxu0 0
        %774 = vmatprep.subr.bf16.mxu0 0
        %775 = vmatpush1.bf16.msra.mxu0 0
        %776 = vmatprep.subr.bf16.mxu0 0
        %777 = vmatpush1.bf16.msra.mxu0 0
        %778 = vmatprep.subr.bf16.mxu0 0
        %779 = vmatpush1.bf16.msra.mxu0 0
        %780 = vmatprep.subr.bf16.mxu0 0
        %781 = vmatpush1.bf16.msra.mxu0 0
        %782 = vmatprep.subr.bf16.mxu0 0
        %783 = vmatpush1.bf16.msra.mxu0 0
        %784 = vmatprep.subr.bf16.mxu0 0
        %785 = vmatpush1.bf16.msra.mxu0 0
        %786 = vmatprep.subr.bf16.mxu0 0
        %787 = vmatpush1.bf16.msra.mxu0 0
        %788 = vmatprep.subr.bf16.mxu0 0
        %789 = vmatpush1.bf16.msra.mxu0 0
        %790 = vmatprep.subr.bf16.mxu0 0
        %791 = vmatpush1.bf16.msra.mxu0 0
        %792 = vmatprep.mubr.bf16.mxu0 0
        %793 = vmatmul.mubr.bf16.gmra.mrb[0].mxu0 %v758
        %v794 = vpop.f32.mrb[0].mxu0
        %v795 = vadd.f32 %v423, %v794
        %v796 = vpop.f32.mrb[0].mxu0
        %v797 = vpop.f32.mrb[0].mxu0
        %v798 = vpop.f32.mrb[0].mxu0
        %799 = vdwg.mxu0
        %v800 = vmax.f32 %v795, 0.0
        %v801 = vpack.c.bf16 %v800, %v800
        %802 = vmatprep.subr.bf16.mxu0 0
        %803 = vmatpush1.bf16.msra.mxu0 %v523
        %804 = vmatprep.subr.bf16.mxu0 0
        %805 = vmatpush1.bf16.msra.mxu0 %v524
        %806 = vmatprep.subr.bf16.mxu0 0
        %807 = vmatpush1.bf16.msra.mxu0 %v525
        %808 = vmatprep.subr.bf16.mxu0 0
        %809 = vmatpush1.bf16.msra.mxu0 %v526
        %810 = vmatprep.subr.bf16.mxu0 0
        %811 = vmatpush1.bf16.msra.mxu0 %v527
        %812 = vmatprep.subr.bf16.mxu0 0
        %813 = vmatpush1.bf16.msra.mxu0 %v528
        %814 = vmatprep.subr.bf16.mxu0 0
        %815 = vmatpush1.bf16.msra.mxu0 %v529
        %816 = vmatprep.subr.bf16.mxu0 0
        %817 = vmatpush1.bf16.msra.mxu0 %v530
        %818 = vmatprep.subr.bf16.mxu0 0
        %819 = vmatpush1.bf16.msra.mxu0 0
        %820 = vmatprep.subr.bf16.mxu0 0
        %821 = vmatpush1.bf16.msra.mxu0 0
        %822 = vmatprep.subr.bf16.mxu0 0
        %823 = vmatpush1.bf16.msra.mxu0 0
        %824 = vmatprep.subr.bf16.mxu0 0
        %825 = vmatpush1.bf16.msra.mxu0 0
        %826 = vmatprep.subr.bf16.mxu0 0
        %827 = vmatpush1.bf16.msra.mxu0 0
        %828 = vmatprep.subr.bf16.mxu0 0
        %829 = vmatpush1.bf16.msra.mxu0 0
        %830 = vmatprep.subr.bf16.mxu0 0
        %831 = vmatpush1.bf16.msra.mxu0 0
        %832 = vmatprep.subr.bf16.mxu0 0
        %833 = vmatpush1.bf16.msra.mxu0 0
        %834 = vmatprep.mubr.bf16.mxu0 0
        %835 = vmatmul.mubr.bf16.gmra.mrb[0].mxu0 %v801
        %v836 = vpop.f32.mrb[0].mxu0
        %v837 = vadd.f32 0.0, %v836
        %v838 = vpop.f32.mrb[0].mxu0
        %v839 = vpop.f32.mrb[0].mxu0
        %v840 = vpop.f32.mrb[0].mxu0
        %841 = vdwg.mxu0
        %v842 = vmax.f32 %v754, %v837
        %s843 = scalar_lea.vmem %s349, 16 [#allocation2]
        %v844 = vld [vmem:[%s843] sm:$0xf]
        %v846 = vsel %vm425, %v844, 0
        %848 = vmatprep.subr.bf16.mxu0 0
        %849 = vmatpush1.bf16.msra.mxu0 %v431
        %850 = vmatprep.subr.bf16.mxu0 0
        %851 = vmatpush1.bf16.msra.mxu0 0
        %852 = vmatprep.subr.bf16.mxu0 0
        %853 = vmatpush1.bf16.msra.mxu0 0
        %854 = vmatprep.subr.bf16.mxu0 0
        %855 = vmatpush1.bf16.msra.mxu0 0
        %856 = vmatprep.subr.bf16.mxu0 0
        %857 = vmatpush1.bf16.msra.mxu0 0
        %858 = vmatprep.subr.bf16.mxu0 0
        %859 = vmatpush1.bf16.msra.mxu0 0
        %860 = vmatprep.subr.bf16.mxu0 0
        %861 = vmatpush1.bf16.msra.mxu0 0
        %862 = vmatprep.subr.bf16.mxu0 0
        %863 = vmatpush1.bf16.msra.mxu0 0
        %864 = vmatprep.subr.bf16.mxu0 0
        %865 = vmatpush1.bf16.msra.mxu0 0
        %866 = vmatprep.subr.bf16.mxu0 0
        %867 = vmatpush1.bf16.msra.mxu0 0
        %868 = vmatprep.subr.bf16.mxu0 0
        %869 = vmatpush1.bf16.msra.mxu0 0
        %870 = vmatprep.subr.bf16.mxu0 0
        %871 = vmatpush1.bf16.msra.mxu0 0
        %872 = vmatprep.subr.bf16.mxu0 0
        %873 = vmatpush1.bf16.msra.mxu0 0
        %874 = vmatprep.subr.bf16.mxu0 0
        %875 = vmatpush1.bf16.msra.mxu0 0
        %876 = vmatprep.subr.bf16.mxu0 0
        %877 = vmatpush1.bf16.msra.mxu0 0
        %878 = vmatprep.subr.bf16.mxu0 0
        %879 = vmatpush1.bf16.msra.mxu0 0
        %880 = vmatprep.mubr.bf16.mxu0 0
        %881 = vmatmul.mubr.bf16.gmra.mrb[0].mxu0 %v846
        %v882 = vpop.f32.mrb[0].mxu0
        %v883 = vadd.f32 %v423, %v882
        %v884 = vpop.f32.mrb[0].mxu0
        %v885 = vpop.f32.mrb[0].mxu0
        %v886 = vpop.f32.mrb[0].mxu0
        %887 = vdwg.mxu0
        %v888 = vmax.f32 %v883, 0.0
        %v889 = vpack.c.bf16 %v888, %v888
        %890 = vmatprep.subr.bf16.mxu0 0
        %891 = vmatpush1.bf16.msra.mxu0 %v523
        %892 = vmatprep.subr.bf16.mxu0 0
        %893 = vmatpush1.bf16.msra.mxu0 %v524
        %894 = vmatprep.subr.bf16.mxu0 0
        %895 = vmatpush1.bf16.msra.mxu0 %v525
        %896 = vmatprep.subr.bf16.mxu0 0
        %897 = vmatpush1.bf16.msra.mxu0 %v526
        %898 = vmatprep.subr.bf16.mxu0 0
        %899 = vmatpush1.bf16.msra.mxu0 %v527
        %900 = vmatprep.subr.bf16.mxu0 0
        %901 = vmatpush1.bf16.msra.mxu0 %v528
        %902 = vmatprep.subr.bf16.mxu0 0
        %903 = vmatpush1.bf16.msra.mxu0 %v529
        %904 = vmatprep.subr.bf16.mxu0 0
        %905 = vmatpush1.bf16.msra.mxu0 %v530
        %906 = vmatprep.subr.bf16.mxu0 0
        %907 = vmatpush1.bf16.msra.mxu0 0
        %908 = vmatprep.subr.bf16.mxu0 0
        %909 = vmatpush1.bf16.msra.mxu0 0
        %910 = vmatprep.subr.bf16.mxu0 0
        %911 = vmatpush1.bf16.msra.mxu0 0
        %912 = vmatprep.subr.bf16.mxu0 0
        %913 = vmatpush1.bf16.msra.mxu0 0
        %914 = vmatprep.subr.bf16.mxu0 0
        %915 = vmatpush1.bf16.msra.mxu0 0
        %916 = vmatprep.subr.bf16.mxu0 0
        %917 = vmatpush1.bf16.msra.mxu0 0
        %918 = vmatprep.subr.bf16.mxu0 0
        %919 = vmatpush1.bf16.msra.mxu0 0
        %920 = vmatprep.subr.bf16.mxu0 0
        %921 = vmatpush1.bf16.msra.mxu0 0
        %922 = vmatprep.mubr.bf16.mxu0 0
        %923 = vmatmul.mubr.bf16.gmra.mrb[0].mxu0 %v889
        %v924 = vpop.f32.mrb[0].mxu0
        %v925 = vadd.f32 0.0, %v924
        %v926 = vpop.f32.mrb[0].mxu0
        %v927 = vpop.f32.mrb[0].mxu0
        %v928 = vpop.f32.mrb[0].mxu0
        %929 = vdwg.mxu0
        %v930 = vmax.f32 %v842, %v925
        %s931 = scalar_lea.vmem %s349, 20 [#allocation2]
        %v932 = vld [vmem:[%s931] sm:$0xf]
        %v934 = vsel %vm425, %v932, 0
        %936 = vmatprep.subr.bf16.mxu0 0
        %937 = vmatpush1.bf16.msra.mxu0 %v431
        %938 = vmatprep.subr.bf16.mxu0 0
        %939 = vmatpush1.bf16.msra.mxu0 0
        %940 = vmatprep.subr.bf16.mxu0 0
        %941 = vmatpush1.bf16.msra.mxu0 0
        %942 = vmatprep.subr.bf16.mxu0 0
        %943 = vmatpush1.bf16.msra.mxu0 0
        %944 = vmatprep.subr.bf16.mxu0 0
        %945 = vmatpush1.bf16.msra.mxu0 0
        %946 = vmatprep.subr.bf16.mxu0 0
        %947 = vmatpush1.bf16.msra.mxu0 0
        %948 = vmatprep.subr.bf16.mxu0 0
        %949 = vmatpush1.bf16.msra.mxu0 0
        %950 = vmatprep.subr.bf16.mxu0 0
        %951 = vmatpush1.bf16.msra.mxu0 0
        %952 = vmatprep.subr.bf16.mxu0 0
        %953 = vmatpush1.bf16.msra.mxu0 0
        %954 = vmatprep.subr.bf16.mxu0 0
        %955 = vmatpush1.bf16.msra.mxu0 0
        %956 = vmatprep.subr.bf16.mxu0 0
        %957 = vmatpush1.bf16.msra.mxu0 0
        %958 = vmatprep.subr.bf16.mxu0 0
        %959 = vmatpush1.bf16.msra.mxu0 0
        %960 = vmatprep.subr.bf16.mxu0 0
        %961 = vmatpush1.bf16.msra.mxu0 0
        %962 = vmatprep.subr.bf16.mxu0 0
        %963 = vmatpush1.bf16.msra.mxu0 0
        %964 = vmatprep.subr.bf16.mxu0 0
        %965 = vmatpush1.bf16.msra.mxu0 0
        %966 = vmatprep.subr.bf16.mxu0 0
        %967 = vmatpush1.bf16.msra.mxu0 0
        %968 = vmatprep.mubr.bf16.mxu0 0
        %969 = vmatmul.mubr.bf16.gmra.mrb[0].mxu0 %v934
        %v970 = vpop.f32.mrb[0].mxu0
        %v971 = vadd.f32 %v423, %v970
        %v972 = vpop.f32.mrb[0].mxu0
        %v973 = vpop.f32.mrb[0].mxu0
        %v974 = vpop.f32.mrb[0].mxu0
        %975 = vdwg.mxu0
        %v976 = vmax.f32 %v971, 0.0
        %v977 = vpack.c.bf16 %v976, %v976
        %978 = vmatprep.subr.bf16.mxu0 0
        %979 = vmatpush1.bf16.msra.mxu0 %v523
        %980 = vmatprep.subr.bf16.mxu0 0
        %981 = vmatpush1.bf16.msra.mxu0 %v524
        %982 = vmatprep.subr.bf16.mxu0 0
        %983 = vmatpush1.bf16.msra.mxu0 %v525
        %984 = vmatprep.subr.bf16.mxu0 0
        %985 = vmatpush1.bf16.msra.mxu0 %v526
        %986 = vmatprep.subr.bf16.mxu0 0
        %987 = vmatpush1.bf16.msra.mxu0 %v527
        %988 = vmatprep.subr.bf16.mxu0 0
        %989 = vmatpush1.bf16.msra.mxu0 %v528
        %990 = vmatprep.subr.bf16.mxu0 0
        %991 = vmatpush1.bf16.msra.mxu0 %v529
        %992 = vmatprep.subr.bf16.mxu0 0
        %993 = vmatpush1.bf16.msra.mxu0 %v530
        %994 = vmatprep.subr.bf16.mxu0 0
        %995 = vmatpush1.bf16.msra.mxu0 0
        %996 = vmatprep.subr.bf16.mxu0 0
        %997 = vmatpush1.bf16.msra.mxu0 0
        %998 = vmatprep.subr.bf16.mxu0 0
        %999 = vmatpush1.bf16.msra.mxu0 0
        %1000 = vmatprep.subr.bf16.mxu0 0
        %1001 = vmatpush1.bf16.msra.mxu0 0
        %1002 = vmatprep.subr.bf16.mxu0 0
        %1003 = vmatpush1.bf16.msra.mxu0 0
        %1004 = vmatprep.subr.bf16.mxu0 0
        %1005 = vmatpush1.bf16.msra.mxu0 0
        %1006 = vmatprep.subr.bf16.mxu0 0
        %1007 = vmatpush1.bf16.msra.mxu0 0
        %1008 = vmatprep.subr.bf16.mxu0 0
        %1009 = vmatpush1.bf16.msra.mxu0 0
        %1010 = vmatprep.mubr.bf16.mxu0 0
        %1011 = vmatmul.mubr.bf16.gmra.mrb[0].mxu0 %v977
        %v1012 = vpop.f32.mrb[0].mxu0
        %v1013 = vadd.f32 0.0, %v1012
        %v1014 = vpop.f32.mrb[0].mxu0
        %v1015 = vpop.f32.mrb[0].mxu0
        %v1016 = vpop.f32.mrb[0].mxu0
        %1017 = vdwg.mxu0
        %v1018 = vmax.f32 %v930, %v1013
        %s1019 = scalar_lea.vmem %s349, 24 [#allocation2]
        %v1020 = vld [vmem:[%s1019] sm:$0xf]
        %v1022 = vsel %vm425, %v1020, 0
        %1024 = vmatprep.subr.bf16.mxu0 0
        %1025 = vmatpush1.bf16.msra.mxu0 %v431
        %1026 = vmatprep.subr.bf16.mxu0 0
        %1027 = vmatpush1.bf16.msra.mxu0 0
        %1028 = vmatprep.subr.bf16.mxu0 0
        %1029 = vmatpush1.bf16.msra.mxu0 0
        %1030 = vmatprep.subr.bf16.mxu0 0
        %1031 = vmatpush1.bf16.msra.mxu0 0
        %1032 = vmatprep.subr.bf16.mxu0 0
        %1033 = vmatpush1.bf16.msra.mxu0 0
        %1034 = vmatprep.subr.bf16.mxu0 0
        %1035 = vmatpush1.bf16.msra.mxu0 0
        %1036 = vmatprep.subr.bf16.mxu0 0
        %1037 = vmatpush1.bf16.msra.mxu0 0
        %1038 = vmatprep.subr.bf16.mxu0 0
        %1039 = vmatpush1.bf16.msra.mxu0 0
        %1040 = vmatprep.subr.bf16.mxu0 0
        %1041 = vmatpush1.bf16.msra.mxu0 0
        %1042 = vmatprep.subr.bf16.mxu0 0
        %1043 = vmatpush1.bf16.msra.mxu0 0
        %1044 = vmatprep.subr.bf16.mxu0 0
        %1045 = vmatpush1.bf16.msra.mxu0 0
        %1046 = vmatprep.subr.bf16.mxu0 0
        %1047 = vmatpush1.bf16.msra.mxu0 0
        %1048 = vmatprep.subr.bf16.mxu0 0
        %1049 = vmatpush1.bf16.msra.mxu0 0
        %1050 = vmatprep.subr.bf16.mxu0 0
        %1051 = vmatpush1.bf16.msra.mxu0 0
        %1052 = vmatprep.subr.bf16.mxu0 0
        %1053 = vmatpush1.bf16.msra.mxu0 0
        %1054 = vmatprep.subr.bf16.mxu0 0
        %1055 = vmatpush1.bf16.msra.mxu0 0
        %1056 = vmatprep.mubr.bf16.mxu0 0
        %1057 = vmatmul.mubr.bf16.gmra.mrb[0].mxu0 %v1022
        %v1058 = vpop.f32.mrb[0].mxu0
        %v1059 = vadd.f32 %v423, %v1058
        %v1060 = vpop.f32.mrb[0].mxu0
        %v1061 = vpop.f32.mrb[0].mxu0
        %v1062 = vpop.f32.mrb[0].mxu0
        %1063 = vdwg.mxu0
        %v1064 = vmax.f32 %v1059, 0.0
        %v1065 = vpack.c.bf16 %v1064, %v1064
        %1066 = vmatprep.subr.bf16.mxu0 0
        %1067 = vmatpush1.bf16.msra.mxu0 %v523
        %1068 = vmatprep.subr.bf16.mxu0 0
        %1069 = vmatpush1.bf16.msra.mxu0 %v524
        %1070 = vmatprep.subr.bf16.mxu0 0
        %1071 = vmatpush1.bf16.msra.mxu0 %v525
        %1072 = vmatprep.subr.bf16.mxu0 0
        %1073 = vmatpush1.bf16.msra.mxu0 %v526
        %1074 = vmatprep.subr.bf16.mxu0 0
        %1075 = vmatpush1.bf16.msra.mxu0 %v527
        %1076 = vmatprep.subr.bf16.mxu0 0
        %1077 = vmatpush1.bf16.msra.mxu0 %v528
        %1078 = vmatprep.subr.bf16.mxu0 0
        %1079 = vmatpush1.bf16.msra.mxu0 %v529
        %1080 = vmatprep.subr.bf16.mxu0 0
        %1081 = vmatpush1.bf16.msra.mxu0 %v530
        %1082 = vmatprep.subr.bf16.mxu0 0
        %1083 = vmatpush1.bf16.msra.mxu0 0
        %1084 = vmatprep.subr.bf16.mxu0 0
        %1085 = vmatpush1.bf16.msra.mxu0 0
        %1086 = vmatprep.subr.bf16.mxu0 0
        %1087 = vmatpush1.bf16.msra.mxu0 0
        %1088 = vmatprep.subr.bf16.mxu0 0
        %1089 = vmatpush1.bf16.msra.mxu0 0
        %1090 = vmatprep.subr.bf16.mxu0 0
        %1091 = vmatpush1.bf16.msra.mxu0 0
        %1092 = vmatprep.subr.bf16.mxu0 0
        %1093 = vmatpush1.bf16.msra.mxu0 0
        %1094 = vmatprep.subr.bf16.mxu0 0
        %1095 = vmatpush1.bf16.msra.mxu0 0
        %1096 = vmatprep.subr.bf16.mxu0 0
        %1097 = vmatpush1.bf16.msra.mxu0 0
        %1098 = vmatprep.mubr.bf16.mxu0 0
        %1099 = vmatmul.mubr.bf16.gmra.mrb[0].mxu0 %v1065
        %v1100 = vpop.f32.mrb[0].mxu0
        %v1101 = vadd.f32 0.0, %v1100
        %v1102 = vpop.f32.mrb[0].mxu0
        %v1103 = vpop.f32.mrb[0].mxu0
        %v1104 = vpop.f32.mrb[0].mxu0
        %1105 = vdwg.mxu0
        %v1106 = vmax.f32 %v1018, %v1101
        %s1107 = scalar_lea.vmem %s349, 28 [#allocation2]
        %v1108 = vld [vmem:[%s1107] sm:$0xf]
        %v1110 = vsel %vm425, %v1108, 0
        %1112 = vmatprep.subr.bf16.mxu0 0
        %1113 = vmatpush1.bf16.msra.mxu0 %v431
        %1114 = vmatprep.subr.bf16.mxu0 0
        %1115 = vmatpush1.bf16.msra.mxu0 0
        %1116 = vmatprep.subr.bf16.mxu0 0
        %1117 = vmatpush1.bf16.msra.mxu0 0
        %1118 = vmatprep.subr.bf16.mxu0 0
        %1119 = vmatpush1.bf16.msra.mxu0 0
        %1120 = vmatprep.subr.bf16.mxu0 0
        %1121 = vmatpush1.bf16.msra.mxu0 0
        %1122 = vmatprep.subr.bf16.mxu0 0
        %1123 = vmatpush1.bf16.msra.mxu0 0
        %1124 = vmatprep.subr.bf16.mxu0 0
        %1125 = vmatpush1.bf16.msra.mxu0 0
        %1126 = vmatprep.subr.bf16.mxu0 0
        %1127 = vmatpush1.bf16.msra.mxu0 0
        %1128 = vmatprep.subr.bf16.mxu0 0
        %1129 = vmatpush1.bf16.msra.mxu0 0
        %1130 = vmatprep.subr.bf16.mxu0 0
        %1131 = vmatpush1.bf16.msra.mxu0 0
        %1132 = vmatprep.subr.bf16.mxu0 0
        %1133 = vmatpush1.bf16.msra.mxu0 0
        %1134 = vmatprep.subr.bf16.mxu0 0
        %1135 = vmatpush1.bf16.msra.mxu0 0
        %1136 = vmatprep.subr.bf16.mxu0 0
        %1137 = vmatpush1.bf16.msra.mxu0 0
        %1138 = vmatprep.subr.bf16.mxu0 0
        %1139 = vmatpush1.bf16.msra.mxu0 0
        %1140 = vmatprep.subr.bf16.mxu0 0
        %1141 = vmatpush1.bf16.msra.mxu0 0
        %1142 = vmatprep.subr.bf16.mxu0 0
        %1143 = vmatpush1.bf16.msra.mxu0 0
        %1144 = vmatprep.mubr.bf16.mxu0 0
        %1145 = vmatmul.mubr.bf16.gmra.mrb[0].mxu0 %v1110
        %v1146 = vpop.f32.mrb[0].mxu0
        %v1147 = vadd.f32 %v423, %v1146
        %v1148 = vpop.f32.mrb[0].mxu0
        %v1149 = vpop.f32.mrb[0].mxu0
        %v1150 = vpop.f32.mrb[0].mxu0
        %1151 = vdwg.mxu0
        %v1152 = vmax.f32 %v1147, 0.0
        %v1153 = vpack.c.bf16 %v1152, %v1152
        %1154 = vmatprep.subr.bf16.mxu0 0
        %1155 = vmatpush1.bf16.msra.mxu0 %v523
        %1156 = vmatprep.subr.bf16.mxu0 0
        %1157 = vmatpush1.bf16.msra.mxu0 %v524
        %1158 = vmatprep.subr.bf16.mxu0 0
        %1159 = vmatpush1.bf16.msra.mxu0 %v525
        %1160 = vmatprep.subr.bf16.mxu0 0
        %1161 = vmatpush1.bf16.msra.mxu0 %v526
        %1162 = vmatprep.subr.bf16.mxu0 0
        %1163 = vmatpush1.bf16.msra.mxu0 %v527
        %1164 = vmatprep.subr.bf16.mxu0 0
        %1165 = vmatpush1.bf16.msra.mxu0 %v528
        %1166 = vmatprep.subr.bf16.mxu0 0
        %1167 = vmatpush1.bf16.msra.mxu0 %v529
        %1168 = vmatprep.subr.bf16.mxu0 0
        %1169 = vmatpush1.bf16.msra.mxu0 %v530
        %1170 = vmatprep.subr.bf16.mxu0 0
        %1171 = vmatpush1.bf16.msra.mxu0 0
        %1172 = vmatprep.subr.bf16.mxu0 0
        %1173 = vmatpush1.bf16.msra.mxu0 0
        %1174 = vmatprep.subr.bf16.mxu0 0
        %1175 = vmatpush1.bf16.msra.mxu0 0
        %1176 = vmatprep.subr.bf16.mxu0 0
        %1177 = vmatpush1.bf16.msra.mxu0 0
        %1178 = vmatprep.subr.bf16.mxu0 0
        %1179 = vmatpush1.bf16.msra.mxu0 0
        %1180 = vmatprep.subr.bf16.mxu0 0
        %1181 = vmatpush1.bf16.msra.mxu0 0
        %1182 = vmatprep.subr.bf16.mxu0 0
        %1183 = vmatpush1.bf16.msra.mxu0 0
        %1184 = vmatprep.subr.bf16.mxu0 0
        %1185 = vmatpush1.bf16.msra.mxu0 0
        %1186 = vmatprep.mubr.bf16.mxu0 0
        %1187 = vmatmul.mubr.bf16.gmra.mrb[0].mxu0 %v1153
        %v1188 = vpop.f32.mrb[0].mxu0
        %v1189 = vadd.f32 0.0, %v1188
        %v1190 = vpop.f32.mrb[0].mxu0
        %v1191 = vpop.f32.mrb[0].mxu0
        %v1192 = vpop.f32.mrb[0].mxu0
        %1193 = vdwg.mxu0
        %v1194 = vmax.f32 %v1106, %v1189
        %s1195 = scalar_lea.vmem %s349, 32 [#allocation2]
        %v1196 = vld [vmem:[%s1195] sm:$0xf]
        %v1198 = vsel %vm425, %v1196, 0
        %1200 = vmatprep.subr.bf16.mxu0 0
        %1201 = vmatpush1.bf16.msra.mxu0 %v431
        %1202 = vmatprep.subr.bf16.mxu0 0
        %1203 = vmatpush1.bf16.msra.mxu0 0
        %1204 = vmatprep.subr.bf16.mxu0 0
        %1205 = vmatpush1.bf16.msra.mxu0 0
        %1206 = vmatprep.subr.bf16.mxu0 0
        %1207 = vmatpush1.bf16.msra.mxu0 0
        %1208 = vmatprep.subr.bf16.mxu0 0
        %1209 = vmatpush1.bf16.msra.mxu0 0
        %1210 = vmatprep.subr.bf16.mxu0 0
        %1211 = vmatpush1.bf16.msra.mxu0 0
        %1212 = vmatprep.subr.bf16.mxu0 0
        %1213 = vmatpush1.bf16.msra.mxu0 0
        %1214 = vmatprep.subr.bf16.mxu0 0
        %1215 = vmatpush1.bf16.msra.mxu0 0
        %1216 = vmatprep.subr.bf16.mxu0 0
        %1217 = vmatpush1.bf16.msra.mxu0 0
        %1218 = vmatprep.subr.bf16.mxu0 0
        %1219 = vmatpush1.bf16.msra.mxu0 0
        %1220 = vmatprep.subr.bf16.mxu0 0
        %1221 = vmatpush1.bf16.msra.mxu0 0
        %1222 = vmatprep.subr.bf16.mxu0 0
        %1223 = vmatpush1.bf16.msra.mxu0 0
        %1224 = vmatprep.subr.bf16.mxu0 0
        %1225 = vmatpush1.bf16.msra.mxu0 0
        %1226 = vmatprep.subr.bf16.mxu0 0
        %1227 = vmatpush1.bf16.msra.mxu0 0
        %1228 = vmatprep.subr.bf16.mxu0 0
        %1229 = vmatpush1.bf16.msra.mxu0 0
        %1230 = vmatprep.subr.bf16.mxu0 0
        %1231 = vmatpush1.bf16.msra.mxu0 0
        %1232 = vmatprep.mubr.bf16.mxu0 0
        %1233 = vmatmul.mubr.bf16.gmra.mrb[0].mxu0 %v1198
        %v1234 = vpop.f32.mrb[0].mxu0
        %v1235 = vadd.f32 %v423, %v1234
        %v1236 = vpop.f32.mrb[0].mxu0
        %v1237 = vpop.f32.mrb[0].mxu0
        %v1238 = vpop.f32.mrb[0].mxu0
        %1239 = vdwg.mxu0
        %v1240 = vmax.f32 %v1235, 0.0
        %v1241 = vpack.c.bf16 %v1240, %v1240
        %1242 = vmatprep.subr.bf16.mxu0 0
        %1243 = vmatpush1.bf16.msra.mxu0 %v523
        %1244 = vmatprep.subr.bf16.mxu0 0
        %1245 = vmatpush1.bf16.msra.mxu0 %v524
        %1246 = vmatprep.subr.bf16.mxu0 0
        %1247 = vmatpush1.bf16.msra.mxu0 %v525
        %1248 = vmatprep.subr.bf16.mxu0 0
        %1249 = vmatpush1.bf16.msra.mxu0 %v526
        %1250 = vmatprep.subr.bf16.mxu0 0
        %1251 = vmatpush1.bf16.msra.mxu0 %v527
        %1252 = vmatprep.subr.bf16.mxu0 0
        %1253 = vmatpush1.bf16.msra.mxu0 %v528
        %1254 = vmatprep.subr.bf16.mxu0 0
        %1255 = vmatpush1.bf16.msra.mxu0 %v529
        %1256 = vmatprep.subr.bf16.mxu0 0
        %1257 = vmatpush1.bf16.msra.mxu0 %v530
        %1258 = vmatprep.subr.bf16.mxu0 0
        %1259 = vmatpush1.bf16.msra.mxu0 0
        %1260 = vmatprep.subr.bf16.mxu0 0
        %1261 = vmatpush1.bf16.msra.mxu0 0
        %1262 = vmatprep.subr.bf16.mxu0 0
        %1263 = vmatpush1.bf16.msra.mxu0 0
        %1264 = vmatprep.subr.bf16.mxu0 0
        %1265 = vmatpush1.bf16.msra.mxu0 0
        %1266 = vmatprep.subr.bf16.mxu0 0
        %1267 = vmatpush1.bf16.msra.mxu0 0
        %1268 = vmatprep.subr.bf16.mxu0 0
        %1269 = vmatpush1.bf16.msra.mxu0 0
        %1270 = vmatprep.subr.bf16.mxu0 0
        %1271 = vmatpush1.bf16.msra.mxu0 0
        %1272 = vmatprep.subr.bf16.mxu0 0
        %1273 = vmatpush1.bf16.msra.mxu0 0
        %1274 = vmatprep.mubr.bf16.mxu0 0
        %1275 = vmatmul.mubr.bf16.gmra.mrb[0].mxu0 %v1241
        %v1276 = vpop.f32.mrb[0].mxu0
        %v1277 = vadd.f32 0.0, %v1276
        %v1278 = vpop.f32.mrb[0].mxu0
        %v1279 = vpop.f32.mrb[0].mxu0
        %v1280 = vpop.f32.mrb[0].mxu0
        %1281 = vdwg.mxu0
        %v1282 = vmax.f32 %v1194, %v1277
        %s1283 = scalar_lea.vmem %s349, 36 [#allocation2]
        %v1284 = vld [vmem:[%s1283] sm:$0xf]
        %v1286 = vsel %vm425, %v1284, 0
        %1288 = vmatprep.subr.bf16.mxu0 0
        %1289 = vmatpush1.bf16.msra.mxu0 %v431
        %1290 = vmatprep.subr.bf16.mxu0 0
        %1291 = vmatpush1.bf16.msra.mxu0 0
        %1292 = vmatprep.subr.bf16.mxu0 0
        %1293 = vmatpush1.bf16.msra.mxu0 0
        %1294 = vmatprep.subr.bf16.mxu0 0
        %1295 = vmatpush1.bf16.msra.mxu0 0
        %1296 = vmatprep.subr.bf16.mxu0 0
        %1297 = vmatpush1.bf16.msra.mxu0 0
        %1298 = vmatprep.subr.bf16.mxu0 0
        %1299 = vmatpush1.bf16.msra.mxu0 0
        %1300 = vmatprep.subr.bf16.mxu0 0
        %1301 = vmatpush1.bf16.msra.mxu0 0
        %1302 = vmatprep.subr.bf16.mxu0 0
        %1303 = vmatpush1.bf16.msra.mxu0 0
        %1304 = vmatprep.subr.bf16.mxu0 0
        %1305 = vmatpush1.bf16.msra.mxu0 0
        %1306 = vmatprep.subr.bf16.mxu0 0
        %1307 = vmatpush1.bf16.msra.mxu0 0
        %1308 = vmatprep.subr.bf16.mxu0 0
        %1309 = vmatpush1.bf16.msra.mxu0 0
        %1310 = vmatprep.subr.bf16.mxu0 0
        %1311 = vmatpush1.bf16.msra.mxu0 0
        %1312 = vmatprep.subr.bf16.mxu0 0
        %1313 = vmatpush1.bf16.msra.mxu0 0
        %1314 = vmatprep.subr.bf16.mxu0 0
        %1315 = vmatpush1.bf16.msra.mxu0 0
        %1316 = vmatprep.subr.bf16.mxu0 0
        %1317 = vmatpush1.bf16.msra.mxu0 0
        %1318 = vmatprep.subr.bf16.mxu0 0
        %1319 = vmatpush1.bf16.msra.mxu0 0
        %1320 = vmatprep.mubr.bf16.mxu0 0
        %1321 = vmatmul.mubr.bf16.gmra.mrb[0].mxu0 %v1286
        %v1322 = vpop.f32.mrb[0].mxu0
        %v1323 = vadd.f32 %v423, %v1322
        %v1324 = vpop.f32.mrb[0].mxu0
        %v1325 = vpop.f32.mrb[0].mxu0
        %v1326 = vpop.f32.mrb[0].mxu0
        %1327 = vdwg.mxu0
        %v1328 = vmax.f32 %v1323, 0.0
        %v1329 = vpack.c.bf16 %v1328, %v1328
        %1330 = vmatprep.subr.bf16.mxu0 0
        %1331 = vmatpush1.bf16.msra.mxu0 %v523
        %1332 = vmatprep.subr.bf16.mxu0 0
        %1333 = vmatpush1.bf16.msra.mxu0 %v524
        %1334 = vmatprep.subr.bf16.mxu0 0
        %1335 = vmatpush1.bf16.msra.mxu0 %v525
        %1336 = vmatprep.subr.bf16.mxu0 0
        %1337 = vmatpush1.bf16.msra.mxu0 %v526
        %1338 = vmatprep.subr.bf16.mxu0 0
        %1339 = vmatpush1.bf16.msra.mxu0 %v527
        %1340 = vmatprep.subr.bf16.mxu0 0
        %1341 = vmatpush1.bf16.msra.mxu0 %v528
        %1342 = vmatprep.subr.bf16.mxu0 0
        %1343 = vmatpush1.bf16.msra.mxu0 %v529
        %1344 = vmatprep.subr.bf16.mxu0 0
        %1345 = vmatpush1.bf16.msra.mxu0 %v530
        %1346 = vmatprep.subr.bf16.mxu0 0
        %1347 = vmatpush1.bf16.msra.mxu0 0
        %1348 = vmatprep.subr.bf16.mxu0 0
        %1349 = vmatpush1.bf16.msra.mxu0 0
        %1350 = vmatprep.subr.bf16.mxu0 0
        %1351 = vmatpush1.bf16.msra.mxu0 0
        %1352 = vmatprep.subr.bf16.mxu0 0
        %1353 = vmatpush1.bf16.msra.mxu0 0
        %1354 = vmatprep.subr.bf16.mxu0 0
        %1355 = vmatpush1.bf16.msra.mxu0 0
        %1356 = vmatprep.subr.bf16.mxu0 0
        %1357 = vmatpush1.bf16.msra.mxu0 0
        %1358 = vmatprep.subr.bf16.mxu0 0
        %1359 = vmatpush1.bf16.msra.mxu0 0
        %1360 = vmatprep.subr.bf16.mxu0 0
        %1361 = vmatpush1.bf16.msra.mxu0 0
        %1362 = vmatprep.mubr.bf16.mxu0 0
        %1363 = vmatmul.mubr.bf16.gmra.mrb[0].mxu0 %v1329
        %v1364 = vpop.f32.mrb[0].mxu0
        %v1365 = vadd.f32 0.0, %v1364
        %v1366 = vpop.f32.mrb[0].mxu0
        %v1367 = vpop.f32.mrb[0].mxu0
        %v1368 = vpop.f32.mrb[0].mxu0
        %1369 = vdwg.mxu0
        %v1370 = vmax.f32 %v1282, %v1365
        %s1371 = scalar_lea.vmem %s349, 40 [#allocation2]
        %v1372 = vld [vmem:[%s1371] sm:$0xf]
        %v1374 = vsel %vm425, %v1372, 0
        %1376 = vmatprep.subr.bf16.mxu0 0
        %1377 = vmatpush1.bf16.msra.mxu0 %v431
        %1378 = vmatprep.subr.bf16.mxu0 0
        %1379 = vmatpush1.bf16.msra.mxu0 0
        %1380 = vmatprep.subr.bf16.mxu0 0
        %1381 = vmatpush1.bf16.msra.mxu0 0
        %1382 = vmatprep.subr.bf16.mxu0 0
        %1383 = vmatpush1.bf16.msra.mxu0 0
        %1384 = vmatprep.subr.bf16.mxu0 0
        %1385 = vmatpush1.bf16.msra.mxu0 0
        %1386 = vmatprep.subr.bf16.mxu0 0
        %1387 = vmatpush1.bf16.msra.mxu0 0
        %1388 = vmatprep.subr.bf16.mxu0 0
        %1389 = vmatpush1.bf16.msra.mxu0 0
        %1390 = vmatprep.subr.bf16.mxu0 0
        %1391 = vmatpush1.bf16.msra.mxu0 0
        %1392 = vmatprep.subr.bf16.mxu0 0
        %1393 = vmatpush1.bf16.msra.mxu0 0
        %1394 = vmatprep.subr.bf16.mxu0 0
        %1395 = vmatpush1.bf16.msra.mxu0 0
        %1396 = vmatprep.subr.bf16.mxu0 0
        %1397 = vmatpush1.bf16.msra.mxu0 0
        %1398 = vmatprep.subr.bf16.mxu0 0
        %1399 = vmatpush1.bf16.msra.mxu0 0
        %1400 = vmatprep.subr.bf16.mxu0 0
        %1401 = vmatpush1.bf16.msra.mxu0 0
        %1402 = vmatprep.subr.bf16.mxu0 0
        %1403 = vmatpush1.bf16.msra.mxu0 0
        %1404 = vmatprep.subr.bf16.mxu0 0
        %1405 = vmatpush1.bf16.msra.mxu0 0
        %1406 = vmatprep.subr.bf16.mxu0 0
        %1407 = vmatpush1.bf16.msra.mxu0 0
        %1408 = vmatprep.mubr.bf16.mxu0 0
        %1409 = vmatmul.mubr.bf16.gmra.mrb[0].mxu0 %v1374
        %v1410 = vpop.f32.mrb[0].mxu0
        %v1411 = vadd.f32 %v423, %v1410
        %v1412 = vpop.f32.mrb[0].mxu0
        %v1413 = vpop.f32.mrb[0].mxu0
        %v1414 = vpop.f32.mrb[0].mxu0
        %1415 = vdwg.mxu0
        %v1416 = vmax.f32 %v1411, 0.0
        %v1417 = vpack.c.bf16 %v1416, %v1416
        %1418 = vmatprep.subr.bf16.mxu0 0
        %1419 = vmatpush1.bf16.msra.mxu0 %v523
        %1420 = vmatprep.subr.bf16.mxu0 0
        %1421 = vmatpush1.bf16.msra.mxu0 %v524
        %1422 = vmatprep.subr.bf16.mxu0 0
        %1423 = vmatpush1.bf16.msra.mxu0 %v525
        %1424 = vmatprep.subr.bf16.mxu0 0
        %1425 = vmatpush1.bf16.msra.mxu0 %v526
        %1426 = vmatprep.subr.bf16.mxu0 0
        %1427 = vmatpush1.bf16.msra.mxu0 %v527
        %1428 = vmatprep.subr.bf16.mxu0 0
        %1429 = vmatpush1.bf16.msra.mxu0 %v528
        %1430 = vmatprep.subr.bf16.mxu0 0
        %1431 = vmatpush1.bf16.msra.mxu0 %v529
        %1432 = vmatprep.subr.bf16.mxu0 0
        %1433 = vmatpush1.bf16.msra.mxu0 %v530
        %1434 = vmatprep.subr.bf16.mxu0 0
        %1435 = vmatpush1.bf16.msra.mxu0 0
        %1436 = vmatprep.subr.bf16.mxu0 0
        %1437 = vmatpush1.bf16.msra.mxu0 0
        %1438 = vmatprep.subr.bf16.mxu0 0
        %1439 = vmatpush1.bf16.msra.mxu0 0
        %1440 = vmatprep.subr.bf16.mxu0 0
        %1441 = vmatpush1.bf16.msra.mxu0 0
        %1442 = vmatprep.subr.bf16.mxu0 0
        %1443 = vmatpush1.bf16.msra.mxu0 0
        %1444 = vmatprep.subr.bf16.mxu0 0
        %1445 = vmatpush1.bf16.msra.mxu0 0
        %1446 = vmatprep.subr.bf16.mxu0 0
        %1447 = vmatpush1.bf16.msra.mxu0 0
        %1448 = vmatprep.subr.bf16.mxu0 0
        %1449 = vmatpush1.bf16.msra.mxu0 0
        %1450 = vmatprep.mubr.bf16.mxu0 0
        %1451 = vmatmul.mubr.bf16.gmra.mrb[0].mxu0 %v1417
        %v1452 = vpop.f32.mrb[0].mxu0
        %v1453 = vadd.f32 0.0, %v1452
        %v1454 = vpop.f32.mrb[0].mxu0
        %v1455 = vpop.f32.mrb[0].mxu0
        %v1456 = vpop.f32.mrb[0].mxu0
        %1457 = vdwg.mxu0
        %v1458 = vmax.f32 %v1370, %v1453
        %s1459 = scalar_lea.vmem %s349, 44 [#allocation2]
        %v1460 = vld [vmem:[%s1459] sm:$0xf]
        %v1462 = vsel %vm425, %v1460, 0
        %1464 = vmatprep.subr.bf16.mxu0 0
        %1465 = vmatpush1.bf16.msra.mxu0 %v431
        %1466 = vmatprep.subr.bf16.mxu0 0
        %1467 = vmatpush1.bf16.msra.mxu0 0
        %1468 = vmatprep.subr.bf16.mxu0 0
        %1469 = vmatpush1.bf16.msra.mxu0 0
        %1470 = vmatprep.subr.bf16.mxu0 0
        %1471 = vmatpush1.bf16.msra.mxu0 0
        %1472 = vmatprep.subr.bf16.mxu0 0
        %1473 = vmatpush1.bf16.msra.mxu0 0
        %1474 = vmatprep.subr.bf16.mxu0 0
        %1475 = vmatpush1.bf16.msra.mxu0 0
        %1476 = vmatprep.subr.bf16.mxu0 0
        %1477 = vmatpush1.bf16.msra.mxu0 0
        %1478 = vmatprep.subr.bf16.mxu0 0
        %1479 = vmatpush1.bf16.msra.mxu0 0
        %1480 = vmatprep.subr.bf16.mxu0 0
        %1481 = vmatpush1.bf16.msra.mxu0 0
        %1482 = vmatprep.subr.bf16.mxu0 0
        %1483 = vmatpush1.bf16.msra.mxu0 0
        %1484 = vmatprep.subr.bf16.mxu0 0
        %1485 = vmatpush1.bf16.msra.mxu0 0
        %1486 = vmatprep.subr.bf16.mxu0 0
        %1487 = vmatpush1.bf16.msra.mxu0 0
        %1488 = vmatprep.subr.bf16.mxu0 0
        %1489 = vmatpush1.bf16.msra.mxu0 0
        %1490 = vmatprep.subr.bf16.mxu0 0
        %1491 = vmatpush1.bf16.msra.mxu0 0
        %1492 = vmatprep.subr.bf16.mxu0 0
        %1493 = vmatpush1.bf16.msra.mxu0 0
        %1494 = vmatprep.subr.bf16.mxu0 0
        %1495 = vmatpush1.bf16.msra.mxu0 0
        %1496 = vmatprep.mubr.bf16.mxu0 0
        %1497 = vmatmul.mubr.bf16.gmra.mrb[0].mxu0 %v1462
        %v1498 = vpop.f32.mrb[0].mxu0
        %v1499 = vadd.f32 %v423, %v1498
        %v1500 = vpop.f32.mrb[0].mxu0
        %v1501 = vpop.f32.mrb[0].mxu0
        %v1502 = vpop.f32.mrb[0].mxu0
        %1503 = vdwg.mxu0
        %v1504 = vmax.f32 %v1499, 0.0
        %v1505 = vpack.c.bf16 %v1504, %v1504
        %1506 = vmatprep.subr.bf16.mxu0 0
        %1507 = vmatpush1.bf16.msra.mxu0 %v523
        %1508 = vmatprep.subr.bf16.mxu0 0
        %1509 = vmatpush1.bf16.msra.mxu0 %v524
        %1510 = vmatprep.subr.bf16.mxu0 0
        %1511 = vmatpush1.bf16.msra.mxu0 %v525
        %1512 = vmatprep.subr.bf16.mxu0 0
        %1513 = vmatpush1.bf16.msra.mxu0 %v526
        %1514 = vmatprep.subr.bf16.mxu0 0
        %1515 = vmatpush1.bf16.msra.mxu0 %v527
        %1516 = vmatprep.subr.bf16.mxu0 0
        %1517 = vmatpush1.bf16.msra.mxu0 %v528
        %1518 = vmatprep.subr.bf16.mxu0 0
        %1519 = vmatpush1.bf16.msra.mxu0 %v529
        %1520 = vmatprep.subr.bf16.mxu0 0
        %1521 = vmatpush1.bf16.msra.mxu0 %v530
        %1522 = vmatprep.subr.bf16.mxu0 0
        %1523 = vmatpush1.bf16.msra.mxu0 0
        %1524 = vmatprep.subr.bf16.mxu0 0
        %1525 = vmatpush1.bf16.msra.mxu0 0
        %1526 = vmatprep.subr.bf16.mxu0 0
        %1527 = vmatpush1.bf16.msra.mxu0 0
        %1528 = vmatprep.subr.bf16.mxu0 0
        %1529 = vmatpush1.bf16.msra.mxu0 0
        %1530 = vmatprep.subr.bf16.mxu0 0
        %1531 = vmatpush1.bf16.msra.mxu0 0
        %1532 = vmatprep.subr.bf16.mxu0 0
        %1533 = vmatpush1.bf16.msra.mxu0 0
        %1534 = vmatprep.subr.bf16.mxu0 0
        %1535 = vmatpush1.bf16.msra.mxu0 0
        %1536 = vmatprep.subr.bf16.mxu0 0
        %1537 = vmatpush1.bf16.msra.mxu0 0
        %1538 = vmatprep.mubr.bf16.mxu0 0
        %1539 = vmatmul.mubr.bf16.gmra.mrb[0].mxu0 %v1505
        %v1540 = vpop.f32.mrb[0].mxu0
        %v1541 = vadd.f32 0.0, %v1540
        %v1542 = vpop.f32.mrb[0].mxu0
        %v1543 = vpop.f32.mrb[0].mxu0
        %v1544 = vpop.f32.mrb[0].mxu0
        %1545 = vdwg.mxu0
        %v1546 = vmax.f32 %v1458, %v1541
        %s1547 = scalar_lea.vmem %s349, 48 [#allocation2]
        %v1548 = vld [vmem:[%s1547] sm:$0xf]
        %v1550 = vsel %vm425, %v1548, 0
        %1552 = vmatprep.subr.bf16.mxu0 0
        %1553 = vmatpush1.bf16.msra.mxu0 %v431
        %1554 = vmatprep.subr.bf16.mxu0 0
        %1555 = vmatpush1.bf16.msra.mxu0 0
        %1556 = vmatprep.subr.bf16.mxu0 0
        %1557 = vmatpush1.bf16.msra.mxu0 0
        %1558 = vmatprep.subr.bf16.mxu0 0
        %1559 = vmatpush1.bf16.msra.mxu0 0
        %1560 = vmatprep.subr.bf16.mxu0 0
        %1561 = vmatpush1.bf16.msra.mxu0 0
        %1562 = vmatprep.subr.bf16.mxu0 0
        %1563 = vmatpush1.bf16.msra.mxu0 0
        %1564 = vmatprep.subr.bf16.mxu0 0
        %1565 = vmatpush1.bf16.msra.mxu0 0
        %1566 = vmatprep.subr.bf16.mxu0 0
        %1567 = vmatpush1.bf16.msra.mxu0 0
        %1568 = vmatprep.subr.bf16.mxu0 0
        %1569 = vmatpush1.bf16.msra.mxu0 0
        %1570 = vmatprep.subr.bf16.mxu0 0
        %1571 = vmatpush1.bf16.msra.mxu0 0
        %1572 = vmatprep.subr.bf16.mxu0 0
        %1573 = vmatpush1.bf16.msra.mxu0 0
        %1574 = vmatprep.subr.bf16.mxu0 0
        %1575 = vmatpush1.bf16.msra.mxu0 0
        %1576 = vmatprep.subr.bf16.mxu0 0
        %1577 = vmatpush1.bf16.msra.mxu0 0
        %1578 = vmatprep.subr.bf16.mxu0 0
        %1579 = vmatpush1.bf16.msra.mxu0 0
        %1580 = vmatprep.subr.bf16.mxu0 0
        %1581 = vmatpush1.bf16.msra.mxu0 0
        %1582 = vmatprep.subr.bf16.mxu0 0
        %1583 = vmatpush1.bf16.msra.mxu0 0
        %1584 = vmatprep.mubr.bf16.mxu0 0
        %1585 = vmatmul.mubr.bf16.gmra.mrb[0].mxu0 %v1550
        %v1586 = vpop.f32.mrb[0].mxu0
        %v1587 = vadd.f32 %v423, %v1586
        %v1588 = vpop.f32.mrb[0].mxu0
        %v1589 = vpop.f32.mrb[0].mxu0
        %v1590 = vpop.f32.mrb[0].mxu0
        %1591 = vdwg.mxu0
        %v1592 = vmax.f32 %v1587, 0.0
        %v1593 = vpack.c.bf16 %v1592, %v1592
        %1594 = vmatprep.subr.bf16.mxu0 0
        %1595 = vmatpush1.bf16.msra.mxu0 %v523
        %1596 = vmatprep.subr.bf16.mxu0 0
        %1597 = vmatpush1.bf16.msra.mxu0 %v524
        %1598 = vmatprep.subr.bf16.mxu0 0
        %1599 = vmatpush1.bf16.msra.mxu0 %v525
        %1600 = vmatprep.subr.bf16.mxu0 0
        %1601 = vmatpush1.bf16.msra.mxu0 %v526
        %1602 = vmatprep.subr.bf16.mxu0 0
        %1603 = vmatpush1.bf16.msra.mxu0 %v527
        %1604 = vmatprep.subr.bf16.mxu0 0
        %1605 = vmatpush1.bf16.msra.mxu0 %v528
        %1606 = vmatprep.subr.bf16.mxu0 0
        %1607 = vmatpush1.bf16.msra.mxu0 %v529
        %1608 = vmatprep.subr.bf16.mxu0 0
        %1609 = vmatpush1.bf16.msra.mxu0 %v530
        %1610 = vmatprep.subr.bf16.mxu0 0
        %1611 = vmatpush1.bf16.msra.mxu0 0
        %1612 = vmatprep.subr.bf16.mxu0 0
        %1613 = vmatpush1.bf16.msra.mxu0 0
        %1614 = vmatprep.subr.bf16.mxu0 0
        %1615 = vmatpush1.bf16.msra.mxu0 0
        %1616 = vmatprep.subr.bf16.mxu0 0
        %1617 = vmatpush1.bf16.msra.mxu0 0
        %1618 = vmatprep.subr.bf16.mxu0 0
        %1619 = vmatpush1.bf16.msra.mxu0 0
        %1620 = vmatprep.subr.bf16.mxu0 0
        %1621 = vmatpush1.bf16.msra.mxu0 0
        %1622 = vmatprep.subr.bf16.mxu0 0
        %1623 = vmatpush1.bf16.msra.mxu0 0
        %1624 = vmatprep.subr.bf16.mxu0 0
        %1625 = vmatpush1.bf16.msra.mxu0 0
        %1626 = vmatprep.mubr.bf16.mxu0 0
        %1627 = vmatmul.mubr.bf16.gmra.mrb[0].mxu0 %v1593
        %v1628 = vpop.f32.mrb[0].mxu0
        %v1629 = vadd.f32 0.0, %v1628
        %v1630 = vpop.f32.mrb[0].mxu0
        %v1631 = vpop.f32.mrb[0].mxu0
        %v1632 = vpop.f32.mrb[0].mxu0
        %1633 = vdwg.mxu0
        %v1634 = vmax.f32 %v1546, %v1629
        %s1635 = scalar_lea.vmem %s349, 52 [#allocation2]
        %v1636 = vld [vmem:[%s1635] sm:$0xf]
        %v1638 = vsel %vm425, %v1636, 0
        %1640 = vmatprep.subr.bf16.mxu0 0
        %1641 = vmatpush1.bf16.msra.mxu0 %v431
        %1642 = vmatprep.subr.bf16.mxu0 0
        %1643 = vmatpush1.bf16.msra.mxu0 0
        %1644 = vmatprep.subr.bf16.mxu0 0
        %1645 = vmatpush1.bf16.msra.mxu0 0
        %1646 = vmatprep.subr.bf16.mxu0 0
        %1647 = vmatpush1.bf16.msra.mxu0 0
        %1648 = vmatprep.subr.bf16.mxu0 0
        %1649 = vmatpush1.bf16.msra.mxu0 0
        %1650 = vmatprep.subr.bf16.mxu0 0
        %1651 = vmatpush1.bf16.msra.mxu0 0
        %1652 = vmatprep.subr.bf16.mxu0 0
        %1653 = vmatpush1.bf16.msra.mxu0 0
        %1654 = vmatprep.subr.bf16.mxu0 0
        %1655 = vmatpush1.bf16.msra.mxu0 0
        %1656 = vmatprep.subr.bf16.mxu0 0
        %1657 = vmatpush1.bf16.msra.mxu0 0
        %1658 = vmatprep.subr.bf16.mxu0 0
        %1659 = vmatpush1.bf16.msra.mxu0 0
        %1660 = vmatprep.subr.bf16.mxu0 0
        %1661 = vmatpush1.bf16.msra.mxu0 0
        %1662 = vmatprep.subr.bf16.mxu0 0
        %1663 = vmatpush1.bf16.msra.mxu0 0
        %1664 = vmatprep.subr.bf16.mxu0 0
        %1665 = vmatpush1.bf16.msra.mxu0 0
        %1666 = vmatprep.subr.bf16.mxu0 0
        %1667 = vmatpush1.bf16.msra.mxu0 0
        %1668 = vmatprep.subr.bf16.mxu0 0
        %1669 = vmatpush1.bf16.msra.mxu0 0
        %1670 = vmatprep.subr.bf16.mxu0 0
        %1671 = vmatpush1.bf16.msra.mxu0 0
        %1672 = vmatprep.mubr.bf16.mxu0 0
        %1673 = vmatmul.mubr.bf16.gmra.mrb[0].mxu0 %v1638
        %v1674 = vpop.f32.mrb[0].mxu0
        %v1675 = vadd.f32 %v423, %v1674
        %v1676 = vpop.f32.mrb[0].mxu0
        %v1677 = vpop.f32.mrb[0].mxu0
        %v1678 = vpop.f32.mrb[0].mxu0
        %1679 = vdwg.mxu0
        %v1680 = vmax.f32 %v1675, 0.0
        %v1681 = vpack.c.bf16 %v1680, %v1680
        %1682 = vmatprep.subr.bf16.mxu0 0
        %1683 = vmatpush1.bf16.msra.mxu0 %v523
        %1684 = vmatprep.subr.bf16.mxu0 0
        %1685 = vmatpush1.bf16.msra.mxu0 %v524
        %1686 = vmatprep.subr.bf16.mxu0 0
        %1687 = vmatpush1.bf16.msra.mxu0 %v525
        %1688 = vmatprep.subr.bf16.mxu0 0
        %1689 = vmatpush1.bf16.msra.mxu0 %v526
        %1690 = vmatprep.subr.bf16.mxu0 0
        %1691 = vmatpush1.bf16.msra.mxu0 %v527
        %1692 = vmatprep.subr.bf16.mxu0 0
        %1693 = vmatpush1.bf16.msra.mxu0 %v528
        %1694 = vmatprep.subr.bf16.mxu0 0
        %1695 = vmatpush1.bf16.msra.mxu0 %v529
        %1696 = vmatprep.subr.bf16.mxu0 0
        %1697 = vmatpush1.bf16.msra.mxu0 %v530
        %1698 = vmatprep.subr.bf16.mxu0 0
        %1699 = vmatpush1.bf16.msra.mxu0 0
        %1700 = vmatprep.subr.bf16.mxu0 0
        %1701 = vmatpush1.bf16.msra.mxu0 0
        %1702 = vmatprep.subr.bf16.mxu0 0
        %1703 = vmatpush1.bf16.msra.mxu0 0
        %1704 = vmatprep.subr.bf16.mxu0 0
        %1705 = vmatpush1.bf16.msra.mxu0 0
        %1706 = vmatprep.subr.bf16.mxu0 0
        %1707 = vmatpush1.bf16.msra.mxu0 0
        %1708 = vmatprep.subr.bf16.mxu0 0
        %1709 = vmatpush1.bf16.msra.mxu0 0
        %1710 = vmatprep.subr.bf16.mxu0 0
        %1711 = vmatpush1.bf16.msra.mxu0 0
        %1712 = vmatprep.subr.bf16.mxu0 0
        %1713 = vmatpush1.bf16.msra.mxu0 0
        %1714 = vmatprep.mubr.bf16.mxu0 0
        %1715 = vmatmul.mubr.bf16.gmra.mrb[0].mxu0 %v1681
        %v1716 = vpop.f32.mrb[0].mxu0
        %v1717 = vadd.f32 0.0, %v1716
        %v1718 = vpop.f32.mrb[0].mxu0
        %v1719 = vpop.f32.mrb[0].mxu0
        %v1720 = vpop.f32.mrb[0].mxu0
        %1721 = vdwg.mxu0
        %v1722 = vmax.f32 %v1634, %v1717
        %s1723 = scalar_lea.vmem %s349, 56 [#allocation2]
        %v1724 = vld [vmem:[%s1723] sm:$0xf]
        %v1726 = vsel %vm425, %v1724, 0
        %1728 = vmatprep.subr.bf16.mxu0 0
        %1729 = vmatpush1.bf16.msra.mxu0 %v431
        %1730 = vmatprep.subr.bf16.mxu0 0
        %1731 = vmatpush1.bf16.msra.mxu0 0
        %1732 = vmatprep.subr.bf16.mxu0 0
        %1733 = vmatpush1.bf16.msra.mxu0 0
        %1734 = vmatprep.subr.bf16.mxu0 0
        %1735 = vmatpush1.bf16.msra.mxu0 0
        %1736 = vmatprep.subr.bf16.mxu0 0
        %1737 = vmatpush1.bf16.msra.mxu0 0
        %1738 = vmatprep.subr.bf16.mxu0 0
        %1739 = vmatpush1.bf16.msra.mxu0 0
        %1740 = vmatprep.subr.bf16.mxu0 0
        %1741 = vmatpush1.bf16.msra.mxu0 0
        %1742 = vmatprep.subr.bf16.mxu0 0
        %1743 = vmatpush1.bf16.msra.mxu0 0
        %1744 = vmatprep.subr.bf16.mxu0 0
        %1745 = vmatpush1.bf16.msra.mxu0 0
        %1746 = vmatprep.subr.bf16.mxu0 0
        %1747 = vmatpush1.bf16.msra.mxu0 0
        %1748 = vmatprep.subr.bf16.mxu0 0
        %1749 = vmatpush1.bf16.msra.mxu0 0
        %1750 = vmatprep.subr.bf16.mxu0 0
        %1751 = vmatpush1.bf16.msra.mxu0 0
        %1752 = vmatprep.subr.bf16.mxu0 0
        %1753 = vmatpush1.bf16.msra.mxu0 0
        %1754 = vmatprep.subr.bf16.mxu0 0
        %1755 = vmatpush1.bf16.msra.mxu0 0
        %1756 = vmatprep.subr.bf16.mxu0 0
        %1757 = vmatpush1.bf16.msra.mxu0 0
        %1758 = vmatprep.subr.bf16.mxu0 0
        %1759 = vmatpush1.bf16.msra.mxu0 0
        %1760 = vmatprep.mubr.bf16.mxu0 0
        %1761 = vmatmul.mubr.bf16.gmra.mrb[0].mxu0 %v1726
        %v1762 = vpop.f32.mrb[0].mxu0
        %v1763 = vadd.f32 %v423, %v1762
        %v1764 = vpop.f32.mrb[0].mxu0
        %v1765 = vpop.f32.mrb[0].mxu0
        %v1766 = vpop.f32.mrb[0].mxu0
        %1767 = vdwg.mxu0
        %v1768 = vmax.f32 %v1763, 0.0
        %v1769 = vpack.c.bf16 %v1768, %v1768
        %1770 = vmatprep.subr.bf16.mxu0 0
        %1771 = vmatpush1.bf16.msra.mxu0 %v523
        %1772 = vmatprep.subr.bf16.mxu0 0
        %1773 = vmatpush1.bf16.msra.mxu0 %v524
        %1774 = vmatprep.subr.bf16.mxu0 0
        %1775 = vmatpush1.bf16.msra.mxu0 %v525
        %1776 = vmatprep.subr.bf16.mxu0 0
        %1777 = vmatpush1.bf16.msra.mxu0 %v526
        %1778 = vmatprep.subr.bf16.mxu0 0
        %1779 = vmatpush1.bf16.msra.mxu0 %v527
        %1780 = vmatprep.subr.bf16.mxu0 0
        %1781 = vmatpush1.bf16.msra.mxu0 %v528
        %1782 = vmatprep.subr.bf16.mxu0 0
        %1783 = vmatpush1.bf16.msra.mxu0 %v529
        %1784 = vmatprep.subr.bf16.mxu0 0
        %1785 = vmatpush1.bf16.msra.mxu0 %v530
        %1786 = vmatprep.subr.bf16.mxu0 0
        %1787 = vmatpush1.bf16.msra.mxu0 0
        %1788 = vmatprep.subr.bf16.mxu0 0
        %1789 = vmatpush1.bf16.msra.mxu0 0
        %1790 = vmatprep.subr.bf16.mxu0 0
        %1791 = vmatpush1.bf16.msra.mxu0 0
        %1792 = vmatprep.subr.bf16.mxu0 0
        %1793 = vmatpush1.bf16.msra.mxu0 0
        %1794 = vmatprep.subr.bf16.mxu0 0
        %1795 = vmatpush1.bf16.msra.mxu0 0
        %1796 = vmatprep.subr.bf16.mxu0 0
        %1797 = vmatpush1.bf16.msra.mxu0 0
        %1798 = vmatprep.subr.bf16.mxu0 0
        %1799 = vmatpush1.bf16.msra.mxu0 0
        %1800 = vmatprep.subr.bf16.mxu0 0
        %1801 = vmatpush1.bf16.msra.mxu0 0
        %1802 = vmatprep.mubr.bf16.mxu0 0
        %1803 = vmatmul.mubr.bf16.gmra.mrb[0].mxu0 %v1769
        %v1804 = vpop.f32.mrb[0].mxu0
        %v1805 = vadd.f32 0.0, %v1804
        %v1806 = vpop.f32.mrb[0].mxu0
        %v1807 = vpop.f32.mrb[0].mxu0
        %v1808 = vpop.f32.mrb[0].mxu0
        %1809 = vdwg.mxu0
        %v1810 = vmax.f32 %v1722, %v1805
        %s1811 = scalar_lea.vmem %s349, 60 [#allocation2]
        %v1812 = vld [vmem:[%s1811] sm:$0xf]
        %v1814 = vsel %vm425, %v1812, 0
        %1816 = vmatprep.subr.bf16.mxu0 0
        %1817 = vmatpush1.bf16.msra.mxu0 %v431
        %1818 = vmatprep.subr.bf16.mxu0 0
        %1819 = vmatpush1.bf16.msra.mxu0 0
        %1820 = vmatprep.subr.bf16.mxu0 0
        %1821 = vmatpush1.bf16.msra.mxu0 0
        %1822 = vmatprep.subr.bf16.mxu0 0
        %1823 = vmatpush1.bf16.msra.mxu0 0
        %1824 = vmatprep.subr.bf16.mxu0 0
        %1825 = vmatpush1.bf16.msra.mxu0 0
        %1826 = vmatprep.subr.bf16.mxu0 0
        %1827 = vmatpush1.bf16.msra.mxu0 0
        %1828 = vmatprep.subr.bf16.mxu0 0
        %1829 = vmatpush1.bf16.msra.mxu0 0
        %1830 = vmatprep.subr.bf16.mxu0 0
        %1831 = vmatpush1.bf16.msra.mxu0 0
        %1832 = vmatprep.subr.bf16.mxu0 0
        %1833 = vmatpush1.bf16.msra.mxu0 0
        %1834 = vmatprep.subr.bf16.mxu0 0
        %1835 = vmatpush1.bf16.msra.mxu0 0
        %1836 = vmatprep.subr.bf16.mxu0 0
        %1837 = vmatpush1.bf16.msra.mxu0 0
        %1838 = vmatprep.subr.bf16.mxu0 0
        %1839 = vmatpush1.bf16.msra.mxu0 0
        %1840 = vmatprep.subr.bf16.mxu0 0
        %1841 = vmatpush1.bf16.msra.mxu0 0
        %1842 = vmatprep.subr.bf16.mxu0 0
        %1843 = vmatpush1.bf16.msra.mxu0 0
        %1844 = vmatprep.subr.bf16.mxu0 0
        %1845 = vmatpush1.bf16.msra.mxu0 0
        %1846 = vmatprep.subr.bf16.mxu0 0
        %1847 = vmatpush1.bf16.msra.mxu0 0
        %1848 = vmatprep.mubr.bf16.mxu0 0
        %1849 = vmatmul.mubr.bf16.gmra.mrb[0].mxu0 %v1814
        %v1850 = vpop.f32.mrb[0].mxu0
        %v1851 = vadd.f32 %v423, %v1850
        %v1852 = vpop.f32.mrb[0].mxu0
        %v1853 = vpop.f32.mrb[0].mxu0
        %v1854 = vpop.f32.mrb[0].mxu0
        %1855 = vdwg.mxu0
        %v1856 = vmax.f32 %v1851, 0.0
        %v1857 = vpack.c.bf16 %v1856, %v1856
        %1858 = vmatprep.subr.bf16.mxu0 0
        %1859 = vmatpush1.bf16.msra.mxu0 %v523
        %1860 = vmatprep.subr.bf16.mxu0 0
        %1861 = vmatpush1.bf16.msra.mxu0 %v524
        %1862 = vmatprep.subr.bf16.mxu0 0
        %1863 = vmatpush1.bf16.msra.mxu0 %v525
        %1864 = vmatprep.subr.bf16.mxu0 0
        %1865 = vmatpush1.bf16.msra.mxu0 %v526
        %1866 = vmatprep.subr.bf16.mxu0 0
        %1867 = vmatpush1.bf16.msra.mxu0 %v527
        %1868 = vmatprep.subr.bf16.mxu0 0
        %1869 = vmatpush1.bf16.msra.mxu0 %v528
        %1870 = vmatprep.subr.bf16.mxu0 0
        %1871 = vmatpush1.bf16.msra.mxu0 %v529
        %1872 = vmatprep.subr.bf16.mxu0 0
        %1873 = vmatpush1.bf16.msra.mxu0 %v530
        %1874 = vmatprep.subr.bf16.mxu0 0
        %1875 = vmatpush1.bf16.msra.mxu0 0
        %1876 = vmatprep.subr.bf16.mxu0 0
        %1877 = vmatpush1.bf16.msra.mxu0 0
        %1878 = vmatprep.subr.bf16.mxu0 0
        %1879 = vmatpush1.bf16.msra.mxu0 0
        %1880 = vmatprep.subr.bf16.mxu0 0
        %1881 = vmatpush1.bf16.msra.mxu0 0
        %1882 = vmatprep.subr.bf16.mxu0 0
        %1883 = vmatpush1.bf16.msra.mxu0 0
        %1884 = vmatprep.subr.bf16.mxu0 0
        %1885 = vmatpush1.bf16.msra.mxu0 0
        %1886 = vmatprep.subr.bf16.mxu0 0
        %1887 = vmatpush1.bf16.msra.mxu0 0
        %1888 = vmatprep.subr.bf16.mxu0 0
        %1889 = vmatpush1.bf16.msra.mxu0 0
        %1890 = vmatprep.mubr.bf16.mxu0 0
        %1891 = vmatmul.mubr.bf16.gmra.mrb[0].mxu0 %v1857
        %v1892 = vpop.f32.mrb[0].mxu0
        %v1893 = vadd.f32 0.0, %v1892
        %v1894 = vpop.f32.mrb[0].mxu0
        %v1895 = vpop.f32.mrb[0].mxu0
        %v1896 = vpop.f32.mrb[0].mxu0
        %1897 = vdwg.mxu0
        %v1898 = vmax.f32 %v1810, %v1893
        %v1899 = vld [vmem:[%s406] sm:$0x1]
        %v1901 = vlaneseq
        %v1902 = vshrl.u32 %v1901, 7
        %v1903 = vsub.s32 0, %v1902
        %v1904 = vrot.slane %v1899, %v1903
        %v1906 = vadd.f32 %v1898, %v1904
        %v1907 = vmax.f32 %v1906, 0.0
        %1908 = vst [vmem:[%s414] sm:$0xff] %v1907
        %p1909 = scmp.lt.s32.totalorder %s20, 0
        %s1910 = scalar_select %p1909, %s20, 0
        %p1911 = scmp.lt.s32.totalorder %s21, 3
        %s1912 = scalar_select %p1911, %s21, 3
        %s1913 = smul.addr %s1910, 4
        %s1914 = sadd.s32 %s1912, %s1913
        %s1915 = smul.addr %s1914, 8
        %s1916 = scalar_lea.vmem %s5, %s1915
        // Predicated region
        $region82: #{a_call__.3} parent=76 // pred_check
          %p1917 = pneg %p180
        $region83: #{a_call__.3} parent=76 // pred_check_branch
          %1919 = sbr.rel (%p1917) target = $region85
        $region84: #{a_call__.3} parent=76 // pred_region
          _
        $region85: #{a_call__.3} parent=76 // pred_fallthru
          _
      $region77: #{a_call__.3} parent=5 // pred_fallthru
        _
      %p1920 = scmp.le.s32.totalorder 2, %s11
      // Predicated region
      $region86: #{a_call__.3} parent=5 // pred_check
        %p1921 = pneg %p1920
      $region87: #{a_call__.3} parent=5 // pred_check_branch
        %1923 = sbr.rel (%p1921) target = $region89
      $region88: #{a_call__.3} parent=5 // pred_region
        %s1924 = ssub.s32 %s11, 2
        // Predicated region
        $region90: #{a_call__.3} parent=88 // pred_check
          %p1925 = pneg %p186
        $region91: #{a_call__.3} parent=88 // pred_check_branch
          %1927 = sbr.rel (%p1925) target = $region93
        $region92: #{a_call__.3} parent=88 // pred_region
          %p1928 = scmp.lt.s32.totalorder %s22, 0
          %s1929 = scalar_select %p1928, %s22, 0
          %p1930 = scmp.lt.s32.totalorder %s23, 3
          %s1931 = scalar_select %p1930, %s23, 3
          %s1932 = smul.addr %s1929, 4
          %s1933 = sadd.s32 %s1931, %s1932
          %s1934 = smul.addr %s1933, 8
          %s1935 = scalar_lea.vmem %s5, %s1934
        $region93: #{a_call__.3} parent=88 // pred_fallthru
          _
      $region89: #{a_call__.3} parent=5 // pred_fallthru
        _
    $region6: #{a_call__.3} parent=1 // loop_footer
      %s15 = sadd.s32 1, %s11
    $region7: #{a_call__.3} parent=1 // loop_footer_branch
      %10 = sbr.rel target = $region3
    $region8: #{a_call__.3} parent=1 // loop_exit
      _

</llo_original>
